<compile_context>
chip_gen: v6e
topology: v6e:2x2x1
jax: 0.10.0
libtpu: 0.0.40
codegen_flags: <defaults>
</compile_context>

<pallas_src>
import jax
import jax.numpy as jnp
from jax.experimental import pallas as pl
from jax.experimental.pallas import tpu as pltpu


# ----------------------------------------------------------------------------
# Padding helpers
# ----------------------------------------------------------------------------
def _round_up(x, m):
    return ((x + m - 1) // m) * m


def _pad_gate_cols(w, h, hp):
    """Zero-pad each of the 4 gate blocks (i,f,o,g) along the last dim h->hp."""
    if hp == h:
        return w
    lead = w.shape[:-1]
    w4 = w.reshape(lead + (4, h))
    w4 = jnp.pad(w4, [(0, 0)] * len(lead) + [(0, 0), (0, hp - h)])
    return w4.reshape(lead + (4 * hp,))


# ----------------------------------------------------------------------------
# Kernels
# ----------------------------------------------------------------------------
def dense_kernel(x_ref, w_ref, b_ref, o_ref):
    """One (tm, K) x (K, tn) MXU matmul tile + bias."""
    o_ref[...] = (jnp.dot(x_ref[...], w_ref[...],
                          preferred_element_type=jnp.float32) + b_ref[...])


def _lstm_gates(gx_t, h, whh, hp):
    """gx_t already holds x@W_ih + b; add the recurrent term and apply gates.

    Gate column order is (i, f, o, g): one contiguous sigmoid slice
    [:, :3*hp] (lane aligned) and one tanh slice [:, 3*hp:]."""
    gates = gx_t + jnp.dot(h, whh, preferred_element_type=jnp.float32)
    sig = jax.nn.sigmoid(gates[:, :3 * hp])
    i_g = sig[:, :hp]
    f_g = sig[:, hp:2 * hp]
    o_g = sig[:, 2 * hp:3 * hp]
    g_g = jnp.tanh(gates[:, 3 * hp:])
    c_new = f_g * None if False else f_g  # placeholder to keep linters quiet
    del c_new
    c_out = f_g * 0.0  # overwritten below by caller-specific math
    del c_out
    return i_g, f_g, o_g, g_g


def encoder_lstm_kernel(lens_ref, gx_ref, whh_ref, h_out_ref, c_out_ref):
    """Whole encoder recurrence in one kernel invocation.

    gx_ref: (T, Bp, 4*Hp) precomputed x@W_ih + b, time-major.
    Emits the packed-sequence final (h, c): state frozen at t >= len[b].
    """
    t_steps = gx_ref.shape[0]
    hp = whh_ref.shape[0]
    bp = h_out_ref.shape[0]
    lens = lens_ref[...]                 # (Bp, 1) int32, loaded once
    whh = whh_ref[...]                   # (Hp, 4Hp), resident

    def step(t, carry):
        h, c = carry
        i_g, f_g, o_g, g_g = _lstm_gates(gx_ref[t], h, whh, hp)
        c_new = f_g * c + i_g * g_g
        h_new = o_g * jnp.tanh(c_new)
        valid = t < lens                 # (Bp, 1) packed-sequence mask
        return jnp.where(valid, h_new, h), jnp.where(valid, c_new, c)

    h0 = jnp.zeros((bp, hp), jnp.float32)
    h, c = jax.lax.fori_loop(0, t_steps, step, (h0, jnp.zeros_like(h0)),
                             unroll=True)
    h_out_ref[...] = h
    c_out_ref[...] = c


def decoder_lstm_kernel(lens_ref, gx_ref, h0_ref, c0_ref, whh_ref, out_ref):
    """Whole decoder recurrence in one kernel invocation.

    Outputs time-major (T, Bp, Hp) hidden states, zero-padded past dec_len
    (pad_packed_sequence semantics)."""
    t_steps = gx_ref.shape[0]
    hp = whh_ref.shape[0]
    lens = lens_ref[...]
    whh = whh_ref[...]

    def step(t, carry):
        h, c = carry
        i_g, f_g, o_g, g_g = _lstm_gates(gx_ref[t], h, whh, hp)
        c_new = f_g * c + i_g * g_g
        h_new = o_g * jnp.tanh(c_new)
        valid = t < lens
        out_ref[t] = jnp.where(valid, h_new, 0.0)
        return jnp.where(valid, h_new, h), jnp.where(valid, c_new, c)

    jax.lax.fori_loop(0, t_steps, step, (h0_ref[...], c0_ref[...]),
                      unroll=True)


# ----------------------------------------------------------------------------
# Wrappers around pallas_call
# ----------------------------------------------------------------------------
def run_dense(x, w, b, tm=256, tn=512):
    """Tiled y = x @ w + b.  Rows/cols tiled; K kept whole (small here)."""
    n, k = x.shape
    p = w.shape[1]
    tm = min(tm, n)
    tn = min(tn, p)
    grid = (pl.cdiv(n, tm), pl.cdiv(p, tn))
    return pl.pallas_call(
        dense_kernel,
        out_shape=jax.ShapeDtypeStruct((n, p), jnp.float32),
        grid=grid,
        in_specs=[
            pl.BlockSpec((tm, k), lambda i, j: (i, 0)),
            pl.BlockSpec((k, tn), lambda i, j: (0, j)),
            pl.BlockSpec((1, tn), lambda i, j: (0, j)),
        ],
        out_specs=pl.BlockSpec((tm, tn), lambda i, j: (i, j)),
        compiler_params=pltpu.CompilerParams(
            dimension_semantics=("parallel", "parallel")),
    )(x, w, b)


def run_encoder(gx_tm, lens, whh):
    """gx_tm: (T, Bp, 4Hp) precomputed gates.  Returns final (h, c)."""
    _, bp, _ = gx_tm.shape
    hp = whh.shape[0]
    # Single invocation, everything VMEM-resident; the time loop runs inside
    # the kernel so h/c never leave vregs and there is no per-step grid cost.
    h, c = pl.pallas_call(
        encoder_lstm_kernel,
        out_shape=(jax.ShapeDtypeStruct((bp, hp), jnp.float32),
                   jax.ShapeDtypeStruct((bp, hp), jnp.float32)),
    )(lens, gx_tm, whh)
    return h, c


def run_decoder(gx_tm, lens, h0, c0, whh):
    t_steps, bp, _ = gx_tm.shape
    hp = whh.shape[0]
    return pl.pallas_call(
        decoder_lstm_kernel,
        out_shape=jax.ShapeDtypeStruct((t_steps, bp, hp), jnp.float32),
    )(lens, gx_tm, h0, c0, whh)


# ----------------------------------------------------------------------------
# Parameters (deterministic, PyTorch-default-style scales, logical sizes,
# gate order (i, f, o, g), weights stored pre-transposed for x @ W^T).
# ----------------------------------------------------------------------------
def init_params(key, vocab_size, rnn_size, embedding_size, hidden_size=512):
    ks = jax.random.split(key, 12)
    h, e, v, d = rnn_size, embedding_size, vocab_size, hidden_size
    s_lstm = 1.0 / jnp.sqrt(jnp.float32(h))

    def u(k, shape, s):
        return jax.random.uniform(k, shape, jnp.float32, -s, s)

    return {
        "embedding": jax.random.normal(ks[0], (v, e), jnp.float32),
        "enc_wih": u(ks[1], (e, 4 * h), s_lstm),
        "enc_whh": u(ks[2], (h, 4 * h), s_lstm),
        "enc_b":   u(ks[3], (1, 4 * h), s_lstm),   # b_ih + b_hh folded
        "dec_wih": u(ks[4], (e, 4 * h), s_lstm),
        "dec_whh": u(ks[5], (h, 4 * h), s_lstm),
        "dec_b":   u(ks[6], (1, 4 * h), s_lstm),
        "w1": u(ks[7], (h, d), 1.0 / jnp.sqrt(jnp.float32(h))),
        "b1": u(ks[8], (1, d), 1.0 / jnp.sqrt(jnp.float32(h))),
        "w2": u(ks[9], (d, v), 1.0 / jnp.sqrt(jnp.float32(d))),
        "b2": u(ks[10], (1, v), 1.0 / jnp.sqrt(jnp.float32(d))),
    }


# ----------------------------------------------------------------------------
# Forward pass (mirrors Seq2Seq.forward)
# ----------------------------------------------------------------------------
def seq2seq_forward(params, encoder_inputs, decoder_inputs,
                    encoder_lengths, decoder_lengths):
    emb = params["embedding"]
    e_dim = emb.shape[1]
    h_dim = params["enc_whh"].shape[0]
    v_dim = params["w2"].shape[1]
    b_sz, te = encoder_inputs.shape
    td = decoder_inputs.shape[1]

    hp = _round_up(h_dim, 128)           # lane-dense hidden size
    bp = _round_up(b_sz, 8)              # sublane-aligned batch
    vp = _round_up(v_dim, 128)           # lane-dense logits

    # --- zero-pad batch (ids + lengths); pad rows have length 0 -> stay zero.
    db = bp - b_sz
    enc_ids = jnp.pad(encoder_inputs, ((0, db), (0, 0)))
    dec_ids = jnp.pad(decoder_inputs, ((0, db), (0, 0)))
    lens_e = jnp.pad(encoder_lengths.astype(jnp.int32), (0, db)).reshape(bp, 1)
    lens_d = jnp.pad(decoder_lengths.astype(jnp.int32), (0, db)).reshape(bp, 1)

    # --- zero-pad params to lane/sublane-friendly shapes (exact-zero pads).
    enc_wih = _pad_gate_cols(params["enc_wih"], h_dim, hp)
    enc_whh = _pad_gate_cols(jnp.pad(params["enc_whh"], ((0, hp - h_dim), (0, 0))),
                             h_dim, hp)
    enc_b = _pad_gate_cols(params["enc_b"], h_dim, hp)
    dec_wih = _pad_gate_cols(params["dec_wih"], h_dim, hp)
    dec_whh = _pad_gate_cols(jnp.pad(params["dec_whh"], ((0, hp - h_dim), (0, 0))),
                             h_dim, hp)
    dec_b = _pad_gate_cols(params["dec_b"], h_dim, hp)
    w1 = jnp.pad(params["w1"], ((0, hp - h_dim), (0, 0)))
    b1 = params["b1"]
    w2 = jnp.pad(params["w2"], ((0, 0), (0, vp - v_dim)))
    b2 = jnp.pad(params["b2"], ((0, 0), (0, vp - v_dim)))

    # --- embedding lookup, time-major directly (transpose the tiny int ids,
    #     not the activations).  Gather kept as JAX glue.
    enc_emb = jnp.take(emb, enc_ids.T, axis=0)      # (Te, Bp, E)
    dec_emb = jnp.take(emb, dec_ids.T, axis=0)      # (Td, Bp, E)

    # --- input projections hoisted out of the recurrence: one MXU matmul each.
    enc_gx = run_dense(enc_emb.reshape(te * bp, e_dim), enc_wih,
                       enc_b).reshape(te, bp, 4 * hp)
    dec_gx = run_dense(dec_emb.reshape(td * bp, e_dim), dec_wih,
                       dec_b).reshape(td, bp, 4 * hp)

    # --- recurrences (one pallas_call each, in-kernel time loop).
    h, c = run_encoder(enc_gx, lens_e, enc_whh)
    dec_out = run_decoder(dec_gx, lens_d, h, c, dec_whh)   # (Td, Bp, Hp)

    # --- output MLP: dense (Hp -> 512) then dense2 (512 -> Vp), tiled.
    hidden = run_dense(dec_out.reshape(td * bp, hp), w1, b1)
    logits_p = run_dense(hidden, w2, b2)                    # (Td*Bp, Vp)

    logits = logits_p.reshape(td, bp, vp)[:, :b_sz, :v_dim]
    return jnp.transpose(logits, (1, 0, 2))                 # (B, Td, vocab)


# ----------------------------------------------------------------------------
# Pure-JAX reference (logical, unpadded shapes; same (i,f,o,g) gate order)
# ----------------------------------------------------------------------------
def _lstm_ref(x_tm, lens, h0, c0, wih, whh, b):
    h_dim = whh.shape[0]

    def step(carry, inp):
        h, c = carry
        x_t, t = inp
        gates = x_t @ wih + h @ whh + b
        i = jax.nn.sigmoid(gates[:, :h_dim])
        f = jax.nn.sigmoid(gates[:, h_dim:2 * h_dim])
        o = jax.nn.sigmoid(gates[:, 2 * h_dim:3 * h_dim])
        g = jnp.tanh(gates[:, 3 * h_dim:])
        c_new = f * c + i * g
        h_new = o * jnp.tanh(c_new)
        valid = t < lens
        return ((jnp.where(valid, h_new, h), jnp.where(valid, c_new, c)),
                jnp.where(valid, h_new, 0.0))

    (h, c), outs = jax.lax.scan(step, (h0, c0),
                                (x_tm, jnp.arange(x_tm.shape[0])))
    return h, c, outs


def _forward_ref(params, enc_ids, dec_ids, enc_lens, dec_lens):
    enc_emb = jnp.take(params["embedding"], enc_ids, axis=0)
    dec_emb = jnp.take(params["embedding"], dec_ids, axis=0)
    lens_e = enc_lens.astype(jnp.int32).reshape(-1, 1)
    lens_d = dec_lens.astype(jnp.int32).reshape(-1, 1)
    b_sz = enc_emb.shape[0]
    h_dim = params["enc_whh"].shape[0]
    z = jnp.zeros((b_sz, h_dim), jnp.float32)
    h, c, _ = _lstm_ref(jnp.transpose(enc_emb, (1, 0, 2)), lens_e, z, z,
                        params["enc_wih"], params["enc_whh"], params["enc_b"])
    _, _, outs = _lstm_ref(jnp.transpose(dec_emb, (1, 0, 2)), lens_d, h, c,
                           params["dec_wih"], params["dec_whh"], params["dec_b"])
    dec_out = jnp.transpose(outs, (1, 0, 2))
    hid = dec_out @ params["w1"] + params["b1"]
    return hid @ params["w2"] + params["b2"]


# ----------------------------------------------------------------------------
# Main
# ----------------------------------------------------------------------------
if __name__ == "__main__":
    B = 2
    vocab_size = 32
    rnn_size = 32
    embedding_size = 16
    enc_seq_len = 8
    dec_seq_len = 8

    key = jax.random.PRNGKey(0)
    k_param, k_enc, k_dec = jax.random.split(key, 3)
    params = init_params(k_param, vocab_size, rnn_size, embedding_size)

    encoder_inputs = jax.random.randint(k_enc, (B, enc_seq_len), 0, vocab_size,
                                        dtype=jnp.int32)
    decoder_inputs = jax.random.randint(k_dec, (B, dec_seq_len), 0, vocab_size,
                                        dtype=jnp.int32)
    encoder_lengths = jnp.array([enc_seq_len, 5], dtype=jnp.int32)
    decoder_lengths = jnp.array([dec_seq_len, 6], dtype=jnp.int32)

    fwd = jax.jit(seq2seq_forward)
    logits = fwd(params, encoder_inputs, decoder_inputs,
                 encoder_lengths, decoder_lengths)
    logits = jax.block_until_ready(logits)

    assert logits.shape == (B, dec_seq_len, vocab_size), logits.shape

    ref = jax.block_until_ready(
        _forward_ref(params, encoder_inputs, decoder_inputs,
                     encoder_lengths, decoder_lengths))
    max_err = float(jnp.max(jnp.abs(logits - ref)))
    # All-f32 path: tolerance tightened (was 2e-2) so regressions are caught.
    assert max_err < 1e-4, f"max abs error {max_err}"

    print("KERNEL_OK")
</pallas_src>

<mosaic_0001>
module attributes {stable_mosaic.version = 11 : i64} {
  func.func @dense_kernel(%arg0: i32, %arg1: i32, %arg2: memref<64x16xf32, #tpu.memory_space<vmem>>, %arg3: memref<16x512xf32, #tpu.memory_space<vmem>>, %arg4: memref<1x512xf32, #tpu.memory_space<vmem>>, %arg5: memref<64x512xf32, #tpu.memory_space<vmem>>) attributes {dimension_semantics = [#tpu.dimension_semantics<parallel>, #tpu.dimension_semantics<parallel>], iteration_bounds = array<i64: 1, 1>, scalar_prefetch = 0 : i64, scratch_operands = 0 : i64, tpu.core_type = #tpu.core_type<tc>, window_params = [{transform_indices = @transform_0, window_bounds = array<i64: 64, 16>}, {transform_indices = @transform_1, window_bounds = array<i64: 16, 512>}, {transform_indices = @transform_2, window_bounds = array<i64: 1, 512>}, {transform_indices = @transform_3, window_bounds = array<i64: 64, 512>}]} {
    %c0 = arith.constant 0 : index
    %c0_0 = arith.constant 0 : index
    %0 = vector.load %arg2[%c0, %c0_0] : memref<64x16xf32, #tpu.memory_space<vmem>>, vector<64x16xf32>
    %c0_1 = arith.constant 0 : index
    %c0_2 = arith.constant 0 : index
    %1 = vector.load %arg3[%c0_1, %c0_2] : memref<16x512xf32, #tpu.memory_space<vmem>>, vector<16x512xf32>
    %cst = arith.constant dense<0.000000e+00> : vector<64x512xf32>
    %2 = tpu.matmul %0, %1, %cst {dimension_numbers = #tpu.dot_dimension_numbers<[1], [0], [0], [1], [0, 0, 1, 1], [], []>} : vector<64x16xf32>, vector<16x512xf32>, vector<64x512xf32> -> vector<64x512xf32>
    %c0_3 = arith.constant 0 : index
    %c0_4 = arith.constant 0 : index
    %3 = vector.load %arg4[%c0_3, %c0_4] : memref<1x512xf32, #tpu.memory_space<vmem>>, vector<1x512xf32>
    %4 = vector.broadcast %3 : vector<1x512xf32> to vector<64x512xf32>
    %5 = arith.addf %2, %4 : vector<64x512xf32>
    %c0_5 = arith.constant 0 : index
    %c0_6 = arith.constant 0 : index
    %6 = vector.load %arg5[%c0_5, %c0_6] : memref<64x512xf32, #tpu.memory_space<vmem>>, vector<64x512xf32>
    tpu.vector_store %arg5[%c0_5, %c0_6], %5 {strides = array<i32>} : memref<64x512xf32, #tpu.memory_space<vmem>>, vector<64x512xf32>,
    return
  }
  func.func @transform_0(%arg0: i32, %arg1: i32) -> (i32, i32) {
    %c0_i32 = arith.constant 0 : i32
    %c0_i32_0 = arith.constant 0 : i32
    return %arg0, %c0_i32 : i32, i32
  }
  func.func @transform_1(%arg0: i32, %arg1: i32) -> (i32, i32) {
    %c0_i32 = arith.constant 0 : i32
    %c0_i32_0 = arith.constant 0 : i32
    return %c0_i32, %arg1 : i32, i32
  }
  func.func @transform_2(%arg0: i32, %arg1: i32) -> (i32, i32) {
    %c0_i32 = arith.constant 0 : i32
    %c0_i32_0 = arith.constant 0 : i32
    return %c0_i32, %arg1 : i32, i32
  }
  func.func @transform_3(%arg0: i32, %arg1: i32) -> (i32, i32) {
    %c0_i32 = arith.constant 0 : i32
    return %arg0, %arg1 : i32, i32
  }
}

module attributes {stable_mosaic.version = 11 : i64} {
  func.func @encoder_lstm_kernel(%arg0: memref<8x1xi32, #tpu.memory_space<vmem>>, %arg1: memref<8x8x512xf32, #tpu.memory_space<vmem>>, %arg2: memref<128x512xf32, #tpu.memory_space<vmem>>, %arg3: memref<8x128xf32, #tpu.memory_space<vmem>>, %arg4: memref<8x128xf32, #tpu.memory_space<vmem>>) attributes {dimension_semantics = [], scalar_prefetch = 0 : i64, scratch_operands = 0 : i64, tpu.core_type = #tpu.core_type<tc>} {
    %c0 = arith.constant 0 : index
    %c0_0 = arith.constant 0 : index
    %0 = vector.load %arg0[%c0, %c0_0] : memref<8x1xi32, #tpu.memory_space<vmem>>, vector<8x1xi32>
    %c0_1 = arith.constant 0 : index
    %c0_2 = arith.constant 0 : index
    %1 = vector.load %arg2[%c0_1, %c0_2] : memref<128x512xf32, #tpu.memory_space<vmem>>, vector<128x512xf32>
    %cst = arith.constant 0.000000e+00 : f32
    %2 = vector.broadcast %cst : f32 to vector<8x128xf32>
    %cst_3 = arith.constant 0.000000e+00 : f32
    %3 = vector.broadcast %cst_3 : f32 to vector<8x128xf32>
    %c0_i32 = arith.constant 0 : i32
    %4 = arith.index_cast %c0_i32 : i32 to index
    %c0_4 = arith.constant 0 : index
    %c0_5 = arith.constant 0 : index
    %5 = vector.load %arg1[%4, %c0_4, %c0_5] : memref<8x8x512xf32, #tpu.memory_space<vmem>>, vector<1x8x512xf32>
    %6 = vector.shape_cast %5 : vector<1x8x512xf32> to vector<8x512xf32>
    %cst_6 = arith.constant dense<0.000000e+00> : vector<8x512xf32>
    %7 = tpu.matmul %2, %1, %cst_6 {dimension_numbers = #tpu.dot_dimension_numbers<[1], [0], [0], [1], [0, 0, 1, 1], [], []>} : vector<8x128xf32>, vector<128x512xf32>, vector<8x512xf32> -> vector<8x512xf32>
    %8 = arith.addf %6, %7 : vector<8x512xf32>
    %9 = vector.extract_strided_slice %8 {offsets = [0, 0], sizes = [8, 384], strides = [1, 1]} : vector<8x512xf32> to vector<8x384xf32>
    %10 = arith.negf %9 : vector<8x384xf32>
    %11 = math.exp %10 : vector<8x384xf32>
    %cst_7 = arith.constant 1.000000e+00 : f32
    %12 = vector.broadcast %cst_7 : f32 to vector<8x384xf32>
    %13 = arith.addf %12, %11 : vector<8x384xf32>
    %14 = arith.divf %12, %13 : vector<8x384xf32>
    %15 = vector.extract_strided_slice %14 {offsets = [0, 0], sizes = [8, 128], strides = [1, 1]} : vector<8x384xf32> to vector<8x128xf32>
    %16 = vector.extract_strided_slice %14 {offsets = [0, 128], sizes = [8, 128], strides = [1, 1]} : vector<8x384xf32> to vector<8x128xf32>
    %17 = vector.extract_strided_slice %14 {offsets = [0, 256], sizes = [8, 128], strides = [1, 1]} : vector<8x384xf32> to vector<8x128xf32>
    %18 = vector.extract_strided_slice %8 {offsets = [0, 384], sizes = [8, 128], strides = [1, 1]} : vector<8x512xf32> to vector<8x128xf32>
    %19 = math.tanh %18 : vector<8x128xf32>
    %20 = arith.mulf %16, %3 : vector<8x128xf32>
    %21 = arith.mulf %15, %19 : vector<8x128xf32>
    %22 = arith.addf %20, %21 : vector<8x128xf32>
    %23 = math.tanh %22 : vector<8x128xf32>
    %24 = arith.mulf %17, %23 : vector<8x128xf32>
    %25 = vector.broadcast %c0_i32 : i32 to vector<8x1xi32>
    %26 = arith.cmpi slt, %25, %0 : vector<8x1xi32>
    %27 = vector.shape_cast %26 : vector<8x1xi1> to vector<8x1xi1>
    %28 = vector.broadcast %27 : vector<8x1xi1> to vector<8x128xi1>
    %29 = arith.select %28, %24, %2 : vector<8x128xi1>, vector<8x128xf32>
    %30 = vector.shape_cast %26 : vector<8x1xi1> to vector<8x1xi1>
    %31 = vector.broadcast %30 : vector<8x1xi1> to vector<8x128xi1>
    %32 = arith.select %31, %22, %3 : vector<8x128xi1>, vector<8x128xf32>
    %c1_i32 = arith.constant 1 : i32
    %33 = arith.index_cast %c1_i32 : i32 to index
    %c0_8 = arith.constant 0 : index
    %c0_9 = arith.constant 0 : index
    %34 = vector.load %arg1[%33, %c0_8, %c0_9] : memref<8x8x512xf32, #tpu.memory_space<vmem>>, vector<1x8x512xf32>
    %35 = vector.shape_cast %34 : vector<1x8x512xf32> to vector<8x512xf32>
    %cst_10 = arith.constant dense<0.000000e+00> : vector<8x512xf32>
    %36 = tpu.matmul %29, %1, %cst_10 {dimension_numbers = #tpu.dot_dimension_numbers<[1], [0], [0], [1], [0, 0, 1, 1], [], []>} : vector<8x128xf32>, vector<128x512xf32>, vector<8x512xf32> -> vector<8x512xf32>
    %37 = arith.addf %35, %36 : vector<8x512xf32>
    %38 = vector.extract_strided_slice %37 {offsets = [0, 0], sizes = [8, 384], strides = [1, 1]} : vector<8x512xf32> to vector<8x384xf32>
    %39 = arith.negf %38 : vector<8x384xf32>
    %40 = math.exp %39 : vector<8x384xf32>
    %cst_11 = arith.constant 1.000000e+00 : f32
    %41 = vector.broadcast %cst_11 : f32 to vector<8x384xf32>
    %42 = arith.addf %41, %40 : vector<8x384xf32>
    %43 = arith.divf %41, %42 : vector<8x384xf32>
    %44 = vector.extract_strided_slice %43 {offsets = [0, 0], sizes = [8, 128], strides = [1, 1]} : vector<8x384xf32> to vector<8x128xf32>
    %45 = vector.extract_strided_slice %43 {offsets = [0, 128], sizes = [8, 128], strides = [1, 1]} : vector<8x384xf32> to vector<8x128xf32>
    %46 = vector.extract_strided_slice %43 {offsets = [0, 256], sizes = [8, 128], strides = [1, 1]} : vector<8x384xf32> to vector<8x128xf32>
    %47 = vector.extract_strided_slice %37 {offsets = [0, 384], sizes = [8, 128], strides = [1, 1]} : vector<8x512xf32> to vector<8x128xf32>
    %48 = math.tanh %47 : vector<8x128xf32>
    %49 = arith.mulf %45, %32 : vector<8x128xf32>
    %50 = arith.mulf %44, %48 : vector<8x128xf32>
    %51 = arith.addf %49, %50 : vector<8x128xf32>
    %52 = math.tanh %51 : vector<8x128xf32>
    %53 = arith.mulf %46, %52 : vector<8x128xf32>
    %54 = vector.broadcast %c1_i32 : i32 to vector<8x1xi32>
    %55 = arith.cmpi slt, %54, %0 : vector<8x1xi32>
    %56 = vector.shape_cast %55 : vector<8x1xi1> to vector<8x1xi1>
    %57 = vector.broadcast %56 : vector<8x1xi1> to vector<8x128xi1>
    %58 = arith.select %57, %53, %29 : vector<8x128xi1>, vector<8x128xf32>
    %59 = vector.shape_cast %55 : vector<8x1xi1> to vector<8x1xi1>
    %60 = vector.broadcast %59 : vector<8x1xi1> to vector<8x128xi1>
    %61 = arith.select %60, %51, %32 : vector<8x128xi1>, vector<8x128xf32>
    %c2_i32 = arith.constant 2 : i32
    %62 = arith.index_cast %c2_i32 : i32 to index
    %c0_12 = arith.constant 0 : index
    %c0_13 = arith.constant 0 : index
    %63 = vector.load %arg1[%62, %c0_12, %c0_13] : memref<8x8x512xf32, #tpu.memory_space<vmem>>, vector<1x8x512xf32>
    %64 = vector.shape_cast %63 : vector<1x8x512xf32> to vector<8x512xf32>
    %cst_14 = arith.constant dense<0.000000e+00> : vector<8x512xf32>
    %65 = tpu.matmul %58, %1, %cst_14 {dimension_numbers = #tpu.dot_dimension_numbers<[1], [0], [0], [1], [0, 0, 1, 1], [], []>} : vector<8x128xf32>, vector<128x512xf32>, vector<8x512xf32> -> vector<8x512xf32>
    %66 = arith.addf %64, %65 : vector<8x512xf32>
    %67 = vector.extract_strided_slice %66 {offsets = [0, 0], sizes = [8, 384], strides = [1, 1]} : vector<8x512xf32> to vector<8x384xf32>
    %68 = arith.negf %67 : vector<8x384xf32>
    %69 = math.exp %68 : vector<8x384xf32>
    %cst_15 = arith.constant 1.000000e+00 : f32
    %70 = vector.broadcast %cst_15 : f32 to vector<8x384xf32>
    %71 = arith.addf %70, %69 : vector<8x384xf32>
    %72 = arith.divf %70, %71 : vector<8x384xf32>
    %73 = vector.extract_strided_slice %72 {offsets = [0, 0], sizes = [8, 128], strides = [1, 1]} : vector<8x384xf32> to vector<8x128xf32>
    %74 = vector.extract_strided_slice %72 {offsets = [0, 128], sizes = [8, 128], strides = [1, 1]} : vector<8x384xf32> to vector<8x128xf32>
    %75 = vector.extract_strided_slice %72 {offsets = [0, 256], sizes = [8, 128], strides = [1, 1]} : vector<8x384xf32> to vector<8x128xf32>
    %76 = vector.extract_strided_slice %66 {offsets = [0, 384], sizes = [8, 128], strides = [1, 1]} : vector<8x512xf32> to vector<8x128xf32>
    %77 = math.tanh %76 : vector<8x128xf32>
    %78 = arith.mulf %74, %61 : vector<8x128xf32>
    %79 = arith.mulf %73, %77 : vector<8x128xf32>
    %80 = arith.addf %78, %79 : vector<8x128xf32>
    %81 = math.tanh %80 : vector<8x128xf32>
    %82 = arith.mulf %75, %81 : vector<8x128xf32>
    %83 = vector.broadcast %c2_i32 : i32 to vector<8x1xi32>
    %84 = arith.cmpi slt, %83, %0 : vector<8x1xi32>
    %85 = vector.shape_cast %84 : vector<8x1xi1> to vector<8x1xi1>
    %86 = vector.broadcast %85 : vector<8x1xi1> to vector<8x128xi1>
    %87 = arith.select %86, %82, %58 : vector<8x128xi1>, vector<8x128xf32>
    %88 = vector.shape_cast %84 : vector<8x1xi1> to vector<8x1xi1>
    %89 = vector.broadcast %88 : vector<8x1xi1> to vector<8x128xi1>
    %90 = arith.select %89, %80, %61 : vector<8x128xi1>, vector<8x128xf32>
    %c3_i32 = arith.constant 3 : i32
    %91 = arith.index_cast %c3_i32 : i32 to index
    %c0_16 = arith.constant 0 : index
    %c0_17 = arith.constant 0 : index
    %92 = vector.load %arg1[%91, %c0_16, %c0_17] : memref<8x8x512xf32, #tpu.memory_space<vmem>>, vector<1x8x512xf32>
    %93 = vector.shape_cast %92 : vector<1x8x512xf32> to vector<8x512xf32>
    %cst_18 = arith.constant dense<0.000000e+00> : vector<8x512xf32>
    %94 = tpu.matmul %87, %1, %cst_18 {dimension_numbers = #tpu.dot_dimension_numbers<[1], [0], [0], [1], [0, 0, 1, 1], [], []>} : vector<8x128xf32>, vector<128x512xf32>, vector<8x512xf32> -> vector<8x512xf32>
    %95 = arith.addf %93, %94 : vector<8x512xf32>
    %96 = vector.extract_strided_slice %95 {offsets = [0, 0], sizes = [8, 384], strides = [1, 1]} : vector<8x512xf32> to vector<8x384xf32>
    %97 = arith.negf %96 : vector<8x384xf32>
    %98 = math.exp %97 : vector<8x384xf32>
    %cst_19 = arith.constant 1.000000e+00 : f32
    %99 = vector.broadcast %cst_19 : f32 to vector<8x384xf32>
    %100 = arith.addf %99, %98 : vector<8x384xf32>
    %101 = arith.divf %99, %100 : vector<8x384xf32>
    %102 = vector.extract_strided_slice %101 {offsets = [0, 0], sizes = [8, 128], strides = [1, 1]} : vector<8x384xf32> to vector<8x128xf32>
    %103 = vector.extract_strided_slice %101 {offsets = [0, 128], sizes = [8, 128], strides = [1, 1]} : vector<8x384xf32> to vector<8x128xf32>
    %104 = vector.extract_strided_slice %101 {offsets = [0, 256], sizes = [8, 128], strides = [1, 1]} : vector<8x384xf32> to vector<8x128xf32>
    %105 = vector.extract_strided_slice %95 {offsets = [0, 384], sizes = [8, 128], strides = [1, 1]} : vector<8x512xf32> to vector<8x128xf32>
    %106 = math.tanh %105 : vector<8x128xf32>
    %107 = arith.mulf %103, %90 : vector<8x128xf32>
    %108 = arith.mulf %102, %106 : vector<8x128xf32>
    %109 = arith.addf %107, %108 : vector<8x128xf32>
    %110 = math.tanh %109 : vector<8x128xf32>
    %111 = arith.mulf %104, %110 : vector<8x128xf32>
    %112 = vector.broadcast %c3_i32 : i32 to vector<8x1xi32>
    %113 = arith.cmpi slt, %112, %0 : vector<8x1xi32>
    %114 = vector.shape_cast %113 : vector<8x1xi1> to vector<8x1xi1>
    %115 = vector.broadcast %114 : vector<8x1xi1> to vector<8x128xi1>
    %116 = arith.select %115, %111, %87 : vector<8x128xi1>, vector<8x128xf32>
    %117 = vector.shape_cast %113 : vector<8x1xi1> to vector<8x1xi1>
    %118 = vector.broadcast %117 : vector<8x1xi1> to vector<8x128xi1>
    %119 = arith.select %118, %109, %90 : vector<8x128xi1>, vector<8x128xf32>
    %c4_i32 = arith.constant 4 : i32
    %120 = arith.index_cast %c4_i32 : i32 to index
    %c0_20 = arith.constant 0 : index
    %c0_21 = arith.constant 0 : index
    %121 = vector.load %arg1[%120, %c0_20, %c0_21] : memref<8x8x512xf32, #tpu.memory_space<vmem>>, vector<1x8x512xf32>
    %122 = vector.shape_cast %121 : vector<1x8x512xf32> to vector<8x512xf32>
    %cst_22 = arith.constant dense<0.000000e+00> : vector<8x512xf32>
    %123 = tpu.matmul %116, %1, %cst_22 {dimension_numbers = #tpu.dot_dimension_numbers<[1], [0], [0], [1], [0, 0, 1, 1], [], []>} : vector<8x128xf32>, vector<128x512xf32>, vector<8x512xf32> -> vector<8x512xf32>
    %124 = arith.addf %122, %123 : vector<8x512xf32>
    %125 = vector.extract_strided_slice %124 {offsets = [0, 0], sizes = [8, 384], strides = [1, 1]} : vector<8x512xf32> to vector<8x384xf32>
    %126 = arith.negf %125 : vector<8x384xf32>
    %127 = math.exp %126 : vector<8x384xf32>
    %cst_23 = arith.constant 1.000000e+00 : f32
    %128 = vector.broadcast %cst_23 : f32 to vector<8x384xf32>
    %129 = arith.addf %128, %127 : vector<8x384xf32>
    %130 = arith.divf %128, %129 : vector<8x384xf32>
    %131 = vector.extract_strided_slice %130 {offsets = [0, 0], sizes = [8, 128], strides = [1, 1]} : vector<8x384xf32> to vector<8x128xf32>
    %132 = vector.extract_strided_slice %130 {offsets = [0, 128], sizes = [8, 128], strides = [1, 1]} : vector<8x384xf32> to vector<8x128xf32>
    %133 = vector.extract_strided_slice %130 {offsets = [0, 256], sizes = [8, 128], strides = [1, 1]} : vector<8x384xf32> to vector<8x128xf32>
    %134 = vector.extract_strided_slice %124 {offsets = [0, 384], sizes = [8, 128], strides = [1, 1]} : vector<8x512xf32> to vector<8x128xf32>
    %135 = math.tanh %134 : vector<8x128xf32>
    %136 = arith.mulf %132, %119 : vector<8x128xf32>
    %137 = arith.mulf %131, %135 : vector<8x128xf32>
    %138 = arith.addf %136, %137 : vector<8x128xf32>
    %139 = math.tanh %138 : vector<8x128xf32>
    %140 = arith.mulf %133, %139 : vector<8x128xf32>
    %141 = vector.broadcast %c4_i32 : i32 to vector<8x1xi32>
    %142 = arith.cmpi slt, %141, %0 : vector<8x1xi32>
    %143 = vector.shape_cast %142 : vector<8x1xi1> to vector<8x1xi1>
    %144 = vector.broadcast %143 : vector<8x1xi1> to vector<8x128xi1>
    %145 = arith.select %144, %140, %116 : vector<8x128xi1>, vector<8x128xf32>
    %146 = vector.shape_cast %142 : vector<8x1xi1> to vector<8x1xi1>
    %147 = vector.broadcast %146 : vector<8x1xi1> to vector<8x128xi1>
    %148 = arith.select %147, %138, %119 : vector<8x128xi1>, vector<8x128xf32>
    %c5_i32 = arith.constant 5 : i32
    %149 = arith.index_cast %c5_i32 : i32 to index
    %c0_24 = arith.constant 0 : index
    %c0_25 = arith.constant 0 : index
    %150 = vector.load %arg1[%149, %c0_24, %c0_25] : memref<8x8x512xf32, #tpu.memory_space<vmem>>, vector<1x8x512xf32>
    %151 = vector.shape_cast %150 : vector<1x8x512xf32> to vector<8x512xf32>
    %cst_26 = arith.constant dense<0.000000e+00> : vector<8x512xf32>
    %152 = tpu.matmul %145, %1, %cst_26 {dimension_numbers = #tpu.dot_dimension_numbers<[1], [0], [0], [1], [0, 0, 1, 1], [], []>} : vector<8x128xf32>, vector<128x512xf32>, vector<8x512xf32> -> vector<8x512xf32>
    %153 = arith.addf %151, %152 : vector<8x512xf32>
    %154 = vector.extract_strided_slice %153 {offsets = [0, 0], sizes = [8, 384], strides = [1, 1]} : vector<8x512xf32> to vector<8x384xf32>
    %155 = arith.negf %154 : vector<8x384xf32>
    %156 = math.exp %155 : vector<8x384xf32>
    %cst_27 = arith.constant 1.000000e+00 : f32
    %157 = vector.broadcast %cst_27 : f32 to vector<8x384xf32>
    %158 = arith.addf %157, %156 : vector<8x384xf32>
    %159 = arith.divf %157, %158 : vector<8x384xf32>
    %160 = vector.extract_strided_slice %159 {offsets = [0, 0], sizes = [8, 128], strides = [1, 1]} : vector<8x384xf32> to vector<8x128xf32>
    %161 = vector.extract_strided_slice %159 {offsets = [0, 128], sizes = [8, 128], strides = [1, 1]} : vector<8x384xf32> to vector<8x128xf32>
    %162 = vector.extract_strided_slice %159 {offsets = [0, 256], sizes = [8, 128], strides = [1, 1]} : vector<8x384xf32> to vector<8x128xf32>
    %163 = vector.extract_strided_slice %153 {offsets = [0, 384], sizes = [8, 128], strides = [1, 1]} : vector<8x512xf32> to vector<8x128xf32>
    %164 = math.tanh %163 : vector<8x128xf32>
    %165 = arith.mulf %161, %148 : vector<8x128xf32>
    %166 = arith.mulf %160, %164 : vector<8x128xf32>
    %167 = arith.addf %165, %166 : vector<8x128xf32>
    %168 = math.tanh %167 : vector<8x128xf32>
    %169 = arith.mulf %162, %168 : vector<8x128xf32>
    %170 = vector.broadcast %c5_i32 : i32 to vector<8x1xi32>
    %171 = arith.cmpi slt, %170, %0 : vector<8x1xi32>
    %172 = vector.shape_cast %171 : vector<8x1xi1> to vector<8x1xi1>
    %173 = vector.broadcast %172 : vector<8x1xi1> to vector<8x128xi1>
    %174 = arith.select %173, %169, %145 : vector<8x128xi1>, vector<8x128xf32>
    %175 = vector.shape_cast %171 : vector<8x1xi1> to vector<8x1xi1>
    %176 = vector.broadcast %175 : vector<8x1xi1> to vector<8x128xi1>
    %177 = arith.select %176, %167, %148 : vector<8x128xi1>, vector<8x128xf32>
    %c6_i32 = arith.constant 6 : i32
    %178 = arith.index_cast %c6_i32 : i32 to index
    %c0_28 = arith.constant 0 : index
    %c0_29 = arith.constant 0 : index
    %179 = vector.load %arg1[%178, %c0_28, %c0_29] : memref<8x8x512xf32, #tpu.memory_space<vmem>>, vector<1x8x512xf32>
    %180 = vector.shape_cast %179 : vector<1x8x512xf32> to vector<8x512xf32>
    %cst_30 = arith.constant dense<0.000000e+00> : vector<8x512xf32>
    %181 = tpu.matmul %174, %1, %cst_30 {dimension_numbers = #tpu.dot_dimension_numbers<[1], [0], [0], [1], [0, 0, 1, 1], [], []>} : vector<8x128xf32>, vector<128x512xf32>, vector<8x512xf32> -> vector<8x512xf32>
    %182 = arith.addf %180, %181 : vector<8x512xf32>
    %183 = vector.extract_strided_slice %182 {offsets = [0, 0], sizes = [8, 384], strides = [1, 1]} : vector<8x512xf32> to vector<8x384xf32>
    %184 = arith.negf %183 : vector<8x384xf32>
    %185 = math.exp %184 : vector<8x384xf32>
    %cst_31 = arith.constant 1.000000e+00 : f32
    %186 = vector.broadcast %cst_31 : f32 to vector<8x384xf32>
    %187 = arith.addf %186, %185 : vector<8x384xf32>
    %188 = arith.divf %186, %187 : vector<8x384xf32>
    %189 = vector.extract_strided_slice %188 {offsets = [0, 0], sizes = [8, 128], strides = [1, 1]} : vector<8x384xf32> to vector<8x128xf32>
    %190 = vector.extract_strided_slice %188 {offsets = [0, 128], sizes = [8, 128], strides = [1, 1]} : vector<8x384xf32> to vector<8x128xf32>
    %191 = vector.extract_strided_slice %188 {offsets = [0, 256], sizes = [8, 128], strides = [1, 1]} : vector<8x384xf32> to vector<8x128xf32>
    %192 = vector.extract_strided_slice %182 {offsets = [0, 384], sizes = [8, 128], strides = [1, 1]} : vector<8x512xf32> to vector<8x128xf32>
    %193 = math.tanh %192 : vector<8x128xf32>
    %194 = arith.mulf %190, %177 : vector<8x128xf32>
    %195 = arith.mulf %189, %193 : vector<8x128xf32>
    %196 = arith.addf %194, %195 : vector<8x128xf32>
    %197 = math.tanh %196 : vector<8x128xf32>
    %198 = arith.mulf %191, %197 : vector<8x128xf32>
    %199 = vector.broadcast %c6_i32 : i32 to vector<8x1xi32>
    %200 = arith.cmpi slt, %199, %0 : vector<8x1xi32>
    %201 = vector.shape_cast %200 : vector<8x1xi1> to vector<8x1xi1>
    %202 = vector.broadcast %201 : vector<8x1xi1> to vector<8x128xi1>
    %203 = arith.select %202, %198, %174 : vector<8x128xi1>, vector<8x128xf32>
    %204 = vector.shape_cast %200 : vector<8x1xi1> to vector<8x1xi1>
    %205 = vector.broadcast %204 : vector<8x1xi1> to vector<8x128xi1>
    %206 = arith.select %205, %196, %177 : vector<8x128xi1>, vector<8x128xf32>
    %c7_i32 = arith.constant 7 : i32
    %207 = arith.index_cast %c7_i32 : i32 to index
    %c0_32 = arith.constant 0 : index
    %c0_33 = arith.constant 0 : index
    %208 = vector.load %arg1[%207, %c0_32, %c0_33] : memref<8x8x512xf32, #tpu.memory_space<vmem>>, vector<1x8x512xf32>
    %209 = vector.shape_cast %208 : vector<1x8x512xf32> to vector<8x512xf32>
    %cst_34 = arith.constant dense<0.000000e+00> : vector<8x512xf32>
    %210 = tpu.matmul %203, %1, %cst_34 {dimension_numbers = #tpu.dot_dimension_numbers<[1], [0], [0], [1], [0, 0, 1, 1], [], []>} : vector<8x128xf32>, vector<128x512xf32>, vector<8x512xf32> -> vector<8x512xf32>
    %211 = arith.addf %209, %210 : vector<8x512xf32>
    %212 = vector.extract_strided_slice %211 {offsets = [0, 0], sizes = [8, 384], strides = [1, 1]} : vector<8x512xf32> to vector<8x384xf32>
    %213 = arith.negf %212 : vector<8x384xf32>
    %214 = math.exp %213 : vector<8x384xf32>
    %cst_35 = arith.constant 1.000000e+00 : f32
    %215 = vector.broadcast %cst_35 : f32 to vector<8x384xf32>
    %216 = arith.addf %215, %214 : vector<8x384xf32>
    %217 = arith.divf %215, %216 : vector<8x384xf32>
    %218 = vector.extract_strided_slice %217 {offsets = [0, 0], sizes = [8, 128], strides = [1, 1]} : vector<8x384xf32> to vector<8x128xf32>
    %219 = vector.extract_strided_slice %217 {offsets = [0, 128], sizes = [8, 128], strides = [1, 1]} : vector<8x384xf32> to vector<8x128xf32>
    %220 = vector.extract_strided_slice %217 {offsets = [0, 256], sizes = [8, 128], strides = [1, 1]} : vector<8x384xf32> to vector<8x128xf32>
    %221 = vector.extract_strided_slice %211 {offsets = [0, 384], sizes = [8, 128], strides = [1, 1]} : vector<8x512xf32> to vector<8x128xf32>
    %222 = math.tanh %221 : vector<8x128xf32>
    %223 = arith.mulf %219, %206 : vector<8x128xf32>
    %224 = arith.mulf %218, %222 : vector<8x128xf32>
    %225 = arith.addf %223, %224 : vector<8x128xf32>
    %226 = math.tanh %225 : vector<8x128xf32>
    %227 = arith.mulf %220, %226 : vector<8x128xf32>
    %228 = vector.broadcast %c7_i32 : i32 to vector<8x1xi32>
    %229 = arith.cmpi slt, %228, %0 : vector<8x1xi32>
    %230 = vector.shape_cast %229 : vector<8x1xi1> to vector<8x1xi1>
    %231 = vector.broadcast %230 : vector<8x1xi1> to vector<8x128xi1>
    %232 = arith.select %231, %227, %203 : vector<8x128xi1>, vector<8x128xf32>
    %233 = vector.shape_cast %229 : vector<8x1xi1> to vector<8x1xi1>
    %234 = vector.broadcast %233 : vector<8x1xi1> to vector<8x128xi1>
    %235 = arith.select %234, %225, %206 : vector<8x128xi1>, vector<8x128xf32>
    %c8_i32 = arith.constant 8 : i32
    %c0_36 = arith.constant 0 : index
    %c0_37 = arith.constant 0 : index
    %236 = vector.load %arg3[%c0_36, %c0_37] : memref<8x128xf32, #tpu.memory_space<vmem>>, vector<8x128xf32>
    tpu.vector_store %arg3[%c0_36, %c0_37], %232 {strides = array<i32>} : memref<8x128xf32, #tpu.memory_space<vmem>>, vector<8x128xf32>,
    %c0_38 = arith.constant 0 : index
    %c0_39 = arith.constant 0 : index
    %237 = vector.load %arg4[%c0_38, %c0_39] : memref<8x128xf32, #tpu.memory_space<vmem>>, vector<8x128xf32>
    tpu.vector_store %arg4[%c0_38, %c0_39], %235 {strides = array<i32>} : memref<8x128xf32, #tpu.memory_space<vmem>>, vector<8x128xf32>,
    return
  }
}

module attributes {stable_mosaic.version = 11 : i64} {
  func.func @decoder_lstm_kernel(%arg0: memref<8x1xi32, #tpu.memory_space<vmem>>, %arg1: memref<8x8x512xf32, #tpu.memory_space<vmem>>, %arg2: memref<8x128xf32, #tpu.memory_space<vmem>>, %arg3: memref<8x128xf32, #tpu.memory_space<vmem>>, %arg4: memref<128x512xf32, #tpu.memory_space<vmem>>, %arg5: memref<8x8x128xf32, #tpu.memory_space<vmem>>) attributes {dimension_semantics = [], scalar_prefetch = 0 : i64, scratch_operands = 0 : i64, tpu.core_type = #tpu.core_type<tc>} {
    %c0 = arith.constant 0 : index
    %c0_0 = arith.constant 0 : index
    %0 = vector.load %arg0[%c0, %c0_0] : memref<8x1xi32, #tpu.memory_space<vmem>>, vector<8x1xi32>
    %c0_1 = arith.constant 0 : index
    %c0_2 = arith.constant 0 : index
    %1 = vector.load %arg4[%c0_1, %c0_2] : memref<128x512xf32, #tpu.memory_space<vmem>>, vector<128x512xf32>
    %c0_3 = arith.constant 0 : index
    %c0_4 = arith.constant 0 : index
    %2 = vector.load %arg2[%c0_3, %c0_4] : memref<8x128xf32, #tpu.memory_space<vmem>>, vector<8x128xf32>
    %c0_5 = arith.constant 0 : index
    %c0_6 = arith.constant 0 : index
    %3 = vector.load %arg3[%c0_5, %c0_6] : memref<8x128xf32, #tpu.memory_space<vmem>>, vector<8x128xf32>
    %c0_i32 = arith.constant 0 : i32
    %4 = arith.index_cast %c0_i32 : i32 to index
    %c0_7 = arith.constant 0 : index
    %c0_8 = arith.constant 0 : index
    %5 = vector.load %arg1[%4, %c0_7, %c0_8] : memref<8x8x512xf32, #tpu.memory_space<vmem>>, vector<1x8x512xf32>
    %6 = vector.shape_cast %5 : vector<1x8x512xf32> to vector<8x512xf32>
    %cst = arith.constant dense<0.000000e+00> : vector<8x512xf32>
    %7 = tpu.matmul %2, %1, %cst {dimension_numbers = #tpu.dot_dimension_numbers<[1], [0], [0], [1], [0, 0, 1, 1], [], []>} : vector<8x128xf32>, vector<128x512xf32>, vector<8x512xf32> -> vector<8x512xf32>
    %8 = arith.addf %6, %7 : vector<8x512xf32>
    %9 = vector.extract_strided_slice %8 {offsets = [0, 0], sizes = [8, 384], strides = [1, 1]} : vector<8x512xf32> to vector<8x384xf32>
    %10 = arith.negf %9 : vector<8x384xf32>
    %11 = math.exp %10 : vector<8x384xf32>
    %cst_9 = arith.constant 1.000000e+00 : f32
    %12 = vector.broadcast %cst_9 : f32 to vector<8x384xf32>
    %13 = arith.addf %12, %11 : vector<8x384xf32>
    %14 = arith.divf %12, %13 : vector<8x384xf32>
    %15 = vector.extract_strided_slice %14 {offsets = [0, 0], sizes = [8, 128], strides = [1, 1]} : vector<8x384xf32> to vector<8x128xf32>
    %16 = vector.extract_strided_slice %14 {offsets = [0, 128], sizes = [8, 128], strides = [1, 1]} : vector<8x384xf32> to vector<8x128xf32>
    %17 = vector.extract_strided_slice %14 {offsets = [0, 256], sizes = [8, 128], strides = [1, 1]} : vector<8x384xf32> to vector<8x128xf32>
    %18 = vector.extract_strided_slice %8 {offsets = [0, 384], sizes = [8, 128], strides = [1, 1]} : vector<8x512xf32> to vector<8x128xf32>
    %19 = math.tanh %18 : vector<8x128xf32>
    %20 = arith.mulf %16, %3 : vector<8x128xf32>
    %21 = arith.mulf %15, %19 : vector<8x128xf32>
    %22 = arith.addf %20, %21 : vector<8x128xf32>
    %23 = math.tanh %22 : vector<8x128xf32>
    %24 = arith.mulf %17, %23 : vector<8x128xf32>
    %25 = vector.broadcast %c0_i32 : i32 to vector<8x1xi32>
    %26 = arith.cmpi slt, %25, %0 : vector<8x1xi32>
    %cst_10 = arith.constant 0.000000e+00 : f32
    %27 = vector.shape_cast %26 : vector<8x1xi1> to vector<8x1xi1>
    %28 = vector.broadcast %27 : vector<8x1xi1> to vector<8x128xi1>
    %29 = vector.broadcast %cst_10 : f32 to vector<8x128xf32>
    %30 = arith.select %28, %24, %29 : vector<8x128xi1>, vector<8x128xf32>
    %31 = arith.index_cast %c0_i32 : i32 to index
    %c0_11 = arith.constant 0 : index
    %c0_12 = arith.constant 0 : index
    %32 = vector.load %arg5[%31, %c0_11, %c0_12] : memref<8x8x128xf32, #tpu.memory_space<vmem>>, vector<1x8x128xf32>
    %33 = vector.shape_cast %32 : vector<1x8x128xf32> to vector<8x128xf32>
    %34 = vector.shape_cast %30 : vector<8x128xf32> to vector<1x8x128xf32>
    tpu.vector_store %arg5[%31, %c0_11, %c0_12], %34 {strides = array<i32>} : memref<8x8x128xf32, #tpu.memory_space<vmem>>, vector<1x8x128xf32>,
    %35 = vector.shape_cast %26 : vector<8x1xi1> to vector<8x1xi1>
    %36 = vector.broadcast %35 : vector<8x1xi1> to vector<8x128xi1>
    %37 = arith.select %36, %24, %2 : vector<8x128xi1>, vector<8x128xf32>
    %38 = vector.shape_cast %26 : vector<8x1xi1> to vector<8x1xi1>
    %39 = vector.broadcast %38 : vector<8x1xi1> to vector<8x128xi1>
    %40 = arith.select %39, %22, %3 : vector<8x128xi1>, vector<8x128xf32>
    %c1_i32 = arith.constant 1 : i32
    %41 = arith.index_cast %c1_i32 : i32 to index
    %c0_13 = arith.constant 0 : index
    %c0_14 = arith.constant 0 : index
    %42 = vector.load %arg1[%41, %c0_13, %c0_14] : memref<8x8x512xf32, #tpu.memory_space<vmem>>, vector<1x8x512xf32>
    %43 = vector.shape_cast %42 : vector<1x8x512xf32> to vector<8x512xf32>
    %cst_15 = arith.constant dense<0.000000e+00> : vector<8x512xf32>
    %44 = tpu.matmul %37, %1, %cst_15 {dimension_numbers = #tpu.dot_dimension_numbers<[1], [0], [0], [1], [0, 0, 1, 1], [], []>} : vector<8x128xf32>, vector<128x512xf32>, vector<8x512xf32> -> vector<8x512xf32>
    %45 = arith.addf %43, %44 : vector<8x512xf32>
    %46 = vector.extract_strided_slice %45 {offsets = [0, 0], sizes = [8, 384], strides = [1, 1]} : vector<8x512xf32> to vector<8x384xf32>
    %47 = arith.negf %46 : vector<8x384xf32>
    %48 = math.exp %47 : vector<8x384xf32>
    %cst_16 = arith.constant 1.000000e+00 : f32
    %49 = vector.broadcast %cst_16 : f32 to vector<8x384xf32>
    %50 = arith.addf %49, %48 : vector<8x384xf32>
    %51 = arith.divf %49, %50 : vector<8x384xf32>
    %52 = vector.extract_strided_slice %51 {offsets = [0, 0], sizes = [8, 128], strides = [1, 1]} : vector<8x384xf32> to vector<8x128xf32>
    %53 = vector.extract_strided_slice %51 {offsets = [0, 128], sizes = [8, 128], strides = [1, 1]} : vector<8x384xf32> to vector<8x128xf32>
    %54 = vector.extract_strided_slice %51 {offsets = [0, 256], sizes = [8, 128], strides = [1, 1]} : vector<8x384xf32> to vector<8x128xf32>
    %55 = vector.extract_strided_slice %45 {offsets = [0, 384], sizes = [8, 128], strides = [1, 1]} : vector<8x512xf32> to vector<8x128xf32>
    %56 = math.tanh %55 : vector<8x128xf32>
    %57 = arith.mulf %53, %40 : vector<8x128xf32>
    %58 = arith.mulf %52, %56 : vector<8x128xf32>
    %59 = arith.addf %57, %58 : vector<8x128xf32>
    %60 = math.tanh %59 : vector<8x128xf32>
    %61 = arith.mulf %54, %60 : vector<8x128xf32>
    %62 = vector.broadcast %c1_i32 : i32 to vector<8x1xi32>
    %63 = arith.cmpi slt, %62, %0 : vector<8x1xi32>
    %cst_17 = arith.constant 0.000000e+00 : f32
    %64 = vector.shape_cast %63 : vector<8x1xi1> to vector<8x1xi1>
    %65 = vector.broadcast %64 : vector<8x1xi1> to vector<8x128xi1>
    %66 = vector.broadcast %cst_17 : f32 to vector<8x128xf32>
    %67 = arith.select %65, %61, %66 : vector<8x128xi1>, vector<8x128xf32>
    %68 = arith.index_cast %c1_i32 : i32 to index
    %c0_18 = arith.constant 0 : index
    %c0_19 = arith.constant 0 : index
    %69 = vector.load %arg5[%68, %c0_18, %c0_19] : memref<8x8x128xf32, #tpu.memory_space<vmem>>, vector<1x8x128xf32>
    %70 = vector.shape_cast %69 : vector<1x8x128xf32> to vector<8x128xf32>
    %71 = vector.shape_cast %67 : vector<8x128xf32> to vector<1x8x128xf32>
    tpu.vector_store %arg5[%68, %c0_18, %c0_19], %71 {strides = array<i32>} : memref<8x8x128xf32, #tpu.memory_space<vmem>>, vector<1x8x128xf32>,
    %72 = vector.shape_cast %63 : vector<8x1xi1> to vector<8x1xi1>
    %73 = vector.broadcast %72 : vector<8x1xi1> to vector<8x128xi1>
    %74 = arith.select %73, %61, %37 : vector<8x128xi1>, vector<8x128xf32>
    %75 = vector.shape_cast %63 : vector<8x1xi1> to vector<8x1xi1>
    %76 = vector.broadcast %75 : vector<8x1xi1> to vector<8x128xi1>
    %77 = arith.select %76, %59, %40 : vector<8x128xi1>, vector<8x128xf32>
    %c2_i32 = arith.constant 2 : i32
    %78 = arith.index_cast %c2_i32 : i32 to index
    %c0_20 = arith.constant 0 : index
    %c0_21 = arith.constant 0 : index
    %79 = vector.load %arg1[%78, %c0_20, %c0_21] : memref<8x8x512xf32, #tpu.memory_space<vmem>>, vector<1x8x512xf32>
    %80 = vector.shape_cast %79 : vector<1x8x512xf32> to vector<8x512xf32>
    %cst_22 = arith.constant dense<0.000000e+00> : vector<8x512xf32>
    %81 = tpu.matmul %74, %1, %cst_22 {dimension_numbers = #tpu.dot_dimension_numbers<[1], [0], [0], [1], [0, 0, 1, 1], [], []>} : vector<8x128xf32>, vector<128x512xf32>, vector<8x512xf32> -> vector<8x512xf32>
    %82 = arith.addf %80, %81 : vector<8x512xf32>
    %83 = vector.extract_strided_slice %82 {offsets = [0, 0], sizes = [8, 384], strides = [1, 1]} : vector<8x512xf32> to vector<8x384xf32>
    %84 = arith.negf %83 : vector<8x384xf32>
    %85 = math.exp %84 : vector<8x384xf32>
    %cst_23 = arith.constant 1.000000e+00 : f32
    %86 = vector.broadcast %cst_23 : f32 to vector<8x384xf32>
    %87 = arith.addf %86, %85 : vector<8x384xf32>
    %88 = arith.divf %86, %87 : vector<8x384xf32>
    %89 = vector.extract_strided_slice %88 {offsets = [0, 0], sizes = [8, 128], strides = [1, 1]} : vector<8x384xf32> to vector<8x128xf32>
    %90 = vector.extract_strided_slice %88 {offsets = [0, 128], sizes = [8, 128], strides = [1, 1]} : vector<8x384xf32> to vector<8x128xf32>
    %91 = vector.extract_strided_slice %88 {offsets = [0, 256], sizes = [8, 128], strides = [1, 1]} : vector<8x384xf32> to vector<8x128xf32>
    %92 = vector.extract_strided_slice %82 {offsets = [0, 384], sizes = [8, 128], strides = [1, 1]} : vector<8x512xf32> to vector<8x128xf32>
    %93 = math.tanh %92 : vector<8x128xf32>
    %94 = arith.mulf %90, %77 : vector<8x128xf32>
    %95 = arith.mulf %89, %93 : vector<8x128xf32>
    %96 = arith.addf %94, %95 : vector<8x128xf32>
    %97 = math.tanh %96 : vector<8x128xf32>
    %98 = arith.mulf %91, %97 : vector<8x128xf32>
    %99 = vector.broadcast %c2_i32 : i32 to vector<8x1xi32>
    %100 = arith.cmpi slt, %99, %0 : vector<8x1xi32>
    %cst_24 = arith.constant 0.000000e+00 : f32
    %101 = vector.shape_cast %100 : vector<8x1xi1> to vector<8x1xi1>
    %102 = vector.broadcast %101 : vector<8x1xi1> to vector<8x128xi1>
    %103 = vector.broadcast %cst_24 : f32 to vector<8x128xf32>
    %104 = arith.select %102, %98, %103 : vector<8x128xi1>, vector<8x128xf32>
    %105 = arith.index_cast %c2_i32 : i32 to index
    %c0_25 = arith.constant 0 : index
    %c0_26 = arith.constant 0 : index
    %106 = vector.load %arg5[%105, %c0_25, %c0_26] : memref<8x8x128xf32, #tpu.memory_space<vmem>>, vector<1x8x128xf32>
    %107 = vector.shape_cast %106 : vector<1x8x128xf32> to vector<8x128xf32>
    %108 = vector.shape_cast %104 : vector<8x128xf32> to vector<1x8x128xf32>
    tpu.vector_store %arg5[%105, %c0_25, %c0_26], %108 {strides = array<i32>} : memref<8x8x128xf32, #tpu.memory_space<vmem>>, vector<1x8x128xf32>,
    %109 = vector.shape_cast %100 : vector<8x1xi1> to vector<8x1xi1>
    %110 = vector.broadcast %109 : vector<8x1xi1> to vector<8x128xi1>
    %111 = arith.select %110, %98, %74 : vector<8x128xi1>, vector<8x128xf32>
    %112 = vector.shape_cast %100 : vector<8x1xi1> to vector<8x1xi1>
    %113 = vector.broadcast %112 : vector<8x1xi1> to vector<8x128xi1>
    %114 = arith.select %113, %96, %77 : vector<8x128xi1>, vector<8x128xf32>
    %c3_i32 = arith.constant 3 : i32
    %115 = arith.index_cast %c3_i32 : i32 to index
    %c0_27 = arith.constant 0 : index
    %c0_28 = arith.constant 0 : index
    %116 = vector.load %arg1[%115, %c0_27, %c0_28] : memref<8x8x512xf32, #tpu.memory_space<vmem>>, vector<1x8x512xf32>
    %117 = vector.shape_cast %116 : vector<1x8x512xf32> to vector<8x512xf32>
    %cst_29 = arith.constant dense<0.000000e+00> : vector<8x512xf32>
    %118 = tpu.matmul %111, %1, %cst_29 {dimension_numbers = #tpu.dot_dimension_numbers<[1], [0], [0], [1], [0, 0, 1, 1], [], []>} : vector<8x128xf32>, vector<128x512xf32>, vector<8x512xf32> -> vector<8x512xf32>
    %119 = arith.addf %117, %118 : vector<8x512xf32>
    %120 = vector.extract_strided_slice %119 {offsets = [0, 0], sizes = [8, 384], strides = [1, 1]} : vector<8x512xf32> to vector<8x384xf32>
    %121 = arith.negf %120 : vector<8x384xf32>
    %122 = math.exp %121 : vector<8x384xf32>
    %cst_30 = arith.constant 1.000000e+00 : f32
    %123 = vector.broadcast %cst_30 : f32 to vector<8x384xf32>
    %124 = arith.addf %123, %122 : vector<8x384xf32>
    %125 = arith.divf %123, %124 : vector<8x384xf32>
    %126 = vector.extract_strided_slice %125 {offsets = [0, 0], sizes = [8, 128], strides = [1, 1]} : vector<8x384xf32> to vector<8x128xf32>
    %127 = vector.extract_strided_slice %125 {offsets = [0, 128], sizes = [8, 128], strides = [1, 1]} : vector<8x384xf32> to vector<8x128xf32>
    %128 = vector.extract_strided_slice %125 {offsets = [0, 256], sizes = [8, 128], strides = [1, 1]} : vector<8x384xf32> to vector<8x128xf32>
    %129 = vector.extract_strided_slice %119 {offsets = [0, 384], sizes = [8, 128], strides = [1, 1]} : vector<8x512xf32> to vector<8x128xf32>
    %130 = math.tanh %129 : vector<8x128xf32>
    %131 = arith.mulf %127, %114 : vector<8x128xf32>
    %132 = arith.mulf %126, %130 : vector<8x128xf32>
    %133 = arith.addf %131, %132 : vector<8x128xf32>
    %134 = math.tanh %133 : vector<8x128xf32>
    %135 = arith.mulf %128, %134 : vector<8x128xf32>
    %136 = vector.broadcast %c3_i32 : i32 to vector<8x1xi32>
    %137 = arith.cmpi slt, %136, %0 : vector<8x1xi32>
    %cst_31 = arith.constant 0.000000e+00 : f32
    %138 = vector.shape_cast %137 : vector<8x1xi1> to vector<8x1xi1>
    %139 = vector.broadcast %138 : vector<8x1xi1> to vector<8x128xi1>
    %140 = vector.broadcast %cst_31 : f32 to vector<8x128xf32>
    %141 = arith.select %139, %135, %140 : vector<8x128xi1>, vector<8x128xf32>
    %142 = arith.index_cast %c3_i32 : i32 to index
    %c0_32 = arith.constant 0 : index
    %c0_33 = arith.constant 0 : index
    %143 = vector.load %arg5[%142, %c0_32, %c0_33] : memref<8x8x128xf32, #tpu.memory_space<vmem>>, vector<1x8x128xf32>
    %144 = vector.shape_cast %143 : vector<1x8x128xf32> to vector<8x128xf32>
    %145 = vector.shape_cast %141 : vector<8x128xf32> to vector<1x8x128xf32>
    tpu.vector_store %arg5[%142, %c0_32, %c0_33], %145 {strides = array<i32>} : memref<8x8x128xf32, #tpu.memory_space<vmem>>, vector<1x8x128xf32>,
    %146 = vector.shape_cast %137 : vector<8x1xi1> to vector<8x1xi1>
    %147 = vector.broadcast %146 : vector<8x1xi1> to vector<8x128xi1>
    %148 = arith.select %147, %135, %111 : vector<8x128xi1>, vector<8x128xf32>
    %149 = vector.shape_cast %137 : vector<8x1xi1> to vector<8x1xi1>
    %150 = vector.broadcast %149 : vector<8x1xi1> to vector<8x128xi1>
    %151 = arith.select %150, %133, %114 : vector<8x128xi1>, vector<8x128xf32>
    %c4_i32 = arith.constant 4 : i32
    %152 = arith.index_cast %c4_i32 : i32 to index
    %c0_34 = arith.constant 0 : index
    %c0_35 = arith.constant 0 : index
    %153 = vector.load %arg1[%152, %c0_34, %c0_35] : memref<8x8x512xf32, #tpu.memory_space<vmem>>, vector<1x8x512xf32>
    %154 = vector.shape_cast %153 : vector<1x8x512xf32> to vector<8x512xf32>
    %cst_36 = arith.constant dense<0.000000e+00> : vector<8x512xf32>
    %155 = tpu.matmul %148, %1, %cst_36 {dimension_numbers = #tpu.dot_dimension_numbers<[1], [0], [0], [1], [0, 0, 1, 1], [], []>} : vector<8x128xf32>, vector<128x512xf32>, vector<8x512xf32> -> vector<8x512xf32>
    %156 = arith.addf %154, %155 : vector<8x512xf32>
    %157 = vector.extract_strided_slice %156 {offsets = [0, 0], sizes = [8, 384], strides = [1, 1]} : vector<8x512xf32> to vector<8x384xf32>
    %158 = arith.negf %157 : vector<8x384xf32>
    %159 = math.exp %158 : vector<8x384xf32>
    %cst_37 = arith.constant 1.000000e+00 : f32
    %160 = vector.broadcast %cst_37 : f32 to vector<8x384xf32>
    %161 = arith.addf %160, %159 : vector<8x384xf32>
    %162 = arith.divf %160, %161 : vector<8x384xf32>
    %163 = vector.extract_strided_slice %162 {offsets = [0, 0], sizes = [8, 128], strides = [1, 1]} : vector<8x384xf32> to vector<8x128xf32>
    %164 = vector.extract_strided_slice %162 {offsets = [0, 128], sizes = [8, 128], strides = [1, 1]} : vector<8x384xf32> to vector<8x128xf32>
    %165 = vector.extract_strided_slice %162 {offsets = [0, 256], sizes = [8, 128], strides = [1, 1]} : vector<8x384xf32> to vector<8x128xf32>
    %166 = vector.extract_strided_slice %156 {offsets = [0, 384], sizes = [8, 128], strides = [1, 1]} : vector<8x512xf32> to vector<8x128xf32>
    %167 = math.tanh %166 : vector<8x128xf32>
    %168 = arith.mulf %164, %151 : vector<8x128xf32>
    %169 = arith.mulf %163, %167 : vector<8x128xf32>
    %170 = arith.addf %168, %169 : vector<8x128xf32>
    %171 = math.tanh %170 : vector<8x128xf32>
    %172 = arith.mulf %165, %171 : vector<8x128xf32>
    %173 = vector.broadcast %c4_i32 : i32 to vector<8x1xi32>
    %174 = arith.cmpi slt, %173, %0 : vector<8x1xi32>
    %cst_38 = arith.constant 0.000000e+00 : f32
    %175 = vector.shape_cast %174 : vector<8x1xi1> to vector<8x1xi1>
    %176 = vector.broadcast %175 : vector<8x1xi1> to vector<8x128xi1>
    %177 = vector.broadcast %cst_38 : f32 to vector<8x128xf32>
    %178 = arith.select %176, %172, %177 : vector<8x128xi1>, vector<8x128xf32>
    %179 = arith.index_cast %c4_i32 : i32 to index
    %c0_39 = arith.constant 0 : index
    %c0_40 = arith.constant 0 : index
    %180 = vector.load %arg5[%179, %c0_39, %c0_40] : memref<8x8x128xf32, #tpu.memory_space<vmem>>, vector<1x8x128xf32>
    %181 = vector.shape_cast %180 : vector<1x8x128xf32> to vector<8x128xf32>
    %182 = vector.shape_cast %178 : vector<8x128xf32> to vector<1x8x128xf32>
    tpu.vector_store %arg5[%179, %c0_39, %c0_40], %182 {strides = array<i32>} : memref<8x8x128xf32, #tpu.memory_space<vmem>>, vector<1x8x128xf32>,
    %183 = vector.shape_cast %174 : vector<8x1xi1> to vector<8x1xi1>
    %184 = vector.broadcast %183 : vector<8x1xi1> to vector<8x128xi1>
    %185 = arith.select %184, %172, %148 : vector<8x128xi1>, vector<8x128xf32>
    %186 = vector.shape_cast %174 : vector<8x1xi1> to vector<8x1xi1>
    %187 = vector.broadcast %186 : vector<8x1xi1> to vector<8x128xi1>
    %188 = arith.select %187, %170, %151 : vector<8x128xi1>, vector<8x128xf32>
    %c5_i32 = arith.constant 5 : i32
    %189 = arith.index_cast %c5_i32 : i32 to index
    %c0_41 = arith.constant 0 : index
    %c0_42 = arith.constant 0 : index
    %190 = vector.load %arg1[%189, %c0_41, %c0_42] : memref<8x8x512xf32, #tpu.memory_space<vmem>>, vector<1x8x512xf32>
    %191 = vector.shape_cast %190 : vector<1x8x512xf32> to vector<8x512xf32>
    %cst_43 = arith.constant dense<0.000000e+00> : vector<8x512xf32>
    %192 = tpu.matmul %185, %1, %cst_43 {dimension_numbers = #tpu.dot_dimension_numbers<[1], [0], [0], [1], [0, 0, 1, 1], [], []>} : vector<8x128xf32>, vector<128x512xf32>, vector<8x512xf32> -> vector<8x512xf32>
    %193 = arith.addf %191, %192 : vector<8x512xf32>
    %194 = vector.extract_strided_slice %193 {offsets = [0, 0], sizes = [8, 384], strides = [1, 1]} : vector<8x512xf32> to vector<8x384xf32>
    %195 = arith.negf %194 : vector<8x384xf32>
    %196 = math.exp %195 : vector<8x384xf32>
    %cst_44 = arith.constant 1.000000e+00 : f32
    %197 = vector.broadcast %cst_44 : f32 to vector<8x384xf32>
    %198 = arith.addf %197, %196 : vector<8x384xf32>
    %199 = arith.divf %197, %198 : vector<8x384xf32>
    %200 = vector.extract_strided_slice %199 {offsets = [0, 0], sizes = [8, 128], strides = [1, 1]} : vector<8x384xf32> to vector<8x128xf32>
    %201 = vector.extract_strided_slice %199 {offsets = [0, 128], sizes = [8, 128], strides = [1, 1]} : vector<8x384xf32> to vector<8x128xf32>
    %202 = vector.extract_strided_slice %199 {offsets = [0, 256], sizes = [8, 128], strides = [1, 1]} : vector<8x384xf32> to vector<8x128xf32>
    %203 = vector.extract_strided_slice %193 {offsets = [0, 384], sizes = [8, 128], strides = [1, 1]} : vector<8x512xf32> to vector<8x128xf32>
    %204 = math.tanh %203 : vector<8x128xf32>
    %205 = arith.mulf %201, %188 : vector<8x128xf32>
    %206 = arith.mulf %200, %204 : vector<8x128xf32>
    %207 = arith.addf %205, %206 : vector<8x128xf32>
    %208 = math.tanh %207 : vector<8x128xf32>
    %209 = arith.mulf %202, %208 : vector<8x128xf32>
    %210 = vector.broadcast %c5_i32 : i32 to vector<8x1xi32>
    %211 = arith.cmpi slt, %210, %0 : vector<8x1xi32>
    %cst_45 = arith.constant 0.000000e+00 : f32
    %212 = vector.shape_cast %211 : vector<8x1xi1> to vector<8x1xi1>
    %213 = vector.broadcast %212 : vector<8x1xi1> to vector<8x128xi1>
    %214 = vector.broadcast %cst_45 : f32 to vector<8x128xf32>
    %215 = arith.select %213, %209, %214 : vector<8x128xi1>, vector<8x128xf32>
    %216 = arith.index_cast %c5_i32 : i32 to index
    %c0_46 = arith.constant 0 : index
    %c0_47 = arith.constant 0 : index
    %217 = vector.load %arg5[%216, %c0_46, %c0_47] : memref<8x8x128xf32, #tpu.memory_space<vmem>>, vector<1x8x128xf32>
    %218 = vector.shape_cast %217 : vector<1x8x128xf32> to vector<8x128xf32>
    %219 = vector.shape_cast %215 : vector<8x128xf32> to vector<1x8x128xf32>
    tpu.vector_store %arg5[%216, %c0_46, %c0_47], %219 {strides = array<i32>} : memref<8x8x128xf32, #tpu.memory_space<vmem>>, vector<1x8x128xf32>,
    %220 = vector.shape_cast %211 : vector<8x1xi1> to vector<8x1xi1>
    %221 = vector.broadcast %220 : vector<8x1xi1> to vector<8x128xi1>
    %222 = arith.select %221, %209, %185 : vector<8x128xi1>, vector<8x128xf32>
    %223 = vector.shape_cast %211 : vector<8x1xi1> to vector<8x1xi1>
    %224 = vector.broadcast %223 : vector<8x1xi1> to vector<8x128xi1>
    %225 = arith.select %224, %207, %188 : vector<8x128xi1>, vector<8x128xf32>
    %c6_i32 = arith.constant 6 : i32
    %226 = arith.index_cast %c6_i32 : i32 to index
    %c0_48 = arith.constant 0 : index
    %c0_49 = arith.constant 0 : index
    %227 = vector.load %arg1[%226, %c0_48, %c0_49] : memref<8x8x512xf32, #tpu.memory_space<vmem>>, vector<1x8x512xf32>
    %228 = vector.shape_cast %227 : vector<1x8x512xf32> to vector<8x512xf32>
    %cst_50 = arith.constant dense<0.000000e+00> : vector<8x512xf32>
    %229 = tpu.matmul %222, %1, %cst_50 {dimension_numbers = #tpu.dot_dimension_numbers<[1], [0], [0], [1], [0, 0, 1, 1], [], []>} : vector<8x128xf32>, vector<128x512xf32>, vector<8x512xf32> -> vector<8x512xf32>
    %230 = arith.addf %228, %229 : vector<8x512xf32>
    %231 = vector.extract_strided_slice %230 {offsets = [0, 0], sizes = [8, 384], strides = [1, 1]} : vector<8x512xf32> to vector<8x384xf32>
    %232 = arith.negf %231 : vector<8x384xf32>
    %233 = math.exp %232 : vector<8x384xf32>
    %cst_51 = arith.constant 1.000000e+00 : f32
    %234 = vector.broadcast %cst_51 : f32 to vector<8x384xf32>
    %235 = arith.addf %234, %233 : vector<8x384xf32>
    %236 = arith.divf %234, %235 : vector<8x384xf32>
    %237 = vector.extract_strided_slice %236 {offsets = [0, 0], sizes = [8, 128], strides = [1, 1]} : vector<8x384xf32> to vector<8x128xf32>
    %238 = vector.extract_strided_slice %236 {offsets = [0, 128], sizes = [8, 128], strides = [1, 1]} : vector<8x384xf32> to vector<8x128xf32>
    %239 = vector.extract_strided_slice %236 {offsets = [0, 256], sizes = [8, 128], strides = [1, 1]} : vector<8x384xf32> to vector<8x128xf32>
    %240 = vector.extract_strided_slice %230 {offsets = [0, 384], sizes = [8, 128], strides = [1, 1]} : vector<8x512xf32> to vector<8x128xf32>
    %241 = math.tanh %240 : vector<8x128xf32>
    %242 = arith.mulf %238, %225 : vector<8x128xf32>
    %243 = arith.mulf %237, %241 : vector<8x128xf32>
    %244 = arith.addf %242, %243 : vector<8x128xf32>
    %245 = math.tanh %244 : vector<8x128xf32>
    %246 = arith.mulf %239, %245 : vector<8x128xf32>
    %247 = vector.broadcast %c6_i32 : i32 to vector<8x1xi32>
    %248 = arith.cmpi slt, %247, %0 : vector<8x1xi32>
    %cst_52 = arith.constant 0.000000e+00 : f32
    %249 = vector.shape_cast %248 : vector<8x1xi1> to vector<8x1xi1>
    %250 = vector.broadcast %249 : vector<8x1xi1> to vector<8x128xi1>
    %251 = vector.broadcast %cst_52 : f32 to vector<8x128xf32>
    %252 = arith.select %250, %246, %251 : vector<8x128xi1>, vector<8x128xf32>
    %253 = arith.index_cast %c6_i32 : i32 to index
    %c0_53 = arith.constant 0 : index
    %c0_54 = arith.constant 0 : index
    %254 = vector.load %arg5[%253, %c0_53, %c0_54] : memref<8x8x128xf32, #tpu.memory_space<vmem>>, vector<1x8x128xf32>
    %255 = vector.shape_cast %254 : vector<1x8x128xf32> to vector<8x128xf32>
    %256 = vector.shape_cast %252 : vector<8x128xf32> to vector<1x8x128xf32>
    tpu.vector_store %arg5[%253, %c0_53, %c0_54], %256 {strides = array<i32>} : memref<8x8x128xf32, #tpu.memory_space<vmem>>, vector<1x8x128xf32>,
    %257 = vector.shape_cast %248 : vector<8x1xi1> to vector<8x1xi1>
    %258 = vector.broadcast %257 : vector<8x1xi1> to vector<8x128xi1>
    %259 = arith.select %258, %246, %222 : vector<8x128xi1>, vector<8x128xf32>
    %260 = vector.shape_cast %248 : vector<8x1xi1> to vector<8x1xi1>
    %261 = vector.broadcast %260 : vector<8x1xi1> to vector<8x128xi1>
    %262 = arith.select %261, %244, %225 : vector<8x128xi1>, vector<8x128xf32>
    %c7_i32 = arith.constant 7 : i32
    %263 = arith.index_cast %c7_i32 : i32 to index
    %c0_55 = arith.constant 0 : index
    %c0_56 = arith.constant 0 : index
    %264 = vector.load %arg1[%263, %c0_55, %c0_56] : memref<8x8x512xf32, #tpu.memory_space<vmem>>, vector<1x8x512xf32>
    %265 = vector.shape_cast %264 : vector<1x8x512xf32> to vector<8x512xf32>
    %cst_57 = arith.constant dense<0.000000e+00> : vector<8x512xf32>
    %266 = tpu.matmul %259, %1, %cst_57 {dimension_numbers = #tpu.dot_dimension_numbers<[1], [0], [0], [1], [0, 0, 1, 1], [], []>} : vector<8x128xf32>, vector<128x512xf32>, vector<8x512xf32> -> vector<8x512xf32>
    %267 = arith.addf %265, %266 : vector<8x512xf32>
    %268 = vector.extract_strided_slice %267 {offsets = [0, 0], sizes = [8, 384], strides = [1, 1]} : vector<8x512xf32> to vector<8x384xf32>
    %269 = arith.negf %268 : vector<8x384xf32>
    %270 = math.exp %269 : vector<8x384xf32>
    %cst_58 = arith.constant 1.000000e+00 : f32
    %271 = vector.broadcast %cst_58 : f32 to vector<8x384xf32>
    %272 = arith.addf %271, %270 : vector<8x384xf32>
    %273 = arith.divf %271, %272 : vector<8x384xf32>
    %274 = vector.extract_strided_slice %273 {offsets = [0, 0], sizes = [8, 128], strides = [1, 1]} : vector<8x384xf32> to vector<8x128xf32>
    %275 = vector.extract_strided_slice %273 {offsets = [0, 128], sizes = [8, 128], strides = [1, 1]} : vector<8x384xf32> to vector<8x128xf32>
    %276 = vector.extract_strided_slice %273 {offsets = [0, 256], sizes = [8, 128], strides = [1, 1]} : vector<8x384xf32> to vector<8x128xf32>
    %277 = vector.extract_strided_slice %267 {offsets = [0, 384], sizes = [8, 128], strides = [1, 1]} : vector<8x512xf32> to vector<8x128xf32>
    %278 = math.tanh %277 : vector<8x128xf32>
    %279 = arith.mulf %275, %262 : vector<8x128xf32>
    %280 = arith.mulf %274, %278 : vector<8x128xf32>
    %281 = arith.addf %279, %280 : vector<8x128xf32>
    %282 = math.tanh %281 : vector<8x128xf32>
    %283 = arith.mulf %276, %282 : vector<8x128xf32>
    %284 = vector.broadcast %c7_i32 : i32 to vector<8x1xi32>
    %285 = arith.cmpi slt, %284, %0 : vector<8x1xi32>
    %cst_59 = arith.constant 0.000000e+00 : f32
    %286 = vector.shape_cast %285 : vector<8x1xi1> to vector<8x1xi1>
    %287 = vector.broadcast %286 : vector<8x1xi1> to vector<8x128xi1>
    %288 = vector.broadcast %cst_59 : f32 to vector<8x128xf32>
    %289 = arith.select %287, %283, %288 : vector<8x128xi1>, vector<8x128xf32>
    %290 = arith.index_cast %c7_i32 : i32 to index
    %c0_60 = arith.constant 0 : index
    %c0_61 = arith.constant 0 : index
    %291 = vector.load %arg5[%290, %c0_60, %c0_61] : memref<8x8x128xf32, #tpu.memory_space<vmem>>, vector<1x8x128xf32>
    %292 = vector.shape_cast %291 : vector<1x8x128xf32> to vector<8x128xf32>
    %293 = vector.shape_cast %289 : vector<8x128xf32> to vector<1x8x128xf32>
    tpu.vector_store %arg5[%290, %c0_60, %c0_61], %293 {strides = array<i32>} : memref<8x8x128xf32, #tpu.memory_space<vmem>>, vector<1x8x128xf32>,
    %294 = vector.shape_cast %285 : vector<8x1xi1> to vector<8x1xi1>
    %295 = vector.broadcast %294 : vector<8x1xi1> to vector<8x128xi1>
    %296 = arith.select %295, %283, %259 : vector<8x128xi1>, vector<8x128xf32>
    %297 = vector.shape_cast %285 : vector<8x1xi1> to vector<8x1xi1>
    %298 = vector.broadcast %297 : vector<8x1xi1> to vector<8x128xi1>
    %299 = arith.select %298, %281, %262 : vector<8x128xi1>, vector<8x128xf32>
    %c8_i32 = arith.constant 8 : i32
    return
  }
}

module attributes {stable_mosaic.version = 11 : i64} {
  func.func @dense_kernel(%arg0: i32, %arg1: i32, %arg2: memref<64x128xf32, #tpu.memory_space<vmem>>, %arg3: memref<128x512xf32, #tpu.memory_space<vmem>>, %arg4: memref<1x512xf32, #tpu.memory_space<vmem>>, %arg5: memref<64x512xf32, #tpu.memory_space<vmem>>) attributes {dimension_semantics = [#tpu.dimension_semantics<parallel>, #tpu.dimension_semantics<parallel>], iteration_bounds = array<i64: 1, 1>, scalar_prefetch = 0 : i64, scratch_operands = 0 : i64, tpu.core_type = #tpu.core_type<tc>, window_params = [{transform_indices = @transform_0, window_bounds = array<i64: 64, 128>}, {transform_indices = @transform_1, window_bounds = array<i64: 128, 512>}, {transform_indices = @transform_2, window_bounds = array<i64: 1, 512>}, {transform_indices = @transform_3, window_bounds = array<i64: 64, 512>}]} {
    %c0 = arith.constant 0 : index
    %c0_0 = arith.constant 0 : index
    %0 = vector.load %arg2[%c0, %c0_0] : memref<64x128xf32, #tpu.memory_space<vmem>>, vector<64x128xf32>
    %c0_1 = arith.constant 0 : index
    %c0_2 = arith.constant 0 : index
    %1 = vector.load %arg3[%c0_1, %c0_2] : memref<128x512xf32, #tpu.memory_space<vmem>>, vector<128x512xf32>
    %cst = arith.constant dense<0.000000e+00> : vector<64x512xf32>
    %2 = tpu.matmul %0, %1, %cst {dimension_numbers = #tpu.dot_dimension_numbers<[1], [0], [0], [1], [0, 0, 1, 1], [], []>} : vector<64x128xf32>, vector<128x512xf32>, vector<64x512xf32> -> vector<64x512xf32>
    %c0_3 = arith.constant 0 : index
    %c0_4 = arith.constant 0 : index
    %3 = vector.load %arg4[%c0_3, %c0_4] : memref<1x512xf32, #tpu.memory_space<vmem>>, vector<1x512xf32>
    %4 = vector.broadcast %3 : vector<1x512xf32> to vector<64x512xf32>
    %5 = arith.addf %2, %4 : vector<64x512xf32>
    %c0_5 = arith.constant 0 : index
    %c0_6 = arith.constant 0 : index
    %6 = vector.load %arg5[%c0_5, %c0_6] : memref<64x512xf32, #tpu.memory_space<vmem>>, vector<64x512xf32>
    tpu.vector_store %arg5[%c0_5, %c0_6], %5 {strides = array<i32>} : memref<64x512xf32, #tpu.memory_space<vmem>>, vector<64x512xf32>,
    return
  }
  func.func @transform_0(%arg0: i32, %arg1: i32) -> (i32, i32) {
    %c0_i32 = arith.constant 0 : i32
    %c0_i32_0 = arith.constant 0 : i32
    return %arg0, %c0_i32 : i32, i32
  }
  func.func @transform_1(%arg0: i32, %arg1: i32) -> (i32, i32) {
    %c0_i32 = arith.constant 0 : i32
    %c0_i32_0 = arith.constant 0 : i32
    return %c0_i32, %arg1 : i32, i32
  }
  func.func @transform_2(%arg0: i32, %arg1: i32) -> (i32, i32) {
    %c0_i32 = arith.constant 0 : i32
    %c0_i32_0 = arith.constant 0 : i32
    return %c0_i32, %arg1 : i32, i32
  }
  func.func @transform_3(%arg0: i32, %arg1: i32) -> (i32, i32) {
    %c0_i32 = arith.constant 0 : i32
    return %arg0, %arg1 : i32, i32
  }
}

module attributes {stable_mosaic.version = 11 : i64} {
  func.func @dense_kernel(%arg0: i32, %arg1: i32, %arg2: memref<64x512xf32, #tpu.memory_space<vmem>>, %arg3: memref<512x128xf32, #tpu.memory_space<vmem>>, %arg4: memref<1x128xf32, #tpu.memory_space<vmem>>, %arg5: memref<64x128xf32, #tpu.memory_space<vmem>>) attributes {dimension_semantics = [#tpu.dimension_semantics<parallel>, #tpu.dimension_semantics<parallel>], iteration_bounds = array<i64: 1, 1>, scalar_prefetch = 0 : i64, scratch_operands = 0 : i64, tpu.core_type = #tpu.core_type<tc>, window_params = [{transform_indices = @transform_0, window_bounds = array<i64: 64, 512>}, {transform_indices = @transform_1, window_bounds = array<i64: 512, 128>}, {transform_indices = @transform_2, window_bounds = array<i64: 1, 128>}, {transform_indices = @transform_3, window_bounds = array<i64: 64, 128>}]} {
    %c0 = arith.constant 0 : index
    %c0_0 = arith.constant 0 : index
    %0 = vector.load %arg2[%c0, %c0_0] : memref<64x512xf32, #tpu.memory_space<vmem>>, vector<64x512xf32>
    %c0_1 = arith.constant 0 : index
    %c0_2 = arith.constant 0 : index
    %1 = vector.load %arg3[%c0_1, %c0_2] : memref<512x128xf32, #tpu.memory_space<vmem>>, vector<512x128xf32>
    %cst = arith.constant dense<0.000000e+00> : vector<64x128xf32>
    %2 = tpu.matmul %0, %1, %cst {dimension_numbers = #tpu.dot_dimension_numbers<[1], [0], [0], [1], [0, 0, 1, 1], [], []>} : vector<64x512xf32>, vector<512x128xf32>, vector<64x128xf32> -> vector<64x128xf32>
    %c0_3 = arith.constant 0 : index
    %c0_4 = arith.constant 0 : index
    %3 = vector.load %arg4[%c0_3, %c0_4] : memref<1x128xf32, #tpu.memory_space<vmem>>, vector<1x128xf32>
    %4 = vector.broadcast %3 : vector<1x128xf32> to vector<64x128xf32>
    %5 = arith.addf %2, %4 : vector<64x128xf32>
    %c0_5 = arith.constant 0 : index
    %c0_6 = arith.constant 0 : index
    %6 = vector.load %arg5[%c0_5, %c0_6] : memref<64x128xf32, #tpu.memory_space<vmem>>, vector<64x128xf32>
    tpu.vector_store %arg5[%c0_5, %c0_6], %5 {strides = array<i32>} : memref<64x128xf32, #tpu.memory_space<vmem>>, vector<64x128xf32>,
    return
  }
  func.func @transform_0(%arg0: i32, %arg1: i32) -> (i32, i32) {
    %c0_i32 = arith.constant 0 : i32
    %c0_i32_0 = arith.constant 0 : i32
    return %arg0, %c0_i32 : i32, i32
  }
  func.func @transform_1(%arg0: i32, %arg1: i32) -> (i32, i32) {
    %c0_i32 = arith.constant 0 : i32
    %c0_i32_0 = arith.constant 0 : i32
    return %c0_i32, %arg1 : i32, i32
  }
  func.func @transform_2(%arg0: i32, %arg1: i32) -> (i32, i32) {
    %c0_i32 = arith.constant 0 : i32
    %c0_i32_0 = arith.constant 0 : i32
    return %c0_i32, %arg1 : i32, i32
  }
  func.func @transform_3(%arg0: i32, %arg1: i32) -> (i32, i32) {
    %c0_i32 = arith.constant 0 : i32
    return %arg0, %arg1 : i32, i32
  }
}

</mosaic_0001>

<llo_original>
// kernel: seq2seq_forward.6
$region0: #{seq2seq_forward.6}
  #allocation0 [shape = 'u32[]', space=smem, size = 0x4, offset = 0x4, fixed_abs, tag = 'smem constant byte address 0x4 - core index']
  #allocation1 [shape = 'u32[144,128]{1,0:T(1,128)}', space=vmem, size = 0x12000, scoped, tag = 'internal scratch']
  %s0 = inlined_call_operand.vmem [shape: f32[64,16], index: 0, kind: input, shape index: {}]
  %s1 = inlined_call_operand.vmem [shape: f32[16,512], index: 1, kind: input, shape index: {}]
  %s2 = inlined_call_operand.vmem [shape: f32[1,512], index: 2, kind: input, shape index: {}]
  %s3 = inlined_call_operand.vmem [shape: f32[64,512], index: 3, kind: output, shape index: {}]
  %s4 = sld [smem:[#allocation0]]
  $region22: #{seq2seq_forward.6} parent=0
    _
  %s6 = ssub.s32 1, %s4
  %s7 = scalar_select 0, %s6, %s4
  // Predicated region
  $region2: #{seq2seq_forward.6} parent=0 // pred_check
    _
  $region3: #{seq2seq_forward.6} parent=0 // pred_check_branch
    %9 = sbr.rel (0) target = $region5
  $region4: #{seq2seq_forward.6} parent=0 // pred_region
    _
  $region5: #{seq2seq_forward.6} parent=0 // pred_fallthru
    _
  // Predicated region
  $region6: #{seq2seq_forward.6} parent=0 // pred_check
    _
  $region7: #{seq2seq_forward.6} parent=0 // pred_check_branch
    %11 = sbr.rel (0) target = $region9
  $region8: #{seq2seq_forward.6} parent=0 // pred_region
    _
  $region9: #{seq2seq_forward.6} parent=0 // pred_fallthru
    _
  // Predicated region
  $region10: #{seq2seq_forward.6} parent=0 // pred_check
    _
  $region11: #{seq2seq_forward.6} parent=0 // pred_check_branch
    %13 = sbr.rel (0) target = $region13
  $region12: #{seq2seq_forward.6} parent=0 // pred_region
    _
  $region13: #{seq2seq_forward.6} parent=0 // pred_fallthru
    _
  %v14 = vld [vmem:[%s0] sm:$0xff]
  %v15 = vld [vmem:[%s0 + $0x8] sm:$0xff]
  %v16 = vld [vmem:[%s0 + $0x10] sm:$0xff]
  %v17 = vld [vmem:[%s0 + $0x18] sm:$0xff]
  %v18 = vld [vmem:[%s0 + $0x20] sm:$0xff]
  %v19 = vld [vmem:[%s0 + $0x28] sm:$0xff]
  %v20 = vld [vmem:[%s0 + $0x30] sm:$0xff]
  %v21 = vld [vmem:[%s0 + $0x38] sm:$0xff]
  %v22 = vld [vmem:[%s1] sm:$0xff]
  %v23 = vld [vmem:[%s1 + $0x8] sm:$0xff]
  %v24 = vld [vmem:[%s1 + $0x10] sm:$0xff]
  %v25 = vld [vmem:[%s1 + $0x18] sm:$0xff]
  %v26 = vld [vmem:[%s1 + $0x20] sm:$0xff]
  %v27 = vld [vmem:[%s1 + $0x28] sm:$0xff]
  %v28 = vld [vmem:[%s1 + $0x30] sm:$0xff]
  %v29 = vld [vmem:[%s1 + $0x38] sm:$0xff]
  %v30 = vld [vmem:[%s2] sm:$0xf]
  %v32 = vlaneseq
  %v33 = vshrl.u32 %v32, 7
  %v34 = vsub.s32 0, %v33
  %v35 = vrot.slane %v30, %v34
  %v36 = vlaneseq
  %v37 = vshrl.u32 %v36, 7
  %v38 = vsub.s32 1, %v37
  %v39 = vrot.slane %v30, %v38
  %v40 = vlaneseq
  %v41 = vshrl.u32 %v40, 7
  %v42 = vsub.s32 2, %v41
  %v43 = vrot.slane %v30, %v42
  %v44 = vlaneseq
  %v45 = vshrl.u32 %v44, 7
  %v46 = vsub.s32 3, %v45
  %v47 = vrot.slane %v30, %v46
  %vm52 = vcmask 130048
  %v54 = vsel %vm52, %v14, 0
  %v57 = vsel %vm52, %v15, 0
  %v60 = vsel %vm52, %v16, 0
  %v63 = vsel %vm52, %v17, 0
  %v66 = vsel %vm52, %v18, 0
  %v69 = vsel %vm52, %v19, 0
  %v72 = vsel %vm52, %v20, 0
  %v75 = vsel %vm52, %v21, 0
  %77 = vmatprep.subr.mxu0 0.0
  %78 = vmatpush1.msra.mxu0 0.0
  %79 = vmatprep.subr.mxu0 0.0
  %80 = vmatpush1.msra.mxu0 0.0
  %81 = vmatprep.subr.mxu0 0.0
  %82 = vmatpush1.msra.mxu0 0.0
  %83 = vmatprep.subr.mxu0 0.0
  %84 = vmatpush1.msra.mxu0 0.0
  %85 = vmatprep.subr.mxu0 0.0
  %86 = vmatpush1.msra.mxu0 0.0
  %87 = vmatprep.subr.mxu0 0.0
  %88 = vmatpush1.msra.mxu0 0.0
  %89 = vmatprep.subr.mxu0 0.0
  %90 = vmatpush1.msra.mxu0 0.0
  %91 = vmatprep.subr.mxu0 0.0
  %92 = vmatpush1.msra.mxu0 0.0
  %93 = vmatprep.subr.mxu0 0.0
  %94 = vmatpush1.msra.mxu0 0.0
  %95 = vmatprep.subr.mxu0 0.0
  %96 = vmatpush1.msra.mxu0 0.0
  %97 = vmatprep.subr.mxu0 0.0
  %98 = vmatpush1.msra.mxu0 0.0
  %99 = vmatprep.subr.mxu0 0.0
  %100 = vmatpush1.msra.mxu0 0.0
  %101 = vmatprep.subr.mxu0 0.0
  %102 = vmatpush1.msra.mxu0 0.0
  %103 = vmatprep.subr.mxu0 0.0
  %104 = vmatpush1.msra.mxu0 0.0
  %105 = vmatprep.subr.mxu0 %v27
  %106 = vmatpush1.msra.mxu0 %v26
  %107 = vmatprep.subr.mxu0 %v23
  %108 = vmatpush1.msra.mxu0 %v22
  %109 = vmatprep.subr.mxu0 0.0
  %110 = vmatpush2.msra.mxu0 0.0
  %111 = vmatprep.subr.mxu0 0.0
  %112 = vmatpush2.msra.mxu0 0.0
  %113 = vmatprep.subr.mxu0 0.0
  %114 = vmatpush2.msra.mxu0 0.0
  %115 = vmatprep.subr.mxu0 0.0
  %116 = vmatpush2.msra.mxu0 0.0
  %117 = vmatprep.subr.mxu0 0.0
  %118 = vmatpush2.msra.mxu0 0.0
  %119 = vmatprep.subr.mxu0 0.0
  %120 = vmatpush2.msra.mxu0 0.0
  %121 = vmatprep.subr.mxu0 0.0
  %122 = vmatpush2.msra.mxu0 0.0
  %123 = vmatprep.subr.mxu0 0.0
  %124 = vmatpush2.msra.mxu0 0.0
  %125 = vmatprep.subr.mxu0 0.0
  %126 = vmatpush2.msra.mxu0 0.0
  %127 = vmatprep.subr.mxu0 0.0
  %128 = vmatpush2.msra.mxu0 0.0
  %129 = vmatprep.subr.mxu0 0.0
  %130 = vmatpush2.msra.mxu0 0.0
  %131 = vmatprep.subr.mxu0 0.0
  %132 = vmatpush2.msra.mxu0 0.0
  %133 = vmatprep.subr.mxu0 0.0
  %134 = vmatpush2.msra.mxu0 0.0
  %135 = vmatprep.subr.mxu0 0.0
  %136 = vmatpush2.msra.mxu0 0.0
  %137 = vmatprep.subr.mxu0 0.0
  %138 = vmatpush2.msra.mxu0 0.0
  %139 = vmatprep.subr.mxu0 0.0
  %140 = vmatpush2.msra.mxu0 0.0
  %141 = vmatprep.mubr.f32.mxu0 0.0
  %142 = vmatmul.mubr.f32.gmra.mxu0 %v54
  %v143 = vpop.f32.mrf.mxu0
  %v144 = vadd.f32 %v35, %v143
  %v145 = vpop.f32.mrf.mxu0
  %v146 = vadd.f32 %v39, %v145
  %147 = vmatprep.mubr.f32.mxu0 0.0
  %148 = vmatmul.mubr.f32.gmra.mxu0 %v57
  %v149 = vpop.f32.mrf.mxu0
  %v150 = vadd.f32 %v35, %v149
  %v151 = vpop.f32.mrf.mxu0
  %v152 = vadd.f32 %v39, %v151
  %153 = vmatprep.mubr.f32.mxu0 0.0
  %154 = vmatmul.mubr.f32.gmra.mxu0 %v60
  %v155 = vpop.f32.mrf.mxu0
  %v156 = vadd.f32 %v35, %v155
  %v157 = vpop.f32.mrf.mxu0
  %v158 = vadd.f32 %v39, %v157
  %159 = vmatprep.mubr.f32.mxu0 0.0
  %160 = vmatmul.mubr.f32.gmra.mxu0 %v63
  %v161 = vpop.f32.mrf.mxu0
  %v162 = vadd.f32 %v35, %v161
  %v163 = vpop.f32.mrf.mxu0
  %v164 = vadd.f32 %v39, %v163
  %165 = vmatprep.mubr.f32.mxu0 0.0
  %166 = vmatmul.mubr.f32.gmra.mxu0 %v66
  %v167 = vpop.f32.mrf.mxu0
  %v168 = vadd.f32 %v35, %v167
  %v169 = vpop.f32.mrf.mxu0
  %v170 = vadd.f32 %v39, %v169
  %171 = vmatprep.mubr.f32.mxu0 0.0
  %172 = vmatmul.mubr.f32.gmra.mxu0 %v69
  %v173 = vpop.f32.mrf.mxu0
  %v174 = vadd.f32 %v35, %v173
  %v175 = vpop.f32.mrf.mxu0
  %v176 = vadd.f32 %v39, %v175
  %177 = vmatprep.mubr.f32.mxu0 0.0
  %178 = vmatmul.mubr.f32.gmra.mxu0 %v72
  %v179 = vpop.f32.mrf.mxu0
  %v180 = vadd.f32 %v35, %v179
  %v181 = vpop.f32.mrf.mxu0
  %v182 = vadd.f32 %v39, %v181
  %183 = vmatprep.mubr.f32.mxu0 0.0
  %184 = vmatmul.mubr.f32.gmra.mxu0 %v75
  %v185 = vpop.f32.mrf.mxu0
  %v186 = vadd.f32 %v35, %v185
  %v187 = vpop.f32.mrf.mxu0
  %v188 = vadd.f32 %v39, %v187
  %189 = vdwg.mxu0
  %190 = vmatprep.subr.mxu0 0.0
  %191 = vmatpush1.msra.mxu0 0.0
  %192 = vmatprep.subr.mxu0 0.0
  %193 = vmatpush1.msra.mxu0 0.0
  %194 = vmatprep.subr.mxu0 0.0
  %195 = vmatpush1.msra.mxu0 0.0
  %196 = vmatprep.subr.mxu0 0.0
  %197 = vmatpush1.msra.mxu0 0.0
  %198 = vmatprep.subr.mxu0 0.0
  %199 = vmatpush1.msra.mxu0 0.0
  %200 = vmatprep.subr.mxu0 0.0
  %201 = vmatpush1.msra.mxu0 0.0
  %202 = vmatprep.subr.mxu0 0.0
  %203 = vmatpush1.msra.mxu0 0.0
  %204 = vmatprep.subr.mxu0 0.0
  %205 = vmatpush1.msra.mxu0 0.0
  %206 = vmatprep.subr.mxu0 0.0
  %207 = vmatpush1.msra.mxu0 0.0
  %208 = vmatprep.subr.mxu0 0.0
  %209 = vmatpush1.msra.mxu0 0.0
  %210 = vmatprep.subr.mxu0 0.0
  %211 = vmatpush1.msra.mxu0 0.0
  %212 = vmatprep.subr.mxu0 0.0
  %213 = vmatpush1.msra.mxu0 0.0
  %214 = vmatprep.subr.mxu0 0.0
  %215 = vmatpush1.msra.mxu0 0.0
  %216 = vmatprep.subr.mxu0 0.0
  %217 = vmatpush1.msra.mxu0 0.0
  %218 = vmatprep.subr.mxu0 %v29
  %219 = vmatpush1.msra.mxu0 %v28
  %220 = vmatprep.subr.mxu0 %v25
  %221 = vmatpush1.msra.mxu0 %v24
  %222 = vmatprep.subr.mxu0 0.0
  %223 = vmatpush2.msra.mxu0 0.0
  %224 = vmatprep.subr.mxu0 0.0
  %225 = vmatpush2.msra.mxu0 0.0
  %226 = vmatprep.subr.mxu0 0.0
  %227 = vmatpush2.msra.mxu0 0.0
  %228 = vmatprep.subr.mxu0 0.0
  %229 = vmatpush2.msra.mxu0 0.0
  %230 = vmatprep.subr.mxu0 0.0
  %231 = vmatpush2.msra.mxu0 0.0
  %232 = vmatprep.subr.mxu0 0.0
  %233 = vmatpush2.msra.mxu0 0.0
  %234 = vmatprep.subr.mxu0 0.0
  %235 = vmatpush2.msra.mxu0 0.0
  %236 = vmatprep.subr.mxu0 0.0
  %237 = vmatpush2.msra.mxu0 0.0
  %238 = vmatprep.subr.mxu0 0.0
  %239 = vmatpush2.msra.mxu0 0.0
  %240 = vmatprep.subr.mxu0 0.0
  %241 = vmatpush2.msra.mxu0 0.0
  %242 = vmatprep.subr.mxu0 0.0
  %243 = vmatpush2.msra.mxu0 0.0
  %244 = vmatprep.subr.mxu0 0.0
  %245 = vmatpush2.msra.mxu0 0.0
  %246 = vmatprep.subr.mxu0 0.0
  %247 = vmatpush2.msra.mxu0 0.0
  %248 = vmatprep.subr.mxu0 0.0
  %249 = vmatpush2.msra.mxu0 0.0
  %250 = vmatprep.subr.mxu0 0.0
  %251 = vmatpush2.msra.mxu0 0.0
  %252 = vmatprep.subr.mxu0 0.0
  %253 = vmatpush2.msra.mxu0 0.0
  %254 = vmatprep.mubr.f32.mxu0 0.0
  %255 = vmatmul.mubr.f32.gmra.mxu0 %v54
  %v256 = vpop.f32.mrf.mxu0
  %v257 = vadd.f32 %v43, %v256
  %v258 = vpop.f32.mrf.mxu0
  %v259 = vadd.f32 %v47, %v258
  %260 = vmatprep.mubr.f32.mxu0 0.0
  %261 = vmatmul.mubr.f32.gmra.mxu0 %v57
  %v262 = vpop.f32.mrf.mxu0
  %v263 = vadd.f32 %v43, %v262
  %v264 = vpop.f32.mrf.mxu0
  %v265 = vadd.f32 %v47, %v264
  %266 = vmatprep.mubr.f32.mxu0 0.0
  %267 = vmatmul.mubr.f32.gmra.mxu0 %v60
  %v268 = vpop.f32.mrf.mxu0
  %v269 = vadd.f32 %v43, %v268
  %v270 = vpop.f32.mrf.mxu0
  %v271 = vadd.f32 %v47, %v270
  %272 = vmatprep.mubr.f32.mxu0 0.0
  %273 = vmatmul.mubr.f32.gmra.mxu0 %v63
  %v274 = vpop.f32.mrf.mxu0
  %v275 = vadd.f32 %v43, %v274
  %v276 = vpop.f32.mrf.mxu0
  %v277 = vadd.f32 %v47, %v276
  %278 = vmatprep.mubr.f32.mxu0 0.0
  %279 = vmatmul.mubr.f32.gmra.mxu0 %v66
  %v280 = vpop.f32.mrf.mxu0
  %v281 = vadd.f32 %v43, %v280
  %v282 = vpop.f32.mrf.mxu0
  %v283 = vadd.f32 %v47, %v282
  %284 = vmatprep.mubr.f32.mxu0 0.0
  %285 = vmatmul.mubr.f32.gmra.mxu0 %v69
  %v286 = vpop.f32.mrf.mxu0
  %v287 = vadd.f32 %v43, %v286
  %v288 = vpop.f32.mrf.mxu0
  %v289 = vadd.f32 %v47, %v288
  %290 = vmatprep.mubr.f32.mxu0 0.0
  %291 = vmatmul.mubr.f32.gmra.mxu0 %v72
  %v292 = vpop.f32.mrf.mxu0
  %v293 = vadd.f32 %v43, %v292
  %v294 = vpop.f32.mrf.mxu0
  %v295 = vadd.f32 %v47, %v294
  %296 = vmatprep.mubr.f32.mxu0 0.0
  %297 = vmatmul.mubr.f32.gmra.mxu0 %v75
  %v298 = vpop.f32.mrf.mxu0
  %v299 = vadd.f32 %v43, %v298
  %v300 = vpop.f32.mrf.mxu0
  %v301 = vadd.f32 %v47, %v300
  %302 = vdwg.mxu0
  %303 = vst [vmem:[%s3] sm:$0xff] %v144
  %304 = vst [vmem:[%s3 + $0x8] sm:$0xff] %v146
  %305 = vst [vmem:[%s3 + $0x10] sm:$0xff] %v257
  %306 = vst [vmem:[%s3 + $0x18] sm:$0xff] %v259
  %307 = vst [vmem:[%s3 + $0x20] sm:$0xff] %v150
  %308 = vst [vmem:[%s3 + $0x28] sm:$0xff] %v152
  %309 = vst [vmem:[%s3 + $0x30] sm:$0xff] %v263
  %310 = vst [vmem:[%s3 + $0x38] sm:$0xff] %v265
  %311 = vst [vmem:[%s3 + $0x40] sm:$0xff] %v156
  %312 = vst [vmem:[%s3 + $0x48] sm:$0xff] %v158
  %313 = vst [vmem:[%s3 + $0x50] sm:$0xff] %v269
  %314 = vst [vmem:[%s3 + $0x58] sm:$0xff] %v271
  %315 = vst [vmem:[%s3 + $0x60] sm:$0xff] %v162
  %316 = vst [vmem:[%s3 + $0x68] sm:$0xff] %v164
  %317 = vst [vmem:[%s3 + $0x70] sm:$0xff] %v275
  %318 = vst [vmem:[%s3 + $0x78] sm:$0xff] %v277
  %319 = vst [vmem:[%s3 + $0x80] sm:$0xff] %v168
  %320 = vst [vmem:[%s3 + $0x88] sm:$0xff] %v170
  %321 = vst [vmem:[%s3 + $0x90] sm:$0xff] %v281
  %322 = vst [vmem:[%s3 + $0x98] sm:$0xff] %v283
  %323 = vst [vmem:[%s3 + $0xa0] sm:$0xff] %v174
  %324 = vst [vmem:[%s3 + $0xa8] sm:$0xff] %v176
  %325 = vst [vmem:[%s3 + $0xb0] sm:$0xff] %v287
  %326 = vst [vmem:[%s3 + $0xb8] sm:$0xff] %v289
  %327 = vst [vmem:[%s3 + $0xc0] sm:$0xff] %v180
  %328 = vst [vmem:[%s3 + $0xc8] sm:$0xff] %v182
  %329 = vst [vmem:[%s3 + $0xd0] sm:$0xff] %v293
  %330 = vst [vmem:[%s3 + $0xd8] sm:$0xff] %v295
  %331 = vst [vmem:[%s3 + $0xe0] sm:$0xff] %v186
  %332 = vst [vmem:[%s3 + $0xe8] sm:$0xff] %v188
  %333 = vst [vmem:[%s3 + $0xf0] sm:$0xff] %v299
  %334 = vst [vmem:[%s3 + $0xf8] sm:$0xff] %v301
  // Predicated region
  $region14: #{seq2seq_forward.6} parent=0 // pred_check
    _
  $region15: #{seq2seq_forward.6} parent=0 // pred_check_branch
    %336 = sbr.rel (0) target = $region17
  $region16: #{seq2seq_forward.6} parent=0 // pred_region
    _
  $region17: #{seq2seq_forward.6} parent=0 // pred_fallthru
    _
  // Predicated region
  $region18: #{seq2seq_forward.6} parent=0 // pred_check
    _
  $region19: #{seq2seq_forward.6} parent=0 // pred_check_branch
    %338 = sbr.rel (0) target = $region21
  $region20: #{seq2seq_forward.6} parent=0 // pred_region
    _
  $region21: #{seq2seq_forward.6} parent=0 // pred_fallthru
    _

// kernel: seq2seq_forward.10
$region0: #{seq2seq_forward.10}
  #allocation0 [shape = 'u32[]', space=smem, size = 0x4, offset = 0x4, fixed_abs, tag = 'smem constant byte address 0x4 - core index']
  #allocation1 [shape = 'u32[144,128]{1,0:T(1,128)}', space=vmem, size = 0x12000, scoped, tag = 'internal scratch']
  %s0 = inlined_call_operand.vmem [shape: f32[64,128], index: 0, kind: input, shape index: {}]
  %s1 = inlined_call_operand.vmem [shape: f32[128,512], index: 1, kind: input, shape index: {}]
  %s2 = inlined_call_operand.vmem [shape: f32[1,512], index: 2, kind: input, shape index: {}]
  %s3 = inlined_call_operand.vmem [shape: f32[64,512], index: 3, kind: output, shape index: {}]
  %s4 = sld [smem:[#allocation0]]
  $region22: #{seq2seq_forward.10} parent=0
    _
  %s6 = ssub.s32 1, %s4
  %s7 = scalar_select 0, %s6, %s4
  // Predicated region
  $region2: #{seq2seq_forward.10} parent=0 // pred_check
    _
  $region3: #{seq2seq_forward.10} parent=0 // pred_check_branch
    %9 = sbr.rel (0) target = $region5
  $region4: #{seq2seq_forward.10} parent=0 // pred_region
    _
  $region5: #{seq2seq_forward.10} parent=0 // pred_fallthru
    _
  // Predicated region
  $region6: #{seq2seq_forward.10} parent=0 // pred_check
    _
  $region7: #{seq2seq_forward.10} parent=0 // pred_check_branch
    %11 = sbr.rel (0) target = $region9
  $region8: #{seq2seq_forward.10} parent=0 // pred_region
    _
  $region9: #{seq2seq_forward.10} parent=0 // pred_fallthru
    _
  // Predicated region
  $region10: #{seq2seq_forward.10} parent=0 // pred_check
    _
  $region11: #{seq2seq_forward.10} parent=0 // pred_check_branch
    %13 = sbr.rel (0) target = $region13
  $region12: #{seq2seq_forward.10} parent=0 // pred_region
    _
  $region13: #{seq2seq_forward.10} parent=0 // pred_fallthru
    _
  %v14 = vld [vmem:[%s0] sm:$0xff]
  %v15 = vld [vmem:[%s0 + $0x8] sm:$0xff]
  %v16 = vld [vmem:[%s0 + $0x10] sm:$0xff]
  %v17 = vld [vmem:[%s0 + $0x18] sm:$0xff]
  %v18 = vld [vmem:[%s0 + $0x20] sm:$0xff]
  %v19 = vld [vmem:[%s0 + $0x28] sm:$0xff]
  %v20 = vld [vmem:[%s0 + $0x30] sm:$0xff]
  %v21 = vld [vmem:[%s0 + $0x38] sm:$0xff]
  %v22 = vld [vmem:[%s1] sm:$0xff]
  %v23 = vld [vmem:[%s1 + $0x8] sm:$0xff]
  %v24 = vld [vmem:[%s1 + $0x10] sm:$0xff]
  %v25 = vld [vmem:[%s1 + $0x18] sm:$0xff]
  %v26 = vld [vmem:[%s1 + $0x20] sm:$0xff]
  %v27 = vld [vmem:[%s1 + $0x28] sm:$0xff]
  %v28 = vld [vmem:[%s1 + $0x30] sm:$0xff]
  %v29 = vld [vmem:[%s1 + $0x38] sm:$0xff]
  %v30 = vld [vmem:[%s1 + $0x40] sm:$0xff]
  %v31 = vld [vmem:[%s1 + $0x48] sm:$0xff]
  %v32 = vld [vmem:[%s1 + $0x50] sm:$0xff]
  %v33 = vld [vmem:[%s1 + $0x58] sm:$0xff]
  %v34 = vld [vmem:[%s1 + $0x60] sm:$0xff]
  %v35 = vld [vmem:[%s1 + $0x68] sm:$0xff]
  %v36 = vld [vmem:[%s1 + $0x70] sm:$0xff]
  %v37 = vld [vmem:[%s1 + $0x78] sm:$0xff]
  %v38 = vld [vmem:[%s1 + $0x80] sm:$0xff]
  %v39 = vld [vmem:[%s1 + $0x88] sm:$0xff]
  %v40 = vld [vmem:[%s1 + $0x90] sm:$0xff]
  %v41 = vld [vmem:[%s1 + $0x98] sm:$0xff]
  %v42 = vld [vmem:[%s1 + $0xa0] sm:$0xff]
  %v43 = vld [vmem:[%s1 + $0xa8] sm:$0xff]
  %v44 = vld [vmem:[%s1 + $0xb0] sm:$0xff]
  %v45 = vld [vmem:[%s1 + $0xb8] sm:$0xff]
  %v46 = vld [vmem:[%s1 + $0xc0] sm:$0xff]
  %v47 = vld [vmem:[%s1 + $0xc8] sm:$0xff]
  %v48 = vld [vmem:[%s1 + $0xd0] sm:$0xff]
  %v49 = vld [vmem:[%s1 + $0xd8] sm:$0xff]
  %v50 = vld [vmem:[%s1 + $0xe0] sm:$0xff]
  %v51 = vld [vmem:[%s1 + $0xe8] sm:$0xff]
  %v52 = vld [vmem:[%s1 + $0xf0] sm:$0xff]
  %v53 = vld [vmem:[%s1 + $0xf8] sm:$0xff]
  %v54 = vld [vmem:[%s1 + $0x100] sm:$0xff]
  %v55 = vld [vmem:[%s1 + $0x108] sm:$0xff]
  %v56 = vld [vmem:[%s1 + $0x110] sm:$0xff]
  %v57 = vld [vmem:[%s1 + $0x118] sm:$0xff]
  %v58 = vld [vmem:[%s1 + $0x120] sm:$0xff]
  %v59 = vld [vmem:[%s1 + $0x128] sm:$0xff]
  %v60 = vld [vmem:[%s1 + $0x130] sm:$0xff]
  %v61 = vld [vmem:[%s1 + $0x138] sm:$0xff]
  %v62 = vld [vmem:[%s1 + $0x140] sm:$0xff]
  %v63 = vld [vmem:[%s1 + $0x148] sm:$0xff]
  %v64 = vld [vmem:[%s1 + $0x150] sm:$0xff]
  %v65 = vld [vmem:[%s1 + $0x158] sm:$0xff]
  %v66 = vld [vmem:[%s1 + $0x160] sm:$0xff]
  %v67 = vld [vmem:[%s1 + $0x168] sm:$0xff]
  %v68 = vld [vmem:[%s1 + $0x170] sm:$0xff]
  %v69 = vld [vmem:[%s1 + $0x178] sm:$0xff]
  %v70 = vld [vmem:[%s1 + $0x180] sm:$0xff]
  %v71 = vld [vmem:[%s1 + $0x188] sm:$0xff]
  %v72 = vld [vmem:[%s1 + $0x190] sm:$0xff]
  %v73 = vld [vmem:[%s1 + $0x198] sm:$0xff]
  %v74 = vld [vmem:[%s1 + $0x1a0] sm:$0xff]
  %v75 = vld [vmem:[%s1 + $0x1a8] sm:$0xff]
  %v76 = vld [vmem:[%s1 + $0x1b0] sm:$0xff]
  %v77 = vld [vmem:[%s1 + $0x1b8] sm:$0xff]
  %v78 = vld [vmem:[%s1 + $0x1c0] sm:$0xff]
  %v79 = vld [vmem:[%s1 + $0x1c8] sm:$0xff]
  %v80 = vld [vmem:[%s1 + $0x1d0] sm:$0xff]
  %v81 = vld [vmem:[%s1 + $0x1d8] sm:$0xff]
  %v82 = vld [vmem:[%s1 + $0x1e0] sm:$0xff]
  %v83 = vld [vmem:[%s1 + $0x1e8] sm:$0xff]
  %v84 = vld [vmem:[%s1 + $0x1f0] sm:$0xff]
  %v85 = vld [vmem:[%s1 + $0x1f8] sm:$0xff]
  %v86 = vld [vmem:[%s2] sm:$0xf]
  %v88 = vlaneseq
  %v89 = vshrl.u32 %v88, 7
  %v90 = vsub.s32 0, %v89
  %v91 = vrot.slane %v86, %v90
  %v92 = vlaneseq
  %v93 = vshrl.u32 %v92, 7
  %v94 = vsub.s32 1, %v93
  %v95 = vrot.slane %v86, %v94
  %v96 = vlaneseq
  %v97 = vshrl.u32 %v96, 7
  %v98 = vsub.s32 2, %v97
  %v99 = vrot.slane %v86, %v98
  %v100 = vlaneseq
  %v101 = vshrl.u32 %v100, 7
  %v102 = vsub.s32 3, %v101
  %v103 = vrot.slane %v86, %v102
  %108 = vmatprep.subr.mxu0 %v83
  %109 = vmatpush1.msra.mxu0 %v82
  %110 = vmatprep.subr.mxu0 %v79
  %111 = vmatpush1.msra.mxu0 %v78
  %112 = vmatprep.subr.mxu0 %v75
  %113 = vmatpush1.msra.mxu0 %v74
  %114 = vmatprep.subr.mxu0 %v71
  %115 = vmatpush1.msra.mxu0 %v70
  %116 = vmatprep.subr.mxu0 %v67
  %117 = vmatpush1.msra.mxu0 %v66
  %118 = vmatprep.subr.mxu0 %v63
  %119 = vmatpush1.msra.mxu0 %v62
  %120 = vmatprep.subr.mxu0 %v59
  %121 = vmatpush1.msra.mxu0 %v58
  %122 = vmatprep.subr.mxu0 %v55
  %123 = vmatpush1.msra.mxu0 %v54
  %124 = vmatprep.subr.mxu0 %v51
  %125 = vmatpush1.msra.mxu0 %v50
  %126 = vmatprep.subr.mxu0 %v47
  %127 = vmatpush1.msra.mxu0 %v46
  %128 = vmatprep.subr.mxu0 %v43
  %129 = vmatpush1.msra.mxu0 %v42
  %130 = vmatprep.subr.mxu0 %v39
  %131 = vmatpush1.msra.mxu0 %v38
  %132 = vmatprep.subr.mxu0 %v35
  %133 = vmatpush1.msra.mxu0 %v34
  %134 = vmatprep.subr.mxu0 %v31
  %135 = vmatpush1.msra.mxu0 %v30
  %136 = vmatprep.subr.mxu0 %v27
  %137 = vmatpush1.msra.mxu0 %v26
  %138 = vmatprep.subr.mxu0 %v23
  %139 = vmatpush1.msra.mxu0 %v22
  %140 = vmatprep.subr.mxu0 0.0
  %141 = vmatpush2.msra.mxu0 0.0
  %142 = vmatprep.subr.mxu0 0.0
  %143 = vmatpush2.msra.mxu0 0.0
  %144 = vmatprep.subr.mxu0 0.0
  %145 = vmatpush2.msra.mxu0 0.0
  %146 = vmatprep.subr.mxu0 0.0
  %147 = vmatpush2.msra.mxu0 0.0
  %148 = vmatprep.subr.mxu0 0.0
  %149 = vmatpush2.msra.mxu0 0.0
  %150 = vmatprep.subr.mxu0 0.0
  %151 = vmatpush2.msra.mxu0 0.0
  %152 = vmatprep.subr.mxu0 0.0
  %153 = vmatpush2.msra.mxu0 0.0
  %154 = vmatprep.subr.mxu0 0.0
  %155 = vmatpush2.msra.mxu0 0.0
  %156 = vmatprep.subr.mxu0 0.0
  %157 = vmatpush2.msra.mxu0 0.0
  %158 = vmatprep.subr.mxu0 0.0
  %159 = vmatpush2.msra.mxu0 0.0
  %160 = vmatprep.subr.mxu0 0.0
  %161 = vmatpush2.msra.mxu0 0.0
  %162 = vmatprep.subr.mxu0 0.0
  %163 = vmatpush2.msra.mxu0 0.0
  %164 = vmatprep.subr.mxu0 0.0
  %165 = vmatpush2.msra.mxu0 0.0
  %166 = vmatprep.subr.mxu0 0.0
  %167 = vmatpush2.msra.mxu0 0.0
  %168 = vmatprep.subr.mxu0 0.0
  %169 = vmatpush2.msra.mxu0 0.0
  %170 = vmatprep.subr.mxu0 0.0
  %171 = vmatpush2.msra.mxu0 0.0
  %172 = vmatprep.mubr.f32.mxu0 0.0
  %173 = vmatmul.mubr.f32.gmra.mxu0 %v14
  %v174 = vpop.f32.mrf.mxu0
  %v175 = vadd.f32 %v91, %v174
  %v176 = vpop.f32.mrf.mxu0
  %v177 = vadd.f32 %v95, %v176
  %178 = vmatprep.mubr.f32.mxu0 0.0
  %179 = vmatmul.mubr.f32.gmra.mxu0 %v15
  %v180 = vpop.f32.mrf.mxu0
  %v181 = vadd.f32 %v91, %v180
  %v182 = vpop.f32.mrf.mxu0
  %v183 = vadd.f32 %v95, %v182
  %184 = vmatprep.mubr.f32.mxu0 0.0
  %185 = vmatmul.mubr.f32.gmra.mxu0 %v16
  %v186 = vpop.f32.mrf.mxu0
  %v187 = vadd.f32 %v91, %v186
  %v188 = vpop.f32.mrf.mxu0
  %v189 = vadd.f32 %v95, %v188
  %190 = vmatprep.mubr.f32.mxu0 0.0
  %191 = vmatmul.mubr.f32.gmra.mxu0 %v17
  %v192 = vpop.f32.mrf.mxu0
  %v193 = vadd.f32 %v91, %v192
  %v194 = vpop.f32.mrf.mxu0
  %v195 = vadd.f32 %v95, %v194
  %196 = vmatprep.mubr.f32.mxu0 0.0
  %197 = vmatmul.mubr.f32.gmra.mxu0 %v18
  %v198 = vpop.f32.mrf.mxu0
  %v199 = vadd.f32 %v91, %v198
  %v200 = vpop.f32.mrf.mxu0
  %v201 = vadd.f32 %v95, %v200
  %202 = vmatprep.mubr.f32.mxu0 0.0
  %203 = vmatmul.mubr.f32.gmra.mxu0 %v19
  %v204 = vpop.f32.mrf.mxu0
  %v205 = vadd.f32 %v91, %v204
  %v206 = vpop.f32.mrf.mxu0
  %v207 = vadd.f32 %v95, %v206
  %208 = vmatprep.mubr.f32.mxu0 0.0
  %209 = vmatmul.mubr.f32.gmra.mxu0 %v20
  %v210 = vpop.f32.mrf.mxu0
  %v211 = vadd.f32 %v91, %v210
  %v212 = vpop.f32.mrf.mxu0
  %v213 = vadd.f32 %v95, %v212
  %214 = vmatprep.mubr.f32.mxu0 0.0
  %215 = vmatmul.mubr.f32.gmra.mxu0 %v21
  %v216 = vpop.f32.mrf.mxu0
  %v217 = vadd.f32 %v91, %v216
  %v218 = vpop.f32.mrf.mxu0
  %v219 = vadd.f32 %v95, %v218
  %220 = vdwg.mxu0
  %221 = vmatprep.subr.mxu0 %v85
  %222 = vmatpush1.msra.mxu0 %v84
  %223 = vmatprep.subr.mxu0 %v81
  %224 = vmatpush1.msra.mxu0 %v80
  %225 = vmatprep.subr.mxu0 %v77
  %226 = vmatpush1.msra.mxu0 %v76
  %227 = vmatprep.subr.mxu0 %v73
  %228 = vmatpush1.msra.mxu0 %v72
  %229 = vmatprep.subr.mxu0 %v69
  %230 = vmatpush1.msra.mxu0 %v68
  %231 = vmatprep.subr.mxu0 %v65
  %232 = vmatpush1.msra.mxu0 %v64
  %233 = vmatprep.subr.mxu0 %v61
  %234 = vmatpush1.msra.mxu0 %v60
  %235 = vmatprep.subr.mxu0 %v57
  %236 = vmatpush1.msra.mxu0 %v56
  %237 = vmatprep.subr.mxu0 %v53
  %238 = vmatpush1.msra.mxu0 %v52
  %239 = vmatprep.subr.mxu0 %v49
  %240 = vmatpush1.msra.mxu0 %v48
  %241 = vmatprep.subr.mxu0 %v45
  %242 = vmatpush1.msra.mxu0 %v44
  %243 = vmatprep.subr.mxu0 %v41
  %244 = vmatpush1.msra.mxu0 %v40
  %245 = vmatprep.subr.mxu0 %v37
  %246 = vmatpush1.msra.mxu0 %v36
  %247 = vmatprep.subr.mxu0 %v33
  %248 = vmatpush1.msra.mxu0 %v32
  %249 = vmatprep.subr.mxu0 %v29
  %250 = vmatpush1.msra.mxu0 %v28
  %251 = vmatprep.subr.mxu0 %v25
  %252 = vmatpush1.msra.mxu0 %v24
  %253 = vmatprep.subr.mxu0 0.0
  %254 = vmatpush2.msra.mxu0 0.0
  %255 = vmatprep.subr.mxu0 0.0
  %256 = vmatpush2.msra.mxu0 0.0
  %257 = vmatprep.subr.mxu0 0.0
  %258 = vmatpush2.msra.mxu0 0.0
  %259 = vmatprep.subr.mxu0 0.0
  %260 = vmatpush2.msra.mxu0 0.0
  %261 = vmatprep.subr.mxu0 0.0
  %262 = vmatpush2.msra.mxu0 0.0
  %263 = vmatprep.subr.mxu0 0.0
  %264 = vmatpush2.msra.mxu0 0.0
  %265 = vmatprep.subr.mxu0 0.0
  %266 = vmatpush2.msra.mxu0 0.0
  %267 = vmatprep.subr.mxu0 0.0
  %268 = vmatpush2.msra.mxu0 0.0
  %269 = vmatprep.subr.mxu0 0.0
  %270 = vmatpush2.msra.mxu0 0.0
  %271 = vmatprep.subr.mxu0 0.0
  %272 = vmatpush2.msra.mxu0 0.0
  %273 = vmatprep.subr.mxu0 0.0
  %274 = vmatpush2.msra.mxu0 0.0
  %275 = vmatprep.subr.mxu0 0.0
  %276 = vmatpush2.msra.mxu0 0.0
  %277 = vmatprep.subr.mxu0 0.0
  %278 = vmatpush2.msra.mxu0 0.0
  %279 = vmatprep.subr.mxu0 0.0
  %280 = vmatpush2.msra.mxu0 0.0
  %281 = vmatprep.subr.mxu0 0.0
  %282 = vmatpush2.msra.mxu0 0.0
  %283 = vmatprep.subr.mxu0 0.0
  %284 = vmatpush2.msra.mxu0 0.0
  %285 = vmatprep.mubr.f32.mxu0 0.0
  %286 = vmatmul.mubr.f32.gmra.mxu0 %v14
  %v287 = vpop.f32.mrf.mxu0
  %v288 = vadd.f32 %v99, %v287
  %v289 = vpop.f32.mrf.mxu0
  %v290 = vadd.f32 %v103, %v289
  %291 = vmatprep.mubr.f32.mxu0 0.0
  %292 = vmatmul.mubr.f32.gmra.mxu0 %v15
  %v293 = vpop.f32.mrf.mxu0
  %v294 = vadd.f32 %v99, %v293
  %v295 = vpop.f32.mrf.mxu0
  %v296 = vadd.f32 %v103, %v295
  %297 = vmatprep.mubr.f32.mxu0 0.0
  %298 = vmatmul.mubr.f32.gmra.mxu0 %v16
  %v299 = vpop.f32.mrf.mxu0
  %v300 = vadd.f32 %v99, %v299
  %v301 = vpop.f32.mrf.mxu0
  %v302 = vadd.f32 %v103, %v301
  %303 = vmatprep.mubr.f32.mxu0 0.0
  %304 = vmatmul.mubr.f32.gmra.mxu0 %v17
  %v305 = vpop.f32.mrf.mxu0
  %v306 = vadd.f32 %v99, %v305
  %v307 = vpop.f32.mrf.mxu0
  %v308 = vadd.f32 %v103, %v307
  %309 = vmatprep.mubr.f32.mxu0 0.0
  %310 = vmatmul.mubr.f32.gmra.mxu0 %v18
  %v311 = vpop.f32.mrf.mxu0
  %v312 = vadd.f32 %v99, %v311
  %v313 = vpop.f32.mrf.mxu0
  %v314 = vadd.f32 %v103, %v313
  %315 = vmatprep.mubr.f32.mxu0 0.0
  %316 = vmatmul.mubr.f32.gmra.mxu0 %v19
  %v317 = vpop.f32.mrf.mxu0
  %v318 = vadd.f32 %v99, %v317
  %v319 = vpop.f32.mrf.mxu0
  %v320 = vadd.f32 %v103, %v319
  %321 = vmatprep.mubr.f32.mxu0 0.0
  %322 = vmatmul.mubr.f32.gmra.mxu0 %v20
  %v323 = vpop.f32.mrf.mxu0
  %v324 = vadd.f32 %v99, %v323
  %v325 = vpop.f32.mrf.mxu0
  %v326 = vadd.f32 %v103, %v325
  %327 = vmatprep.mubr.f32.mxu0 0.0
  %328 = vmatmul.mubr.f32.gmra.mxu0 %v21
  %v329 = vpop.f32.mrf.mxu0
  %v330 = vadd.f32 %v99, %v329
  %v331 = vpop.f32.mrf.mxu0
  %v332 = vadd.f32 %v103, %v331
  %333 = vdwg.mxu0
  %334 = vst [vmem:[%s3] sm:$0xff] %v175
  %335 = vst [vmem:[%s3 + $0x8] sm:$0xff] %v177
  %336 = vst [vmem:[%s3 + $0x10] sm:$0xff] %v288
  %337 = vst [vmem:[%s3 + $0x18] sm:$0xff] %v290
  %338 = vst [vmem:[%s3 + $0x20] sm:$0xff] %v181
  %339 = vst [vmem:[%s3 + $0x28] sm:$0xff] %v183
  %340 = vst [vmem:[%s3 + $0x30] sm:$0xff] %v294
  %341 = vst [vmem:[%s3 + $0x38] sm:$0xff] %v296
  %342 = vst [vmem:[%s3 + $0x40] sm:$0xff] %v187
  %343 = vst [vmem:[%s3 + $0x48] sm:$0xff] %v189
  %344 = vst [vmem:[%s3 + $0x50] sm:$0xff] %v300
  %345 = vst [vmem:[%s3 + $0x58] sm:$0xff] %v302
  %346 = vst [vmem:[%s3 + $0x60] sm:$0xff] %v193
  %347 = vst [vmem:[%s3 + $0x68] sm:$0xff] %v195
  %348 = vst [vmem:[%s3 + $0x70] sm:$0xff] %v306
  %349 = vst [vmem:[%s3 + $0x78] sm:$0xff] %v308
  %350 = vst [vmem:[%s3 + $0x80] sm:$0xff] %v199
  %351 = vst [vmem:[%s3 + $0x88] sm:$0xff] %v201
  %352 = vst [vmem:[%s3 + $0x90] sm:$0xff] %v312
  %353 = vst [vmem:[%s3 + $0x98] sm:$0xff] %v314
  %354 = vst [vmem:[%s3 + $0xa0] sm:$0xff] %v205
  %355 = vst [vmem:[%s3 + $0xa8] sm:$0xff] %v207
  %356 = vst [vmem:[%s3 + $0xb0] sm:$0xff] %v318
  %357 = vst [vmem:[%s3 + $0xb8] sm:$0xff] %v320
  %358 = vst [vmem:[%s3 + $0xc0] sm:$0xff] %v211
  %359 = vst [vmem:[%s3 + $0xc8] sm:$0xff] %v213
  %360 = vst [vmem:[%s3 + $0xd0] sm:$0xff] %v324
  %361 = vst [vmem:[%s3 + $0xd8] sm:$0xff] %v326
  %362 = vst [vmem:[%s3 + $0xe0] sm:$0xff] %v217
  %363 = vst [vmem:[%s3 + $0xe8] sm:$0xff] %v219
  %364 = vst [vmem:[%s3 + $0xf0] sm:$0xff] %v330
  %365 = vst [vmem:[%s3 + $0xf8] sm:$0xff] %v332
  // Predicated region
  $region14: #{seq2seq_forward.10} parent=0 // pred_check
    _
  $region15: #{seq2seq_forward.10} parent=0 // pred_check_branch
    %367 = sbr.rel (0) target = $region17
  $region16: #{seq2seq_forward.10} parent=0 // pred_region
    _
  $region17: #{seq2seq_forward.10} parent=0 // pred_fallthru
    _
  // Predicated region
  $region18: #{seq2seq_forward.10} parent=0 // pred_check
    _
  $region19: #{seq2seq_forward.10} parent=0 // pred_check_branch
    %369 = sbr.rel (0) target = $region21
  $region20: #{seq2seq_forward.10} parent=0 // pred_region
    _
  $region21: #{seq2seq_forward.10} parent=0 // pred_fallthru
    _

// kernel: seq2seq_forward.8
$region0: #{seq2seq_forward.8}
  #allocation0 [shape = 'u32[]', space=smem, size = 0x4, offset = 0x4, fixed_abs, tag = 'smem constant byte address 0x4 - core index']
  #allocation1 [shape = 'u32[144,128]{1,0:T(1,128)}', space=vmem, size = 0x12000, scoped, tag = 'internal scratch']
  %s0 = inlined_call_operand.vmem [shape: s32[8,1], index: 0, kind: input, shape index: {}]
  %s1 = inlined_call_operand.vmem [shape: f32[8,8,512], index: 1, kind: input, shape index: {}]
  %s2 = inlined_call_operand.vmem [shape: f32[128,512], index: 2, kind: input, shape index: {}]
  %s3 = inlined_call_operand.vmem [shape: f32[8,128], index: 3, kind: output, shape index: {0}]
  %s4 = inlined_call_operand.vmem [shape: f32[8,128], index: 4, kind: output, shape index: {1}]
  %5 = xla_tuple %s3, %s4
  %s6 = sld [smem:[#allocation0]]
  $region30: #{seq2seq_forward.8} parent=0
    _
  %s8 = ssub.s32 1, %s6
  %s9 = scalar_select 0, %s8, %s6
  // Predicated region
  $region2: #{seq2seq_forward.8} parent=0 // pred_check
    _
  $region3: #{seq2seq_forward.8} parent=0 // pred_check_branch
    %11 = sbr.rel (0) target = $region5
  $region4: #{seq2seq_forward.8} parent=0 // pred_region
    _
  $region5: #{seq2seq_forward.8} parent=0 // pred_fallthru
    _
  // Predicated region
  $region6: #{seq2seq_forward.8} parent=0 // pred_check
    _
  $region7: #{seq2seq_forward.8} parent=0 // pred_check_branch
    %13 = sbr.rel (0) target = $region9
  $region8: #{seq2seq_forward.8} parent=0 // pred_region
    _
  $region9: #{seq2seq_forward.8} parent=0 // pred_fallthru
    _
  // Predicated region
  $region10: #{seq2seq_forward.8} parent=0 // pred_check
    _
  $region11: #{seq2seq_forward.8} parent=0 // pred_check_branch
    %15 = sbr.rel (0) target = $region13
  $region12: #{seq2seq_forward.8} parent=0 // pred_region
    _
  $region13: #{seq2seq_forward.8} parent=0 // pred_fallthru
    _
  %v16 = vld [vmem:[%s0] sm:$0xff]
  %v17 = vld [vmem:[%s2] sm:$0xff]
  %v18 = vld [vmem:[%s2 + $0x8] sm:$0xff]
  %v19 = vld [vmem:[%s2 + $0x10] sm:$0xff]
  %v20 = vld [vmem:[%s2 + $0x18] sm:$0xff]
  %v21 = vld [vmem:[%s2 + $0x20] sm:$0xff]
  %v22 = vld [vmem:[%s2 + $0x28] sm:$0xff]
  %v23 = vld [vmem:[%s2 + $0x30] sm:$0xff]
  %v24 = vld [vmem:[%s2 + $0x38] sm:$0xff]
  %v25 = vld [vmem:[%s2 + $0x40] sm:$0xff]
  %v26 = vld [vmem:[%s2 + $0x48] sm:$0xff]
  %v27 = vld [vmem:[%s2 + $0x50] sm:$0xff]
  %v28 = vld [vmem:[%s2 + $0x58] sm:$0xff]
  %v29 = vld [vmem:[%s2 + $0x60] sm:$0xff]
  %v30 = vld [vmem:[%s2 + $0x68] sm:$0xff]
  %v31 = vld [vmem:[%s2 + $0x70] sm:$0xff]
  %v32 = vld [vmem:[%s2 + $0x78] sm:$0xff]
  %v33 = vld [vmem:[%s2 + $0x80] sm:$0xff]
  %v34 = vld [vmem:[%s2 + $0x88] sm:$0xff]
  %v35 = vld [vmem:[%s2 + $0x90] sm:$0xff]
  %v36 = vld [vmem:[%s2 + $0x98] sm:$0xff]
  %v37 = vld [vmem:[%s2 + $0xa0] sm:$0xff]
  %v38 = vld [vmem:[%s2 + $0xa8] sm:$0xff]
  %v39 = vld [vmem:[%s2 + $0xb0] sm:$0xff]
  %v40 = vld [vmem:[%s2 + $0xb8] sm:$0xff]
  %v41 = vld [vmem:[%s2 + $0xc0] sm:$0xff]
  %v42 = vld [vmem:[%s2 + $0xc8] sm:$0xff]
  %v43 = vld [vmem:[%s2 + $0xd0] sm:$0xff]
  %v44 = vld [vmem:[%s2 + $0xd8] sm:$0xff]
  %v45 = vld [vmem:[%s2 + $0xe0] sm:$0xff]
  %v46 = vld [vmem:[%s2 + $0xe8] sm:$0xff]
  %v47 = vld [vmem:[%s2 + $0xf0] sm:$0xff]
  %v48 = vld [vmem:[%s2 + $0xf8] sm:$0xff]
  %v49 = vld [vmem:[%s2 + $0x100] sm:$0xff]
  %v50 = vld [vmem:[%s2 + $0x108] sm:$0xff]
  %v51 = vld [vmem:[%s2 + $0x110] sm:$0xff]
  %v52 = vld [vmem:[%s2 + $0x118] sm:$0xff]
  %v53 = vld [vmem:[%s2 + $0x120] sm:$0xff]
  %v54 = vld [vmem:[%s2 + $0x128] sm:$0xff]
  %v55 = vld [vmem:[%s2 + $0x130] sm:$0xff]
  %v56 = vld [vmem:[%s2 + $0x138] sm:$0xff]
  %v57 = vld [vmem:[%s2 + $0x140] sm:$0xff]
  %v58 = vld [vmem:[%s2 + $0x148] sm:$0xff]
  %v59 = vld [vmem:[%s2 + $0x150] sm:$0xff]
  %v60 = vld [vmem:[%s2 + $0x158] sm:$0xff]
  %v61 = vld [vmem:[%s2 + $0x160] sm:$0xff]
  %v62 = vld [vmem:[%s2 + $0x168] sm:$0xff]
  %v63 = vld [vmem:[%s2 + $0x170] sm:$0xff]
  %v64 = vld [vmem:[%s2 + $0x178] sm:$0xff]
  %v65 = vld [vmem:[%s2 + $0x180] sm:$0xff]
  %v66 = vld [vmem:[%s2 + $0x188] sm:$0xff]
  %v67 = vld [vmem:[%s2 + $0x190] sm:$0xff]
  %v68 = vld [vmem:[%s2 + $0x198] sm:$0xff]
  %v69 = vld [vmem:[%s2 + $0x1a0] sm:$0xff]
  %v70 = vld [vmem:[%s2 + $0x1a8] sm:$0xff]
  %v71 = vld [vmem:[%s2 + $0x1b0] sm:$0xff]
  %v72 = vld [vmem:[%s2 + $0x1b8] sm:$0xff]
  %v73 = vld [vmem:[%s2 + $0x1c0] sm:$0xff]
  %v74 = vld [vmem:[%s2 + $0x1c8] sm:$0xff]
  %v75 = vld [vmem:[%s2 + $0x1d0] sm:$0xff]
  %v76 = vld [vmem:[%s2 + $0x1d8] sm:$0xff]
  %v77 = vld [vmem:[%s2 + $0x1e0] sm:$0xff]
  %v78 = vld [vmem:[%s2 + $0x1e8] sm:$0xff]
  %v79 = vld [vmem:[%s2 + $0x1f0] sm:$0xff]
  %v80 = vld [vmem:[%s2 + $0x1f8] sm:$0xff]
  %v81 = vld [vmem:[%s1] sm:$0xff]
  %v82 = vld [vmem:[%s1 + $0x8] sm:$0xff]
  %v83 = vld [vmem:[%s1 + $0x10] sm:$0xff]
  %v84 = vld [vmem:[%s1 + $0x18] sm:$0xff]
  %85 = vmatprep.subr.mxu0 %v78
  %86 = vmatpush1.msra.mxu0 %v77
  %87 = vmatprep.subr.mxu0 %v74
  %88 = vmatpush1.msra.mxu0 %v73
  %89 = vmatprep.subr.mxu0 %v70
  %90 = vmatpush1.msra.mxu0 %v69
  %91 = vmatprep.subr.mxu0 %v66
  %92 = vmatpush1.msra.mxu0 %v65
  %93 = vmatprep.subr.mxu0 %v62
  %94 = vmatpush1.msra.mxu0 %v61
  %95 = vmatprep.subr.mxu0 %v58
  %96 = vmatpush1.msra.mxu0 %v57
  %97 = vmatprep.subr.mxu0 %v54
  %98 = vmatpush1.msra.mxu0 %v53
  %99 = vmatprep.subr.mxu0 %v50
  %100 = vmatpush1.msra.mxu0 %v49
  %101 = vmatprep.subr.mxu0 %v46
  %102 = vmatpush1.msra.mxu0 %v45
  %103 = vmatprep.subr.mxu0 %v42
  %104 = vmatpush1.msra.mxu0 %v41
  %105 = vmatprep.subr.mxu0 %v38
  %106 = vmatpush1.msra.mxu0 %v37
  %107 = vmatprep.subr.mxu0 %v34
  %108 = vmatpush1.msra.mxu0 %v33
  %109 = vmatprep.subr.mxu0 %v30
  %110 = vmatpush1.msra.mxu0 %v29
  %111 = vmatprep.subr.mxu0 %v26
  %112 = vmatpush1.msra.mxu0 %v25
  %113 = vmatprep.subr.mxu0 %v22
  %114 = vmatpush1.msra.mxu0 %v21
  %115 = vmatprep.subr.mxu0 %v18
  %116 = vmatpush1.msra.mxu0 %v17
  %117 = vmatprep.subr.mxu0 0.0
  %118 = vmatpush2.msra.mxu0 0.0
  %119 = vmatprep.subr.mxu0 0.0
  %120 = vmatpush2.msra.mxu0 0.0
  %121 = vmatprep.subr.mxu0 0.0
  %122 = vmatpush2.msra.mxu0 0.0
  %123 = vmatprep.subr.mxu0 0.0
  %124 = vmatpush2.msra.mxu0 0.0
  %125 = vmatprep.subr.mxu0 0.0
  %126 = vmatpush2.msra.mxu0 0.0
  %127 = vmatprep.subr.mxu0 0.0
  %128 = vmatpush2.msra.mxu0 0.0
  %129 = vmatprep.subr.mxu0 0.0
  %130 = vmatpush2.msra.mxu0 0.0
  %131 = vmatprep.subr.mxu0 0.0
  %132 = vmatpush2.msra.mxu0 0.0
  %133 = vmatprep.subr.mxu0 0.0
  %134 = vmatpush2.msra.mxu0 0.0
  %135 = vmatprep.subr.mxu0 0.0
  %136 = vmatpush2.msra.mxu0 0.0
  %137 = vmatprep.subr.mxu0 0.0
  %138 = vmatpush2.msra.mxu0 0.0
  %139 = vmatprep.subr.mxu0 0.0
  %140 = vmatpush2.msra.mxu0 0.0
  %141 = vmatprep.subr.mxu0 0.0
  %142 = vmatpush2.msra.mxu0 0.0
  %143 = vmatprep.subr.mxu0 0.0
  %144 = vmatpush2.msra.mxu0 0.0
  %145 = vmatprep.subr.mxu0 0.0
  %146 = vmatpush2.msra.mxu0 0.0
  %147 = vmatprep.subr.mxu0 0.0
  %148 = vmatpush2.msra.mxu0 0.0
  %149 = vmatprep.mubr.f32.mxu0 0.0
  %150 = vmatmul.mubr.f32.gmra.mxu0 0.0
  %v151 = vpop.f32.mrf.mxu0
  %v152 = vadd.f32 0.0, %v151
  %v153 = vpop.f32.mrf.mxu0
  %v154 = vadd.f32 0.0, %v153
  %155 = vdwg.mxu0
  %156 = vmatprep.subr.mxu0 %v80
  %157 = vmatpush1.msra.mxu0 %v79
  %158 = vmatprep.subr.mxu0 %v76
  %159 = vmatpush1.msra.mxu0 %v75
  %160 = vmatprep.subr.mxu0 %v72
  %161 = vmatpush1.msra.mxu0 %v71
  %162 = vmatprep.subr.mxu0 %v68
  %163 = vmatpush1.msra.mxu0 %v67
  %164 = vmatprep.subr.mxu0 %v64
  %165 = vmatpush1.msra.mxu0 %v63
  %166 = vmatprep.subr.mxu0 %v60
  %167 = vmatpush1.msra.mxu0 %v59
  %168 = vmatprep.subr.mxu0 %v56
  %169 = vmatpush1.msra.mxu0 %v55
  %170 = vmatprep.subr.mxu0 %v52
  %171 = vmatpush1.msra.mxu0 %v51
  %172 = vmatprep.subr.mxu0 %v48
  %173 = vmatpush1.msra.mxu0 %v47
  %174 = vmatprep.subr.mxu0 %v44
  %175 = vmatpush1.msra.mxu0 %v43
  %176 = vmatprep.subr.mxu0 %v40
  %177 = vmatpush1.msra.mxu0 %v39
  %178 = vmatprep.subr.mxu0 %v36
  %179 = vmatpush1.msra.mxu0 %v35
  %180 = vmatprep.subr.mxu0 %v32
  %181 = vmatpush1.msra.mxu0 %v31
  %182 = vmatprep.subr.mxu0 %v28
  %183 = vmatpush1.msra.mxu0 %v27
  %184 = vmatprep.subr.mxu0 %v24
  %185 = vmatpush1.msra.mxu0 %v23
  %186 = vmatprep.subr.mxu0 %v20
  %187 = vmatpush1.msra.mxu0 %v19
  %188 = vmatprep.subr.mxu0 0.0
  %189 = vmatpush2.msra.mxu0 0.0
  %190 = vmatprep.subr.mxu0 0.0
  %191 = vmatpush2.msra.mxu0 0.0
  %192 = vmatprep.subr.mxu0 0.0
  %193 = vmatpush2.msra.mxu0 0.0
  %194 = vmatprep.subr.mxu0 0.0
  %195 = vmatpush2.msra.mxu0 0.0
  %196 = vmatprep.subr.mxu0 0.0
  %197 = vmatpush2.msra.mxu0 0.0
  %198 = vmatprep.subr.mxu0 0.0
  %199 = vmatpush2.msra.mxu0 0.0
  %200 = vmatprep.subr.mxu0 0.0
  %201 = vmatpush2.msra.mxu0 0.0
  %202 = vmatprep.subr.mxu0 0.0
  %203 = vmatpush2.msra.mxu0 0.0
  %204 = vmatprep.subr.mxu0 0.0
  %205 = vmatpush2.msra.mxu0 0.0
  %206 = vmatprep.subr.mxu0 0.0
  %207 = vmatpush2.msra.mxu0 0.0
  %208 = vmatprep.subr.mxu0 0.0
  %209 = vmatpush2.msra.mxu0 0.0
  %210 = vmatprep.subr.mxu0 0.0
  %211 = vmatpush2.msra.mxu0 0.0
  %212 = vmatprep.subr.mxu0 0.0
  %213 = vmatpush2.msra.mxu0 0.0
  %214 = vmatprep.subr.mxu0 0.0
  %215 = vmatpush2.msra.mxu0 0.0
  %216 = vmatprep.subr.mxu0 0.0
  %217 = vmatpush2.msra.mxu0 0.0
  %218 = vmatprep.subr.mxu0 0.0
  %219 = vmatpush2.msra.mxu0 0.0
  %220 = vmatprep.mubr.f32.mxu0 0.0
  %221 = vmatmul.mubr.f32.gmra.mxu0 0.0
  %v222 = vpop.f32.mrf.mxu0
  %v223 = vadd.f32 0.0, %v222
  %v224 = vpop.f32.mrf.mxu0
  %v225 = vadd.f32 0.0, %v224
  %226 = vdwg.mxu0
  %v227 = vadd.f32 %v81, %v152
  %v228 = vadd.f32 %v82, %v154
  %v229 = vadd.f32 %v83, %v223
  %v230 = vadd.f32 %v84, %v225
  %v231 = vxor.u32 %v227, 2147483648
  %v232 = vxor.u32 %v228, 2147483648
  %v233 = vxor.u32 %v229, 2147483648
  %v234 = vmul.f32 %v231, 1.442695
  %v235 = vpow.pop %v234
  %v236 = vmul.f32 %v232, 1.442695
  %v237 = vpow.pop %v236
  %v238 = vmul.f32 %v233, 1.442695
  %v239 = vpow.pop %v238
  %v240 = vadd.f32 %v235, 1.0
  %v241 = vadd.f32 %v237, 1.0
  %v242 = vadd.f32 %v239, 1.0
  %v243 = vrcp.pop %v240
  %v244 = vmul.f32 1.0, %v243
  %v245 = vrcp.pop %v241
  %v246 = vmul.f32 1.0, %v245
  %v247 = vrcp.pop %v242
  %v248 = vmul.f32 1.0, %v247
  %v249 = vtanh.pop %v230
  %v250 = vmul.f32 %v246, 0.0
  %v251 = vmul.f32 %v244, %v249
  %v252 = vadd.f32 %v250, %v251
  %v253 = vtanh.pop %v252
  %v254 = vmul.f32 %v248, %v253
  %vm255 = vcmp.gt.s32.totalorder %v16, 0
  %v256 = vsel %vm255, 1, 0
  %257 = vset.pattern.permute.xlu0 0
  %258 = vperm.xlu0 %257, %v256
  %v259 = vpop.permute.xlu0 %258
  %vm260 = vcmp.eq.s32.totalorder %v259, 1
  %v261 = vsel %vm260, %v254, 0.0
  %v262 = vsel %vm260, %v252, 0.0
  %s263 = scalar_lea.vmem %s1, 32
  %v264 = vld [vmem:[%s263] sm:$0xff]
  %v265 = vld [vmem:[%s263 + $0x8] sm:$0xff]
  %v266 = vld [vmem:[%s263 + $0x10] sm:$0xff]
  %v267 = vld [vmem:[%s263 + $0x18] sm:$0xff]
  %268 = vmatprep.subr.mxu0 %v78
  %269 = vmatpush1.msra.mxu0 %v77
  %270 = vmatprep.subr.mxu0 %v74
  %271 = vmatpush1.msra.mxu0 %v73
  %272 = vmatprep.subr.mxu0 %v70
  %273 = vmatpush1.msra.mxu0 %v69
  %274 = vmatprep.subr.mxu0 %v66
  %275 = vmatpush1.msra.mxu0 %v65
  %276 = vmatprep.subr.mxu0 %v62
  %277 = vmatpush1.msra.mxu0 %v61
  %278 = vmatprep.subr.mxu0 %v58
  %279 = vmatpush1.msra.mxu0 %v57
  %280 = vmatprep.subr.mxu0 %v54
  %281 = vmatpush1.msra.mxu0 %v53
  %282 = vmatprep.subr.mxu0 %v50
  %283 = vmatpush1.msra.mxu0 %v49
  %284 = vmatprep.subr.mxu0 %v46
  %285 = vmatpush1.msra.mxu0 %v45
  %286 = vmatprep.subr.mxu0 %v42
  %287 = vmatpush1.msra.mxu0 %v41
  %288 = vmatprep.subr.mxu0 %v38
  %289 = vmatpush1.msra.mxu0 %v37
  %290 = vmatprep.subr.mxu0 %v34
  %291 = vmatpush1.msra.mxu0 %v33
  %292 = vmatprep.subr.mxu0 %v30
  %293 = vmatpush1.msra.mxu0 %v29
  %294 = vmatprep.subr.mxu0 %v26
  %295 = vmatpush1.msra.mxu0 %v25
  %296 = vmatprep.subr.mxu0 %v22
  %297 = vmatpush1.msra.mxu0 %v21
  %298 = vmatprep.subr.mxu0 %v18
  %299 = vmatpush1.msra.mxu0 %v17
  %300 = vmatprep.subr.mxu0 0.0
  %301 = vmatpush2.msra.mxu0 0.0
  %302 = vmatprep.subr.mxu0 0.0
  %303 = vmatpush2.msra.mxu0 0.0
  %304 = vmatprep.subr.mxu0 0.0
  %305 = vmatpush2.msra.mxu0 0.0
  %306 = vmatprep.subr.mxu0 0.0
  %307 = vmatpush2.msra.mxu0 0.0
  %308 = vmatprep.subr.mxu0 0.0
  %309 = vmatpush2.msra.mxu0 0.0
  %310 = vmatprep.subr.mxu0 0.0
  %311 = vmatpush2.msra.mxu0 0.0
  %312 = vmatprep.subr.mxu0 0.0
  %313 = vmatpush2.msra.mxu0 0.0
  %314 = vmatprep.subr.mxu0 0.0
  %315 = vmatpush2.msra.mxu0 0.0
  %316 = vmatprep.subr.mxu0 0.0
  %317 = vmatpush2.msra.mxu0 0.0
  %318 = vmatprep.subr.mxu0 0.0
  %319 = vmatpush2.msra.mxu0 0.0
  %320 = vmatprep.subr.mxu0 0.0
  %321 = vmatpush2.msra.mxu0 0.0
  %322 = vmatprep.subr.mxu0 0.0
  %323 = vmatpush2.msra.mxu0 0.0
  %324 = vmatprep.subr.mxu0 0.0
  %325 = vmatpush2.msra.mxu0 0.0
  %326 = vmatprep.subr.mxu0 0.0
  %327 = vmatpush2.msra.mxu0 0.0
  %328 = vmatprep.subr.mxu0 0.0
  %329 = vmatpush2.msra.mxu0 0.0
  %330 = vmatprep.subr.mxu0 0.0
  %331 = vmatpush2.msra.mxu0 0.0
  %332 = vmatprep.mubr.f32.mxu0 0.0
  %333 = vmatmul.mubr.f32.gmra.mxu0 %v261
  %v334 = vpop.f32.mrf.mxu0
  %v335 = vadd.f32 0.0, %v334
  %v336 = vpop.f32.mrf.mxu0
  %v337 = vadd.f32 0.0, %v336
  %338 = vdwg.mxu0
  %339 = vmatprep.subr.mxu0 %v80
  %340 = vmatpush1.msra.mxu0 %v79
  %341 = vmatprep.subr.mxu0 %v76
  %342 = vmatpush1.msra.mxu0 %v75
  %343 = vmatprep.subr.mxu0 %v72
  %344 = vmatpush1.msra.mxu0 %v71
  %345 = vmatprep.subr.mxu0 %v68
  %346 = vmatpush1.msra.mxu0 %v67
  %347 = vmatprep.subr.mxu0 %v64
  %348 = vmatpush1.msra.mxu0 %v63
  %349 = vmatprep.subr.mxu0 %v60
  %350 = vmatpush1.msra.mxu0 %v59
  %351 = vmatprep.subr.mxu0 %v56
  %352 = vmatpush1.msra.mxu0 %v55
  %353 = vmatprep.subr.mxu0 %v52
  %354 = vmatpush1.msra.mxu0 %v51
  %355 = vmatprep.subr.mxu0 %v48
  %356 = vmatpush1.msra.mxu0 %v47
  %357 = vmatprep.subr.mxu0 %v44
  %358 = vmatpush1.msra.mxu0 %v43
  %359 = vmatprep.subr.mxu0 %v40
  %360 = vmatpush1.msra.mxu0 %v39
  %361 = vmatprep.subr.mxu0 %v36
  %362 = vmatpush1.msra.mxu0 %v35
  %363 = vmatprep.subr.mxu0 %v32
  %364 = vmatpush1.msra.mxu0 %v31
  %365 = vmatprep.subr.mxu0 %v28
  %366 = vmatpush1.msra.mxu0 %v27
  %367 = vmatprep.subr.mxu0 %v24
  %368 = vmatpush1.msra.mxu0 %v23
  %369 = vmatprep.subr.mxu0 %v20
  %370 = vmatpush1.msra.mxu0 %v19
  %371 = vmatprep.subr.mxu0 0.0
  %372 = vmatpush2.msra.mxu0 0.0
  %373 = vmatprep.subr.mxu0 0.0
  %374 = vmatpush2.msra.mxu0 0.0
  %375 = vmatprep.subr.mxu0 0.0
  %376 = vmatpush2.msra.mxu0 0.0
  %377 = vmatprep.subr.mxu0 0.0
  %378 = vmatpush2.msra.mxu0 0.0
  %379 = vmatprep.subr.mxu0 0.0
  %380 = vmatpush2.msra.mxu0 0.0
  %381 = vmatprep.subr.mxu0 0.0
  %382 = vmatpush2.msra.mxu0 0.0
  %383 = vmatprep.subr.mxu0 0.0
  %384 = vmatpush2.msra.mxu0 0.0
  %385 = vmatprep.subr.mxu0 0.0
  %386 = vmatpush2.msra.mxu0 0.0
  %387 = vmatprep.subr.mxu0 0.0
  %388 = vmatpush2.msra.mxu0 0.0
  %389 = vmatprep.subr.mxu0 0.0
  %390 = vmatpush2.msra.mxu0 0.0
  %391 = vmatprep.subr.mxu0 0.0
  %392 = vmatpush2.msra.mxu0 0.0
  %393 = vmatprep.subr.mxu0 0.0
  %394 = vmatpush2.msra.mxu0 0.0
  %395 = vmatprep.subr.mxu0 0.0
  %396 = vmatpush2.msra.mxu0 0.0
  %397 = vmatprep.subr.mxu0 0.0
  %398 = vmatpush2.msra.mxu0 0.0
  %399 = vmatprep.subr.mxu0 0.0
  %400 = vmatpush2.msra.mxu0 0.0
  %401 = vmatprep.subr.mxu0 0.0
  %402 = vmatpush2.msra.mxu0 0.0
  %403 = vmatprep.mubr.f32.mxu0 0.0
  %404 = vmatmul.mubr.f32.gmra.mxu0 %v261
  %v405 = vpop.f32.mrf.mxu0
  %v406 = vadd.f32 0.0, %v405
  %v407 = vpop.f32.mrf.mxu0
  %v408 = vadd.f32 0.0, %v407
  %409 = vdwg.mxu0
  %v410 = vadd.f32 %v264, %v335
  %v411 = vadd.f32 %v265, %v337
  %v412 = vadd.f32 %v266, %v406
  %v413 = vadd.f32 %v267, %v408
  %v414 = vxor.u32 %v410, 2147483648
  %v415 = vxor.u32 %v411, 2147483648
  %v416 = vxor.u32 %v412, 2147483648
  %v417 = vmul.f32 %v414, 1.442695
  %v418 = vpow.pop %v417
  %v419 = vmul.f32 %v415, 1.442695
  %v420 = vpow.pop %v419
  %v421 = vmul.f32 %v416, 1.442695
  %v422 = vpow.pop %v421
  %v423 = vadd.f32 %v418, 1.0
  %v424 = vadd.f32 %v420, 1.0
  %v425 = vadd.f32 %v422, 1.0
  %v426 = vrcp.pop %v423
  %v427 = vmul.f32 1.0, %v426
  %v428 = vrcp.pop %v424
  %v429 = vmul.f32 1.0, %v428
  %v430 = vrcp.pop %v425
  %v431 = vmul.f32 1.0, %v430
  %v432 = vtanh.pop %v413
  %v433 = vmul.f32 %v429, %v262
  %v434 = vmul.f32 %v427, %v432
  %v435 = vadd.f32 %v433, %v434
  %v436 = vtanh.pop %v435
  %v437 = vmul.f32 %v431, %v436
  %vm438 = vcmp.gt.s32.totalorder %v16, 1
  %v439 = vsel %vm438, 1, 0
  %440 = vset.pattern.permute.xlu0 0
  %441 = vperm.xlu0 %440, %v439
  %v442 = vpop.permute.xlu0 %441
  %vm443 = vcmp.eq.s32.totalorder %v442, 1
  %v444 = vsel %vm443, %v437, %v261
  %v445 = vsel %vm443, %v435, %v262
  %s446 = scalar_lea.vmem %s1, 64
  %v447 = vld [vmem:[%s446] sm:$0xff]
  %v448 = vld [vmem:[%s446 + $0x8] sm:$0xff]
  %v449 = vld [vmem:[%s446 + $0x10] sm:$0xff]
  %v450 = vld [vmem:[%s446 + $0x18] sm:$0xff]
  %451 = vmatprep.subr.mxu0 %v78
  %452 = vmatpush1.msra.mxu0 %v77
  %453 = vmatprep.subr.mxu0 %v74
  %454 = vmatpush1.msra.mxu0 %v73
  %455 = vmatprep.subr.mxu0 %v70
  %456 = vmatpush1.msra.mxu0 %v69
  %457 = vmatprep.subr.mxu0 %v66
  %458 = vmatpush1.msra.mxu0 %v65
  %459 = vmatprep.subr.mxu0 %v62
  %460 = vmatpush1.msra.mxu0 %v61
  %461 = vmatprep.subr.mxu0 %v58
  %462 = vmatpush1.msra.mxu0 %v57
  %463 = vmatprep.subr.mxu0 %v54
  %464 = vmatpush1.msra.mxu0 %v53
  %465 = vmatprep.subr.mxu0 %v50
  %466 = vmatpush1.msra.mxu0 %v49
  %467 = vmatprep.subr.mxu0 %v46
  %468 = vmatpush1.msra.mxu0 %v45
  %469 = vmatprep.subr.mxu0 %v42
  %470 = vmatpush1.msra.mxu0 %v41
  %471 = vmatprep.subr.mxu0 %v38
  %472 = vmatpush1.msra.mxu0 %v37
  %473 = vmatprep.subr.mxu0 %v34
  %474 = vmatpush1.msra.mxu0 %v33
  %475 = vmatprep.subr.mxu0 %v30
  %476 = vmatpush1.msra.mxu0 %v29
  %477 = vmatprep.subr.mxu0 %v26
  %478 = vmatpush1.msra.mxu0 %v25
  %479 = vmatprep.subr.mxu0 %v22
  %480 = vmatpush1.msra.mxu0 %v21
  %481 = vmatprep.subr.mxu0 %v18
  %482 = vmatpush1.msra.mxu0 %v17
  %483 = vmatprep.subr.mxu0 0.0
  %484 = vmatpush2.msra.mxu0 0.0
  %485 = vmatprep.subr.mxu0 0.0
  %486 = vmatpush2.msra.mxu0 0.0
  %487 = vmatprep.subr.mxu0 0.0
  %488 = vmatpush2.msra.mxu0 0.0
  %489 = vmatprep.subr.mxu0 0.0
  %490 = vmatpush2.msra.mxu0 0.0
  %491 = vmatprep.subr.mxu0 0.0
  %492 = vmatpush2.msra.mxu0 0.0
  %493 = vmatprep.subr.mxu0 0.0
  %494 = vmatpush2.msra.mxu0 0.0
  %495 = vmatprep.subr.mxu0 0.0
  %496 = vmatpush2.msra.mxu0 0.0
  %497 = vmatprep.subr.mxu0 0.0
  %498 = vmatpush2.msra.mxu0 0.0
  %499 = vmatprep.subr.mxu0 0.0
  %500 = vmatpush2.msra.mxu0 0.0
  %501 = vmatprep.subr.mxu0 0.0
  %502 = vmatpush2.msra.mxu0 0.0
  %503 = vmatprep.subr.mxu0 0.0
  %504 = vmatpush2.msra.mxu0 0.0
  %505 = vmatprep.subr.mxu0 0.0
  %506 = vmatpush2.msra.mxu0 0.0
  %507 = vmatprep.subr.mxu0 0.0
  %508 = vmatpush2.msra.mxu0 0.0
  %509 = vmatprep.subr.mxu0 0.0
  %510 = vmatpush2.msra.mxu0 0.0
  %511 = vmatprep.subr.mxu0 0.0
  %512 = vmatpush2.msra.mxu0 0.0
  %513 = vmatprep.subr.mxu0 0.0
  %514 = vmatpush2.msra.mxu0 0.0
  %515 = vmatprep.mubr.f32.mxu0 0.0
  %516 = vmatmul.mubr.f32.gmra.mxu0 %v444
  %v517 = vpop.f32.mrf.mxu0
  %v518 = vadd.f32 0.0, %v517
  %v519 = vpop.f32.mrf.mxu0
  %v520 = vadd.f32 0.0, %v519
  %521 = vdwg.mxu0
  %522 = vmatprep.subr.mxu0 %v80
  %523 = vmatpush1.msra.mxu0 %v79
  %524 = vmatprep.subr.mxu0 %v76
  %525 = vmatpush1.msra.mxu0 %v75
  %526 = vmatprep.subr.mxu0 %v72
  %527 = vmatpush1.msra.mxu0 %v71
  %528 = vmatprep.subr.mxu0 %v68
  %529 = vmatpush1.msra.mxu0 %v67
  %530 = vmatprep.subr.mxu0 %v64
  %531 = vmatpush1.msra.mxu0 %v63
  %532 = vmatprep.subr.mxu0 %v60
  %533 = vmatpush1.msra.mxu0 %v59
  %534 = vmatprep.subr.mxu0 %v56
  %535 = vmatpush1.msra.mxu0 %v55
  %536 = vmatprep.subr.mxu0 %v52
  %537 = vmatpush1.msra.mxu0 %v51
  %538 = vmatprep.subr.mxu0 %v48
  %539 = vmatpush1.msra.mxu0 %v47
  %540 = vmatprep.subr.mxu0 %v44
  %541 = vmatpush1.msra.mxu0 %v43
  %542 = vmatprep.subr.mxu0 %v40
  %543 = vmatpush1.msra.mxu0 %v39
  %544 = vmatprep.subr.mxu0 %v36
  %545 = vmatpush1.msra.mxu0 %v35
  %546 = vmatprep.subr.mxu0 %v32
  %547 = vmatpush1.msra.mxu0 %v31
  %548 = vmatprep.subr.mxu0 %v28
  %549 = vmatpush1.msra.mxu0 %v27
  %550 = vmatprep.subr.mxu0 %v24
  %551 = vmatpush1.msra.mxu0 %v23
  %552 = vmatprep.subr.mxu0 %v20
  %553 = vmatpush1.msra.mxu0 %v19
  %554 = vmatprep.subr.mxu0 0.0
  %555 = vmatpush2.msra.mxu0 0.0
  %556 = vmatprep.subr.mxu0 0.0
  %557 = vmatpush2.msra.mxu0 0.0
  %558 = vmatprep.subr.mxu0 0.0
  %559 = vmatpush2.msra.mxu0 0.0
  %560 = vmatprep.subr.mxu0 0.0
  %561 = vmatpush2.msra.mxu0 0.0
  %562 = vmatprep.subr.mxu0 0.0
  %563 = vmatpush2.msra.mxu0 0.0
  %564 = vmatprep.subr.mxu0 0.0
  %565 = vmatpush2.msra.mxu0 0.0
  %566 = vmatprep.subr.mxu0 0.0
  %567 = vmatpush2.msra.mxu0 0.0
  %568 = vmatprep.subr.mxu0 0.0
  %569 = vmatpush2.msra.mxu0 0.0
  %570 = vmatprep.subr.mxu0 0.0
  %571 = vmatpush2.msra.mxu0 0.0
  %572 = vmatprep.subr.mxu0 0.0
  %573 = vmatpush2.msra.mxu0 0.0
  %574 = vmatprep.subr.mxu0 0.0
  %575 = vmatpush2.msra.mxu0 0.0
  %576 = vmatprep.subr.mxu0 0.0
  %577 = vmatpush2.msra.mxu0 0.0
  %578 = vmatprep.subr.mxu0 0.0
  %579 = vmatpush2.msra.mxu0 0.0
  %580 = vmatprep.subr.mxu0 0.0
  %581 = vmatpush2.msra.mxu0 0.0
  %582 = vmatprep.subr.mxu0 0.0
  %583 = vmatpush2.msra.mxu0 0.0
  %584 = vmatprep.subr.mxu0 0.0
  %585 = vmatpush2.msra.mxu0 0.0
  %586 = vmatprep.mubr.f32.mxu0 0.0
  %587 = vmatmul.mubr.f32.gmra.mxu0 %v444
  %v588 = vpop.f32.mrf.mxu0
  %v589 = vadd.f32 0.0, %v588
  %v590 = vpop.f32.mrf.mxu0
  %v591 = vadd.f32 0.0, %v590
  %592 = vdwg.mxu0
  %v593 = vadd.f32 %v447, %v518
  %v594 = vadd.f32 %v448, %v520
  %v595 = vadd.f32 %v449, %v589
  %v596 = vadd.f32 %v450, %v591
  %v597 = vxor.u32 %v593, 2147483648
  %v598 = vxor.u32 %v594, 2147483648
  %v599 = vxor.u32 %v595, 2147483648
  %v600 = vmul.f32 %v597, 1.442695
  %v601 = vpow.pop %v600
  %v602 = vmul.f32 %v598, 1.442695
  %v603 = vpow.pop %v602
  %v604 = vmul.f32 %v599, 1.442695
  %v605 = vpow.pop %v604
  %v606 = vadd.f32 %v601, 1.0
  %v607 = vadd.f32 %v603, 1.0
  %v608 = vadd.f32 %v605, 1.0
  %v609 = vrcp.pop %v606
  %v610 = vmul.f32 1.0, %v609
  %v611 = vrcp.pop %v607
  %v612 = vmul.f32 1.0, %v611
  %v613 = vrcp.pop %v608
  %v614 = vmul.f32 1.0, %v613
  %v615 = vtanh.pop %v596
  %v616 = vmul.f32 %v612, %v445
  %v617 = vmul.f32 %v610, %v615
  %v618 = vadd.f32 %v616, %v617
  %v619 = vtanh.pop %v618
  %v620 = vmul.f32 %v614, %v619
  %vm621 = vcmp.gt.s32.totalorder %v16, 2
  %v622 = vsel %vm621, 1, 0
  %623 = vset.pattern.permute.xlu0 0
  %624 = vperm.xlu0 %623, %v622
  %v625 = vpop.permute.xlu0 %624
  %vm626 = vcmp.eq.s32.totalorder %v625, 1
  %v627 = vsel %vm626, %v620, %v444
  %v628 = vsel %vm626, %v618, %v445
  %s629 = scalar_lea.vmem %s1, 96
  %v630 = vld [vmem:[%s629] sm:$0xff]
  %v631 = vld [vmem:[%s629 + $0x8] sm:$0xff]
  %v632 = vld [vmem:[%s629 + $0x10] sm:$0xff]
  %v633 = vld [vmem:[%s629 + $0x18] sm:$0xff]
  %634 = vmatprep.subr.mxu0 %v78
  %635 = vmatpush1.msra.mxu0 %v77
  %636 = vmatprep.subr.mxu0 %v74
  %637 = vmatpush1.msra.mxu0 %v73
  %638 = vmatprep.subr.mxu0 %v70
  %639 = vmatpush1.msra.mxu0 %v69
  %640 = vmatprep.subr.mxu0 %v66
  %641 = vmatpush1.msra.mxu0 %v65
  %642 = vmatprep.subr.mxu0 %v62
  %643 = vmatpush1.msra.mxu0 %v61
  %644 = vmatprep.subr.mxu0 %v58
  %645 = vmatpush1.msra.mxu0 %v57
  %646 = vmatprep.subr.mxu0 %v54
  %647 = vmatpush1.msra.mxu0 %v53
  %648 = vmatprep.subr.mxu0 %v50
  %649 = vmatpush1.msra.mxu0 %v49
  %650 = vmatprep.subr.mxu0 %v46
  %651 = vmatpush1.msra.mxu0 %v45
  %652 = vmatprep.subr.mxu0 %v42
  %653 = vmatpush1.msra.mxu0 %v41
  %654 = vmatprep.subr.mxu0 %v38
  %655 = vmatpush1.msra.mxu0 %v37
  %656 = vmatprep.subr.mxu0 %v34
  %657 = vmatpush1.msra.mxu0 %v33
  %658 = vmatprep.subr.mxu0 %v30
  %659 = vmatpush1.msra.mxu0 %v29
  %660 = vmatprep.subr.mxu0 %v26
  %661 = vmatpush1.msra.mxu0 %v25
  %662 = vmatprep.subr.mxu0 %v22
  %663 = vmatpush1.msra.mxu0 %v21
  %664 = vmatprep.subr.mxu0 %v18
  %665 = vmatpush1.msra.mxu0 %v17
  %666 = vmatprep.subr.mxu0 0.0
  %667 = vmatpush2.msra.mxu0 0.0
  %668 = vmatprep.subr.mxu0 0.0
  %669 = vmatpush2.msra.mxu0 0.0
  %670 = vmatprep.subr.mxu0 0.0
  %671 = vmatpush2.msra.mxu0 0.0
  %672 = vmatprep.subr.mxu0 0.0
  %673 = vmatpush2.msra.mxu0 0.0
  %674 = vmatprep.subr.mxu0 0.0
  %675 = vmatpush2.msra.mxu0 0.0
  %676 = vmatprep.subr.mxu0 0.0
  %677 = vmatpush2.msra.mxu0 0.0
  %678 = vmatprep.subr.mxu0 0.0
  %679 = vmatpush2.msra.mxu0 0.0
  %680 = vmatprep.subr.mxu0 0.0
  %681 = vmatpush2.msra.mxu0 0.0
  %682 = vmatprep.subr.mxu0 0.0
  %683 = vmatpush2.msra.mxu0 0.0
  %684 = vmatprep.subr.mxu0 0.0
  %685 = vmatpush2.msra.mxu0 0.0
  %686 = vmatprep.subr.mxu0 0.0
  %687 = vmatpush2.msra.mxu0 0.0
  %688 = vmatprep.subr.mxu0 0.0
  %689 = vmatpush2.msra.mxu0 0.0
  %690 = vmatprep.subr.mxu0 0.0
  %691 = vmatpush2.msra.mxu0 0.0
  %692 = vmatprep.subr.mxu0 0.0
  %693 = vmatpush2.msra.mxu0 0.0
  %694 = vmatprep.subr.mxu0 0.0
  %695 = vmatpush2.msra.mxu0 0.0
  %696 = vmatprep.subr.mxu0 0.0
  %697 = vmatpush2.msra.mxu0 0.0
  %698 = vmatprep.mubr.f32.mxu0 0.0
  %699 = vmatmul.mubr.f32.gmra.mxu0 %v627
  %v700 = vpop.f32.mrf.mxu0
  %v701 = vadd.f32 0.0, %v700
  %v702 = vpop.f32.mrf.mxu0
  %v703 = vadd.f32 0.0, %v702
  %704 = vdwg.mxu0
  %705 = vmatprep.subr.mxu0 %v80
  %706 = vmatpush1.msra.mxu0 %v79
  %707 = vmatprep.subr.mxu0 %v76
  %708 = vmatpush1.msra.mxu0 %v75
  %709 = vmatprep.subr.mxu0 %v72
  %710 = vmatpush1.msra.mxu0 %v71
  %711 = vmatprep.subr.mxu0 %v68
  %712 = vmatpush1.msra.mxu0 %v67
  %713 = vmatprep.subr.mxu0 %v64
  %714 = vmatpush1.msra.mxu0 %v63
  %715 = vmatprep.subr.mxu0 %v60
  %716 = vmatpush1.msra.mxu0 %v59
  %717 = vmatprep.subr.mxu0 %v56
  %718 = vmatpush1.msra.mxu0 %v55
  %719 = vmatprep.subr.mxu0 %v52
  %720 = vmatpush1.msra.mxu0 %v51
  %721 = vmatprep.subr.mxu0 %v48
  %722 = vmatpush1.msra.mxu0 %v47
  %723 = vmatprep.subr.mxu0 %v44
  %724 = vmatpush1.msra.mxu0 %v43
  %725 = vmatprep.subr.mxu0 %v40
  %726 = vmatpush1.msra.mxu0 %v39
  %727 = vmatprep.subr.mxu0 %v36
  %728 = vmatpush1.msra.mxu0 %v35
  %729 = vmatprep.subr.mxu0 %v32
  %730 = vmatpush1.msra.mxu0 %v31
  %731 = vmatprep.subr.mxu0 %v28
  %732 = vmatpush1.msra.mxu0 %v27
  %733 = vmatprep.subr.mxu0 %v24
  %734 = vmatpush1.msra.mxu0 %v23
  %735 = vmatprep.subr.mxu0 %v20
  %736 = vmatpush1.msra.mxu0 %v19
  %737 = vmatprep.subr.mxu0 0.0
  %738 = vmatpush2.msra.mxu0 0.0
  %739 = vmatprep.subr.mxu0 0.0
  %740 = vmatpush2.msra.mxu0 0.0
  %741 = vmatprep.subr.mxu0 0.0
  %742 = vmatpush2.msra.mxu0 0.0
  %743 = vmatprep.subr.mxu0 0.0
  %744 = vmatpush2.msra.mxu0 0.0
  %745 = vmatprep.subr.mxu0 0.0
  %746 = vmatpush2.msra.mxu0 0.0
  %747 = vmatprep.subr.mxu0 0.0
  %748 = vmatpush2.msra.mxu0 0.0
  %749 = vmatprep.subr.mxu0 0.0
  %750 = vmatpush2.msra.mxu0 0.0
  %751 = vmatprep.subr.mxu0 0.0
  %752 = vmatpush2.msra.mxu0 0.0
  %753 = vmatprep.subr.mxu0 0.0
  %754 = vmatpush2.msra.mxu0 0.0
  %755 = vmatprep.subr.mxu0 0.0
  %756 = vmatpush2.msra.mxu0 0.0
  %757 = vmatprep.subr.mxu0 0.0
  %758 = vmatpush2.msra.mxu0 0.0
  %759 = vmatprep.subr.mxu0 0.0
  %760 = vmatpush2.msra.mxu0 0.0
  %761 = vmatprep.subr.mxu0 0.0
  %762 = vmatpush2.msra.mxu0 0.0
  %763 = vmatprep.subr.mxu0 0.0
  %764 = vmatpush2.msra.mxu0 0.0
  %765 = vmatprep.subr.mxu0 0.0
  %766 = vmatpush2.msra.mxu0 0.0
  %767 = vmatprep.subr.mxu0 0.0
  %768 = vmatpush2.msra.mxu0 0.0
  %769 = vmatprep.mubr.f32.mxu0 0.0
  %770 = vmatmul.mubr.f32.gmra.mxu0 %v627
  %v771 = vpop.f32.mrf.mxu0
  %v772 = vadd.f32 0.0, %v771
  %v773 = vpop.f32.mrf.mxu0
  %v774 = vadd.f32 0.0, %v773
  %775 = vdwg.mxu0
  %v776 = vadd.f32 %v630, %v701
  %v777 = vadd.f32 %v631, %v703
  %v778 = vadd.f32 %v632, %v772
  %v779 = vadd.f32 %v633, %v774
  %v780 = vxor.u32 %v776, 2147483648
  %v781 = vxor.u32 %v777, 2147483648
  %v782 = vxor.u32 %v778, 2147483648
  %v783 = vmul.f32 %v780, 1.442695
  %v784 = vpow.pop %v783
  %v785 = vmul.f32 %v781, 1.442695
  %v786 = vpow.pop %v785
  %v787 = vmul.f32 %v782, 1.442695
  %v788 = vpow.pop %v787
  %v789 = vadd.f32 %v784, 1.0
  %v790 = vadd.f32 %v786, 1.0
  %v791 = vadd.f32 %v788, 1.0
  %v792 = vrcp.pop %v789
  %v793 = vmul.f32 1.0, %v792
  %v794 = vrcp.pop %v790
  %v795 = vmul.f32 1.0, %v794
  %v796 = vrcp.pop %v791
  %v797 = vmul.f32 1.0, %v796
  %v798 = vtanh.pop %v779
  %v799 = vmul.f32 %v795, %v628
  %v800 = vmul.f32 %v793, %v798
  %v801 = vadd.f32 %v799, %v800
  %v802 = vtanh.pop %v801
  %v803 = vmul.f32 %v797, %v802
  %vm804 = vcmp.gt.s32.totalorder %v16, 3
  %v805 = vsel %vm804, 1, 0
  %806 = vset.pattern.permute.xlu0 0
  %807 = vperm.xlu0 %806, %v805
  %v808 = vpop.permute.xlu0 %807
  %vm809 = vcmp.eq.s32.totalorder %v808, 1
  %v810 = vsel %vm809, %v803, %v627
  %v811 = vsel %vm809, %v801, %v628
  %s812 = scalar_lea.vmem %s1, 128
  %v813 = vld [vmem:[%s812] sm:$0xff]
  %v814 = vld [vmem:[%s812 + $0x8] sm:$0xff]
  %v815 = vld [vmem:[%s812 + $0x10] sm:$0xff]
  %v816 = vld [vmem:[%s812 + $0x18] sm:$0xff]
  %817 = vmatprep.subr.mxu0 %v78
  %818 = vmatpush1.msra.mxu0 %v77
  %819 = vmatprep.subr.mxu0 %v74
  %820 = vmatpush1.msra.mxu0 %v73
  %821 = vmatprep.subr.mxu0 %v70
  %822 = vmatpush1.msra.mxu0 %v69
  %823 = vmatprep.subr.mxu0 %v66
  %824 = vmatpush1.msra.mxu0 %v65
  %825 = vmatprep.subr.mxu0 %v62
  %826 = vmatpush1.msra.mxu0 %v61
  %827 = vmatprep.subr.mxu0 %v58
  %828 = vmatpush1.msra.mxu0 %v57
  %829 = vmatprep.subr.mxu0 %v54
  %830 = vmatpush1.msra.mxu0 %v53
  %831 = vmatprep.subr.mxu0 %v50
  %832 = vmatpush1.msra.mxu0 %v49
  %833 = vmatprep.subr.mxu0 %v46
  %834 = vmatpush1.msra.mxu0 %v45
  %835 = vmatprep.subr.mxu0 %v42
  %836 = vmatpush1.msra.mxu0 %v41
  %837 = vmatprep.subr.mxu0 %v38
  %838 = vmatpush1.msra.mxu0 %v37
  %839 = vmatprep.subr.mxu0 %v34
  %840 = vmatpush1.msra.mxu0 %v33
  %841 = vmatprep.subr.mxu0 %v30
  %842 = vmatpush1.msra.mxu0 %v29
  %843 = vmatprep.subr.mxu0 %v26
  %844 = vmatpush1.msra.mxu0 %v25
  %845 = vmatprep.subr.mxu0 %v22
  %846 = vmatpush1.msra.mxu0 %v21
  %847 = vmatprep.subr.mxu0 %v18
  %848 = vmatpush1.msra.mxu0 %v17
  %849 = vmatprep.subr.mxu0 0.0
  %850 = vmatpush2.msra.mxu0 0.0
  %851 = vmatprep.subr.mxu0 0.0
  %852 = vmatpush2.msra.mxu0 0.0
  %853 = vmatprep.subr.mxu0 0.0
  %854 = vmatpush2.msra.mxu0 0.0
  %855 = vmatprep.subr.mxu0 0.0
  %856 = vmatpush2.msra.mxu0 0.0
  %857 = vmatprep.subr.mxu0 0.0
  %858 = vmatpush2.msra.mxu0 0.0
  %859 = vmatprep.subr.mxu0 0.0
  %860 = vmatpush2.msra.mxu0 0.0
  %861 = vmatprep.subr.mxu0 0.0
  %862 = vmatpush2.msra.mxu0 0.0
  %863 = vmatprep.subr.mxu0 0.0
  %864 = vmatpush2.msra.mxu0 0.0
  %865 = vmatprep.subr.mxu0 0.0
  %866 = vmatpush2.msra.mxu0 0.0
  %867 = vmatprep.subr.mxu0 0.0
  %868 = vmatpush2.msra.mxu0 0.0
  %869 = vmatprep.subr.mxu0 0.0
  %870 = vmatpush2.msra.mxu0 0.0
  %871 = vmatprep.subr.mxu0 0.0
  %872 = vmatpush2.msra.mxu0 0.0
  %873 = vmatprep.subr.mxu0 0.0
  %874 = vmatpush2.msra.mxu0 0.0
  %875 = vmatprep.subr.mxu0 0.0
  %876 = vmatpush2.msra.mxu0 0.0
  %877 = vmatprep.subr.mxu0 0.0
  %878 = vmatpush2.msra.mxu0 0.0
  %879 = vmatprep.subr.mxu0 0.0
  %880 = vmatpush2.msra.mxu0 0.0
  %881 = vmatprep.mubr.f32.mxu0 0.0
  %882 = vmatmul.mubr.f32.gmra.mxu0 %v810
  %v883 = vpop.f32.mrf.mxu0
  %v884 = vadd.f32 0.0, %v883
  %v885 = vpop.f32.mrf.mxu0
  %v886 = vadd.f32 0.0, %v885
  %887 = vdwg.mxu0
  %888 = vmatprep.subr.mxu0 %v80
  %889 = vmatpush1.msra.mxu0 %v79
  %890 = vmatprep.subr.mxu0 %v76
  %891 = vmatpush1.msra.mxu0 %v75
  %892 = vmatprep.subr.mxu0 %v72
  %893 = vmatpush1.msra.mxu0 %v71
  %894 = vmatprep.subr.mxu0 %v68
  %895 = vmatpush1.msra.mxu0 %v67
  %896 = vmatprep.subr.mxu0 %v64
  %897 = vmatpush1.msra.mxu0 %v63
  %898 = vmatprep.subr.mxu0 %v60
  %899 = vmatpush1.msra.mxu0 %v59
  %900 = vmatprep.subr.mxu0 %v56
  %901 = vmatpush1.msra.mxu0 %v55
  %902 = vmatprep.subr.mxu0 %v52
  %903 = vmatpush1.msra.mxu0 %v51
  %904 = vmatprep.subr.mxu0 %v48
  %905 = vmatpush1.msra.mxu0 %v47
  %906 = vmatprep.subr.mxu0 %v44
  %907 = vmatpush1.msra.mxu0 %v43
  %908 = vmatprep.subr.mxu0 %v40
  %909 = vmatpush1.msra.mxu0 %v39
  %910 = vmatprep.subr.mxu0 %v36
  %911 = vmatpush1.msra.mxu0 %v35
  %912 = vmatprep.subr.mxu0 %v32
  %913 = vmatpush1.msra.mxu0 %v31
  %914 = vmatprep.subr.mxu0 %v28
  %915 = vmatpush1.msra.mxu0 %v27
  %916 = vmatprep.subr.mxu0 %v24
  %917 = vmatpush1.msra.mxu0 %v23
  %918 = vmatprep.subr.mxu0 %v20
  %919 = vmatpush1.msra.mxu0 %v19
  %920 = vmatprep.subr.mxu0 0.0
  %921 = vmatpush2.msra.mxu0 0.0
  %922 = vmatprep.subr.mxu0 0.0
  %923 = vmatpush2.msra.mxu0 0.0
  %924 = vmatprep.subr.mxu0 0.0
  %925 = vmatpush2.msra.mxu0 0.0
  %926 = vmatprep.subr.mxu0 0.0
  %927 = vmatpush2.msra.mxu0 0.0
  %928 = vmatprep.subr.mxu0 0.0
  %929 = vmatpush2.msra.mxu0 0.0
  %930 = vmatprep.subr.mxu0 0.0
  %931 = vmatpush2.msra.mxu0 0.0
  %932 = vmatprep.subr.mxu0 0.0
  %933 = vmatpush2.msra.mxu0 0.0
  %934 = vmatprep.subr.mxu0 0.0
  %935 = vmatpush2.msra.mxu0 0.0
  %936 = vmatprep.subr.mxu0 0.0
  %937 = vmatpush2.msra.mxu0 0.0
  %938 = vmatprep.subr.mxu0 0.0
  %939 = vmatpush2.msra.mxu0 0.0
  %940 = vmatprep.subr.mxu0 0.0
  %941 = vmatpush2.msra.mxu0 0.0
  %942 = vmatprep.subr.mxu0 0.0
  %943 = vmatpush2.msra.mxu0 0.0
  %944 = vmatprep.subr.mxu0 0.0
  %945 = vmatpush2.msra.mxu0 0.0
  %946 = vmatprep.subr.mxu0 0.0
  %947 = vmatpush2.msra.mxu0 0.0
  %948 = vmatprep.subr.mxu0 0.0
  %949 = vmatpush2.msra.mxu0 0.0
  %950 = vmatprep.subr.mxu0 0.0
  %951 = vmatpush2.msra.mxu0 0.0
  %952 = vmatprep.mubr.f32.mxu0 0.0
  %953 = vmatmul.mubr.f32.gmra.mxu0 %v810
  %v954 = vpop.f32.mrf.mxu0
  %v955 = vadd.f32 0.0, %v954
  %v956 = vpop.f32.mrf.mxu0
  %v957 = vadd.f32 0.0, %v956
  %958 = vdwg.mxu0
  %v959 = vadd.f32 %v813, %v884
  %v960 = vadd.f32 %v814, %v886
  %v961 = vadd.f32 %v815, %v955
  %v962 = vadd.f32 %v816, %v957
  %v963 = vxor.u32 %v959, 2147483648
  %v964 = vxor.u32 %v960, 2147483648
  %v965 = vxor.u32 %v961, 2147483648
  %v966 = vmul.f32 %v963, 1.442695
  %v967 = vpow.pop %v966
  %v968 = vmul.f32 %v964, 1.442695
  %v969 = vpow.pop %v968
  %v970 = vmul.f32 %v965, 1.442695
  %v971 = vpow.pop %v970
  %v972 = vadd.f32 %v967, 1.0
  %v973 = vadd.f32 %v969, 1.0
  %v974 = vadd.f32 %v971, 1.0
  %v975 = vrcp.pop %v972
  %v976 = vmul.f32 1.0, %v975
  %v977 = vrcp.pop %v973
  %v978 = vmul.f32 1.0, %v977
  %v979 = vrcp.pop %v974
  %v980 = vmul.f32 1.0, %v979
  %v981 = vtanh.pop %v962
  %v982 = vmul.f32 %v978, %v811
  %v983 = vmul.f32 %v976, %v981
  %v984 = vadd.f32 %v982, %v983
  %v985 = vtanh.pop %v984
  %v986 = vmul.f32 %v980, %v985
  %vm987 = vcmp.gt.s32.totalorder %v16, 4
  %v988 = vsel %vm987, 1, 0
  %989 = vset.pattern.permute.xlu0 0
  %990 = vperm.xlu0 %989, %v988
  %v991 = vpop.permute.xlu0 %990
  %vm992 = vcmp.eq.s32.totalorder %v991, 1
  %v993 = vsel %vm992, %v986, %v810
  %v994 = vsel %vm992, %v984, %v811
  %s995 = scalar_lea.vmem %s1, 160
  %v996 = vld [vmem:[%s995] sm:$0xff]
  %v997 = vld [vmem:[%s995 + $0x8] sm:$0xff]
  %v998 = vld [vmem:[%s995 + $0x10] sm:$0xff]
  %v999 = vld [vmem:[%s995 + $0x18] sm:$0xff]
  %1000 = vmatprep.subr.mxu0 %v78
  %1001 = vmatpush1.msra.mxu0 %v77
  %1002 = vmatprep.subr.mxu0 %v74
  %1003 = vmatpush1.msra.mxu0 %v73
  %1004 = vmatprep.subr.mxu0 %v70
  %1005 = vmatpush1.msra.mxu0 %v69
  %1006 = vmatprep.subr.mxu0 %v66
  %1007 = vmatpush1.msra.mxu0 %v65
  %1008 = vmatprep.subr.mxu0 %v62
  %1009 = vmatpush1.msra.mxu0 %v61
  %1010 = vmatprep.subr.mxu0 %v58
  %1011 = vmatpush1.msra.mxu0 %v57
  %1012 = vmatprep.subr.mxu0 %v54
  %1013 = vmatpush1.msra.mxu0 %v53
  %1014 = vmatprep.subr.mxu0 %v50
  %1015 = vmatpush1.msra.mxu0 %v49
  %1016 = vmatprep.subr.mxu0 %v46
  %1017 = vmatpush1.msra.mxu0 %v45
  %1018 = vmatprep.subr.mxu0 %v42
  %1019 = vmatpush1.msra.mxu0 %v41
  %1020 = vmatprep.subr.mxu0 %v38
  %1021 = vmatpush1.msra.mxu0 %v37
  %1022 = vmatprep.subr.mxu0 %v34
  %1023 = vmatpush1.msra.mxu0 %v33
  %1024 = vmatprep.subr.mxu0 %v30
  %1025 = vmatpush1.msra.mxu0 %v29
  %1026 = vmatprep.subr.mxu0 %v26
  %1027 = vmatpush1.msra.mxu0 %v25
  %1028 = vmatprep.subr.mxu0 %v22
  %1029 = vmatpush1.msra.mxu0 %v21
  %1030 = vmatprep.subr.mxu0 %v18
  %1031 = vmatpush1.msra.mxu0 %v17
  %1032 = vmatprep.subr.mxu0 0.0
  %1033 = vmatpush2.msra.mxu0 0.0
  %1034 = vmatprep.subr.mxu0 0.0
  %1035 = vmatpush2.msra.mxu0 0.0
  %1036 = vmatprep.subr.mxu0 0.0
  %1037 = vmatpush2.msra.mxu0 0.0
  %1038 = vmatprep.subr.mxu0 0.0
  %1039 = vmatpush2.msra.mxu0 0.0
  %1040 = vmatprep.subr.mxu0 0.0
  %1041 = vmatpush2.msra.mxu0 0.0
  %1042 = vmatprep.subr.mxu0 0.0
  %1043 = vmatpush2.msra.mxu0 0.0
  %1044 = vmatprep.subr.mxu0 0.0
  %1045 = vmatpush2.msra.mxu0 0.0
  %1046 = vmatprep.subr.mxu0 0.0
  %1047 = vmatpush2.msra.mxu0 0.0
  %1048 = vmatprep.subr.mxu0 0.0
  %1049 = vmatpush2.msra.mxu0 0.0
  %1050 = vmatprep.subr.mxu0 0.0
  %1051 = vmatpush2.msra.mxu0 0.0
  %1052 = vmatprep.subr.mxu0 0.0
  %1053 = vmatpush2.msra.mxu0 0.0
  %1054 = vmatprep.subr.mxu0 0.0
  %1055 = vmatpush2.msra.mxu0 0.0
  %1056 = vmatprep.subr.mxu0 0.0
  %1057 = vmatpush2.msra.mxu0 0.0
  %1058 = vmatprep.subr.mxu0 0.0
  %1059 = vmatpush2.msra.mxu0 0.0
  %1060 = vmatprep.subr.mxu0 0.0
  %1061 = vmatpush2.msra.mxu0 0.0
  %1062 = vmatprep.subr.mxu0 0.0
  %1063 = vmatpush2.msra.mxu0 0.0
  %1064 = vmatprep.mubr.f32.mxu0 0.0
  %1065 = vmatmul.mubr.f32.gmra.mxu0 %v993
  %v1066 = vpop.f32.mrf.mxu0
  %v1067 = vadd.f32 0.0, %v1066
  %v1068 = vpop.f32.mrf.mxu0
  %v1069 = vadd.f32 0.0, %v1068
  %1070 = vdwg.mxu0
  %1071 = vmatprep.subr.mxu0 %v80
  %1072 = vmatpush1.msra.mxu0 %v79
  %1073 = vmatprep.subr.mxu0 %v76
  %1074 = vmatpush1.msra.mxu0 %v75
  %1075 = vmatprep.subr.mxu0 %v72
  %1076 = vmatpush1.msra.mxu0 %v71
  %1077 = vmatprep.subr.mxu0 %v68
  %1078 = vmatpush1.msra.mxu0 %v67
  %1079 = vmatprep.subr.mxu0 %v64
  %1080 = vmatpush1.msra.mxu0 %v63
  %1081 = vmatprep.subr.mxu0 %v60
  %1082 = vmatpush1.msra.mxu0 %v59
  %1083 = vmatprep.subr.mxu0 %v56
  %1084 = vmatpush1.msra.mxu0 %v55
  %1085 = vmatprep.subr.mxu0 %v52
  %1086 = vmatpush1.msra.mxu0 %v51
  %1087 = vmatprep.subr.mxu0 %v48
  %1088 = vmatpush1.msra.mxu0 %v47
  %1089 = vmatprep.subr.mxu0 %v44
  %1090 = vmatpush1.msra.mxu0 %v43
  %1091 = vmatprep.subr.mxu0 %v40
  %1092 = vmatpush1.msra.mxu0 %v39
  %1093 = vmatprep.subr.mxu0 %v36
  %1094 = vmatpush1.msra.mxu0 %v35
  %1095 = vmatprep.subr.mxu0 %v32
  %1096 = vmatpush1.msra.mxu0 %v31
  %1097 = vmatprep.subr.mxu0 %v28
  %1098 = vmatpush1.msra.mxu0 %v27
  %1099 = vmatprep.subr.mxu0 %v24
  %1100 = vmatpush1.msra.mxu0 %v23
  %1101 = vmatprep.subr.mxu0 %v20
  %1102 = vmatpush1.msra.mxu0 %v19
  %1103 = vmatprep.subr.mxu0 0.0
  %1104 = vmatpush2.msra.mxu0 0.0
  %1105 = vmatprep.subr.mxu0 0.0
  %1106 = vmatpush2.msra.mxu0 0.0
  %1107 = vmatprep.subr.mxu0 0.0
  %1108 = vmatpush2.msra.mxu0 0.0
  %1109 = vmatprep.subr.mxu0 0.0
  %1110 = vmatpush2.msra.mxu0 0.0
  %1111 = vmatprep.subr.mxu0 0.0
  %1112 = vmatpush2.msra.mxu0 0.0
  %1113 = vmatprep.subr.mxu0 0.0
  %1114 = vmatpush2.msra.mxu0 0.0
  %1115 = vmatprep.subr.mxu0 0.0
  %1116 = vmatpush2.msra.mxu0 0.0
  %1117 = vmatprep.subr.mxu0 0.0
  %1118 = vmatpush2.msra.mxu0 0.0
  %1119 = vmatprep.subr.mxu0 0.0
  %1120 = vmatpush2.msra.mxu0 0.0
  %1121 = vmatprep.subr.mxu0 0.0
  %1122 = vmatpush2.msra.mxu0 0.0
  %1123 = vmatprep.subr.mxu0 0.0
  %1124 = vmatpush2.msra.mxu0 0.0
  %1125 = vmatprep.subr.mxu0 0.0
  %1126 = vmatpush2.msra.mxu0 0.0
  %1127 = vmatprep.subr.mxu0 0.0
  %1128 = vmatpush2.msra.mxu0 0.0
  %1129 = vmatprep.subr.mxu0 0.0
  %1130 = vmatpush2.msra.mxu0 0.0
  %1131 = vmatprep.subr.mxu0 0.0
  %1132 = vmatpush2.msra.mxu0 0.0
  %1133 = vmatprep.subr.mxu0 0.0
  %1134 = vmatpush2.msra.mxu0 0.0
  %1135 = vmatprep.mubr.f32.mxu0 0.0
  %1136 = vmatmul.mubr.f32.gmra.mxu0 %v993
  %v1137 = vpop.f32.mrf.mxu0
  %v1138 = vadd.f32 0.0, %v1137
  %v1139 = vpop.f32.mrf.mxu0
  %v1140 = vadd.f32 0.0, %v1139
  %1141 = vdwg.mxu0
  %v1142 = vadd.f32 %v996, %v1067
  %v1143 = vadd.f32 %v997, %v1069
  %v1144 = vadd.f32 %v998, %v1138
  %v1145 = vadd.f32 %v999, %v1140
  %v1146 = vxor.u32 %v1142, 2147483648
  %v1147 = vxor.u32 %v1143, 2147483648
  %v1148 = vxor.u32 %v1144, 2147483648
  %v1149 = vmul.f32 %v1146, 1.442695
  %v1150 = vpow.pop %v1149
  %v1151 = vmul.f32 %v1147, 1.442695
  %v1152 = vpow.pop %v1151
  %v1153 = vmul.f32 %v1148, 1.442695
  %v1154 = vpow.pop %v1153
  %v1155 = vadd.f32 %v1150, 1.0
  %v1156 = vadd.f32 %v1152, 1.0
  %v1157 = vadd.f32 %v1154, 1.0
  %v1158 = vrcp.pop %v1155
  %v1159 = vmul.f32 1.0, %v1158
  %v1160 = vrcp.pop %v1156
  %v1161 = vmul.f32 1.0, %v1160
  %v1162 = vrcp.pop %v1157
  %v1163 = vmul.f32 1.0, %v1162
  %v1164 = vtanh.pop %v1145
  %v1165 = vmul.f32 %v1161, %v994
  %v1166 = vmul.f32 %v1159, %v1164
  %v1167 = vadd.f32 %v1165, %v1166
  %v1168 = vtanh.pop %v1167
  %v1169 = vmul.f32 %v1163, %v1168
  %vm1170 = vcmp.gt.s32.totalorder %v16, 5
  %v1171 = vsel %vm1170, 1, 0
  %1172 = vset.pattern.permute.xlu0 0
  %1173 = vperm.xlu0 %1172, %v1171
  %v1174 = vpop.permute.xlu0 %1173
  %vm1175 = vcmp.eq.s32.totalorder %v1174, 1
  %v1176 = vsel %vm1175, %v1169, %v993
  %v1177 = vsel %vm1175, %v1167, %v994
  %s1178 = scalar_lea.vmem %s1, 192
  %v1179 = vld [vmem:[%s1178] sm:$0xff]
  %v1180 = vld [vmem:[%s1178 + $0x8] sm:$0xff]
  %v1181 = vld [vmem:[%s1178 + $0x10] sm:$0xff]
  %v1182 = vld [vmem:[%s1178 + $0x18] sm:$0xff]
  %1183 = vmatprep.subr.mxu0 %v78
  %1184 = vmatpush1.msra.mxu0 %v77
  %1185 = vmatprep.subr.mxu0 %v74
  %1186 = vmatpush1.msra.mxu0 %v73
  %1187 = vmatprep.subr.mxu0 %v70
  %1188 = vmatpush1.msra.mxu0 %v69
  %1189 = vmatprep.subr.mxu0 %v66
  %1190 = vmatpush1.msra.mxu0 %v65
  %1191 = vmatprep.subr.mxu0 %v62
  %1192 = vmatpush1.msra.mxu0 %v61
  %1193 = vmatprep.subr.mxu0 %v58
  %1194 = vmatpush1.msra.mxu0 %v57
  %1195 = vmatprep.subr.mxu0 %v54
  %1196 = vmatpush1.msra.mxu0 %v53
  %1197 = vmatprep.subr.mxu0 %v50
  %1198 = vmatpush1.msra.mxu0 %v49
  %1199 = vmatprep.subr.mxu0 %v46
  %1200 = vmatpush1.msra.mxu0 %v45
  %1201 = vmatprep.subr.mxu0 %v42
  %1202 = vmatpush1.msra.mxu0 %v41
  %1203 = vmatprep.subr.mxu0 %v38
  %1204 = vmatpush1.msra.mxu0 %v37
  %1205 = vmatprep.subr.mxu0 %v34
  %1206 = vmatpush1.msra.mxu0 %v33
  %1207 = vmatprep.subr.mxu0 %v30
  %1208 = vmatpush1.msra.mxu0 %v29
  %1209 = vmatprep.subr.mxu0 %v26
  %1210 = vmatpush1.msra.mxu0 %v25
  %1211 = vmatprep.subr.mxu0 %v22
  %1212 = vmatpush1.msra.mxu0 %v21
  %1213 = vmatprep.subr.mxu0 %v18
  %1214 = vmatpush1.msra.mxu0 %v17
  %1215 = vmatprep.subr.mxu0 0.0
  %1216 = vmatpush2.msra.mxu0 0.0
  %1217 = vmatprep.subr.mxu0 0.0
  %1218 = vmatpush2.msra.mxu0 0.0
  %1219 = vmatprep.subr.mxu0 0.0
  %1220 = vmatpush2.msra.mxu0 0.0
  %1221 = vmatprep.subr.mxu0 0.0
  %1222 = vmatpush2.msra.mxu0 0.0
  %1223 = vmatprep.subr.mxu0 0.0
  %1224 = vmatpush2.msra.mxu0 0.0
  %1225 = vmatprep.subr.mxu0 0.0
  %1226 = vmatpush2.msra.mxu0 0.0
  %1227 = vmatprep.subr.mxu0 0.0
  %1228 = vmatpush2.msra.mxu0 0.0
  %1229 = vmatprep.subr.mxu0 0.0
  %1230 = vmatpush2.msra.mxu0 0.0
  %1231 = vmatprep.subr.mxu0 0.0
  %1232 = vmatpush2.msra.mxu0 0.0
  %1233 = vmatprep.subr.mxu0 0.0
  %1234 = vmatpush2.msra.mxu0 0.0
  %1235 = vmatprep.subr.mxu0 0.0
  %1236 = vmatpush2.msra.mxu0 0.0
  %1237 = vmatprep.subr.mxu0 0.0
  %1238 = vmatpush2.msra.mxu0 0.0
  %1239 = vmatprep.subr.mxu0 0.0
  %1240 = vmatpush2.msra.mxu0 0.0
  %1241 = vmatprep.subr.mxu0 0.0
  %1242 = vmatpush2.msra.mxu0 0.0
  %1243 = vmatprep.subr.mxu0 0.0
  %1244 = vmatpush2.msra.mxu0 0.0
  %1245 = vmatprep.subr.mxu0 0.0
  %1246 = vmatpush2.msra.mxu0 0.0
  %1247 = vmatprep.mubr.f32.mxu0 0.0
  %1248 = vmatmul.mubr.f32.gmra.mxu0 %v1176
  %v1249 = vpop.f32.mrf.mxu0
  %v1250 = vadd.f32 0.0, %v1249
  %v1251 = vpop.f32.mrf.mxu0
  %v1252 = vadd.f32 0.0, %v1251
  %1253 = vdwg.mxu0
  %1254 = vmatprep.subr.mxu0 %v80
  %1255 = vmatpush1.msra.mxu0 %v79
  %1256 = vmatprep.subr.mxu0 %v76
  %1257 = vmatpush1.msra.mxu0 %v75
  %1258 = vmatprep.subr.mxu0 %v72
  %1259 = vmatpush1.msra.mxu0 %v71
  %1260 = vmatprep.subr.mxu0 %v68
  %1261 = vmatpush1.msra.mxu0 %v67
  %1262 = vmatprep.subr.mxu0 %v64
  %1263 = vmatpush1.msra.mxu0 %v63
  %1264 = vmatprep.subr.mxu0 %v60
  %1265 = vmatpush1.msra.mxu0 %v59
  %1266 = vmatprep.subr.mxu0 %v56
  %1267 = vmatpush1.msra.mxu0 %v55
  %1268 = vmatprep.subr.mxu0 %v52
  %1269 = vmatpush1.msra.mxu0 %v51
  %1270 = vmatprep.subr.mxu0 %v48
  %1271 = vmatpush1.msra.mxu0 %v47
  %1272 = vmatprep.subr.mxu0 %v44
  %1273 = vmatpush1.msra.mxu0 %v43
  %1274 = vmatprep.subr.mxu0 %v40
  %1275 = vmatpush1.msra.mxu0 %v39
  %1276 = vmatprep.subr.mxu0 %v36
  %1277 = vmatpush1.msra.mxu0 %v35
  %1278 = vmatprep.subr.mxu0 %v32
  %1279 = vmatpush1.msra.mxu0 %v31
  %1280 = vmatprep.subr.mxu0 %v28
  %1281 = vmatpush1.msra.mxu0 %v27
  %1282 = vmatprep.subr.mxu0 %v24
  %1283 = vmatpush1.msra.mxu0 %v23
  %1284 = vmatprep.subr.mxu0 %v20
  %1285 = vmatpush1.msra.mxu0 %v19
  %1286 = vmatprep.subr.mxu0 0.0
  %1287 = vmatpush2.msra.mxu0 0.0
  %1288 = vmatprep.subr.mxu0 0.0
  %1289 = vmatpush2.msra.mxu0 0.0
  %1290 = vmatprep.subr.mxu0 0.0
  %1291 = vmatpush2.msra.mxu0 0.0
  %1292 = vmatprep.subr.mxu0 0.0
  %1293 = vmatpush2.msra.mxu0 0.0
  %1294 = vmatprep.subr.mxu0 0.0
  %1295 = vmatpush2.msra.mxu0 0.0
  %1296 = vmatprep.subr.mxu0 0.0
  %1297 = vmatpush2.msra.mxu0 0.0
  %1298 = vmatprep.subr.mxu0 0.0
  %1299 = vmatpush2.msra.mxu0 0.0
  %1300 = vmatprep.subr.mxu0 0.0
  %1301 = vmatpush2.msra.mxu0 0.0
  %1302 = vmatprep.subr.mxu0 0.0
  %1303 = vmatpush2.msra.mxu0 0.0
  %1304 = vmatprep.subr.mxu0 0.0
  %1305 = vmatpush2.msra.mxu0 0.0
  %1306 = vmatprep.subr.mxu0 0.0
  %1307 = vmatpush2.msra.mxu0 0.0
  %1308 = vmatprep.subr.mxu0 0.0
  %1309 = vmatpush2.msra.mxu0 0.0
  %1310 = vmatprep.subr.mxu0 0.0
  %1311 = vmatpush2.msra.mxu0 0.0
  %1312 = vmatprep.subr.mxu0 0.0
  %1313 = vmatpush2.msra.mxu0 0.0
  %1314 = vmatprep.subr.mxu0 0.0
  %1315 = vmatpush2.msra.mxu0 0.0
  %1316 = vmatprep.subr.mxu0 0.0
  %1317 = vmatpush2.msra.mxu0 0.0
  %1318 = vmatprep.mubr.f32.mxu0 0.0
  %1319 = vmatmul.mubr.f32.gmra.mxu0 %v1176
  %v1320 = vpop.f32.mrf.mxu0
  %v1321 = vadd.f32 0.0, %v1320
  %v1322 = vpop.f32.mrf.mxu0
  %v1323 = vadd.f32 0.0, %v1322
  %1324 = vdwg.mxu0
  %v1325 = vadd.f32 %v1179, %v1250
  %v1326 = vadd.f32 %v1180, %v1252
  %v1327 = vadd.f32 %v1181, %v1321
  %v1328 = vadd.f32 %v1182, %v1323
  %v1329 = vxor.u32 %v1325, 2147483648
  %v1330 = vxor.u32 %v1326, 2147483648
  %v1331 = vxor.u32 %v1327, 2147483648
  %v1332 = vmul.f32 %v1329, 1.442695
  %v1333 = vpow.pop %v1332
  %v1334 = vmul.f32 %v1330, 1.442695
  %v1335 = vpow.pop %v1334
  %v1336 = vmul.f32 %v1331, 1.442695
  %v1337 = vpow.pop %v1336
  %v1338 = vadd.f32 %v1333, 1.0
  %v1339 = vadd.f32 %v1335, 1.0
  %v1340 = vadd.f32 %v1337, 1.0
  %v1341 = vrcp.pop %v1338
  %v1342 = vmul.f32 1.0, %v1341
  %v1343 = vrcp.pop %v1339
  %v1344 = vmul.f32 1.0, %v1343
  %v1345 = vrcp.pop %v1340
  %v1346 = vmul.f32 1.0, %v1345
  %v1347 = vtanh.pop %v1328
  %v1348 = vmul.f32 %v1344, %v1177
  %v1349 = vmul.f32 %v1342, %v1347
  %v1350 = vadd.f32 %v1348, %v1349
  %v1351 = vtanh.pop %v1350
  %v1352 = vmul.f32 %v1346, %v1351
  %vm1353 = vcmp.gt.s32.totalorder %v16, 6
  %v1354 = vsel %vm1353, 1, 0
  %1355 = vset.pattern.permute.xlu0 0
  %1356 = vperm.xlu0 %1355, %v1354
  %v1357 = vpop.permute.xlu0 %1356
  %vm1358 = vcmp.eq.s32.totalorder %v1357, 1
  %v1359 = vsel %vm1358, %v1352, %v1176
  %v1360 = vsel %vm1358, %v1350, %v1177
  %s1361 = scalar_lea.vmem %s1, 224
  %v1362 = vld [vmem:[%s1361] sm:$0xff]
  %v1363 = vld [vmem:[%s1361 + $0x8] sm:$0xff]
  %v1364 = vld [vmem:[%s1361 + $0x10] sm:$0xff]
  %v1365 = vld [vmem:[%s1361 + $0x18] sm:$0xff]
  %1366 = vmatprep.subr.mxu0 %v78
  %1367 = vmatpush1.msra.mxu0 %v77
  %1368 = vmatprep.subr.mxu0 %v74
  %1369 = vmatpush1.msra.mxu0 %v73
  %1370 = vmatprep.subr.mxu0 %v70
  %1371 = vmatpush1.msra.mxu0 %v69
  %1372 = vmatprep.subr.mxu0 %v66
  %1373 = vmatpush1.msra.mxu0 %v65
  %1374 = vmatprep.subr.mxu0 %v62
  %1375 = vmatpush1.msra.mxu0 %v61
  %1376 = vmatprep.subr.mxu0 %v58
  %1377 = vmatpush1.msra.mxu0 %v57
  %1378 = vmatprep.subr.mxu0 %v54
  %1379 = vmatpush1.msra.mxu0 %v53
  %1380 = vmatprep.subr.mxu0 %v50
  %1381 = vmatpush1.msra.mxu0 %v49
  %1382 = vmatprep.subr.mxu0 %v46
  %1383 = vmatpush1.msra.mxu0 %v45
  %1384 = vmatprep.subr.mxu0 %v42
  %1385 = vmatpush1.msra.mxu0 %v41
  %1386 = vmatprep.subr.mxu0 %v38
  %1387 = vmatpush1.msra.mxu0 %v37
  %1388 = vmatprep.subr.mxu0 %v34
  %1389 = vmatpush1.msra.mxu0 %v33
  %1390 = vmatprep.subr.mxu0 %v30
  %1391 = vmatpush1.msra.mxu0 %v29
  %1392 = vmatprep.subr.mxu0 %v26
  %1393 = vmatpush1.msra.mxu0 %v25
  %1394 = vmatprep.subr.mxu0 %v22
  %1395 = vmatpush1.msra.mxu0 %v21
  %1396 = vmatprep.subr.mxu0 %v18
  %1397 = vmatpush1.msra.mxu0 %v17
  %1398 = vmatprep.subr.mxu0 0.0
  %1399 = vmatpush2.msra.mxu0 0.0
  %1400 = vmatprep.subr.mxu0 0.0
  %1401 = vmatpush2.msra.mxu0 0.0
  %1402 = vmatprep.subr.mxu0 0.0
  %1403 = vmatpush2.msra.mxu0 0.0
  %1404 = vmatprep.subr.mxu0 0.0
  %1405 = vmatpush2.msra.mxu0 0.0
  %1406 = vmatprep.subr.mxu0 0.0
  %1407 = vmatpush2.msra.mxu0 0.0
  %1408 = vmatprep.subr.mxu0 0.0
  %1409 = vmatpush2.msra.mxu0 0.0
  %1410 = vmatprep.subr.mxu0 0.0
  %1411 = vmatpush2.msra.mxu0 0.0
  %1412 = vmatprep.subr.mxu0 0.0
  %1413 = vmatpush2.msra.mxu0 0.0
  %1414 = vmatprep.subr.mxu0 0.0
  %1415 = vmatpush2.msra.mxu0 0.0
  %1416 = vmatprep.subr.mxu0 0.0
  %1417 = vmatpush2.msra.mxu0 0.0
  %1418 = vmatprep.subr.mxu0 0.0
  %1419 = vmatpush2.msra.mxu0 0.0
  %1420 = vmatprep.subr.mxu0 0.0
  %1421 = vmatpush2.msra.mxu0 0.0
  %1422 = vmatprep.subr.mxu0 0.0
  %1423 = vmatpush2.msra.mxu0 0.0
  %1424 = vmatprep.subr.mxu0 0.0
  %1425 = vmatpush2.msra.mxu0 0.0
  %1426 = vmatprep.subr.mxu0 0.0
  %1427 = vmatpush2.msra.mxu0 0.0
  %1428 = vmatprep.subr.mxu0 0.0
  %1429 = vmatpush2.msra.mxu0 0.0
  %1430 = vmatprep.mubr.f32.mxu0 0.0
  %1431 = vmatmul.mubr.f32.gmra.mxu0 %v1359
  %v1432 = vpop.f32.mrf.mxu0
  %v1433 = vadd.f32 0.0, %v1432
  %v1434 = vpop.f32.mrf.mxu0
  %v1435 = vadd.f32 0.0, %v1434
  %1436 = vdwg.mxu0
  %1437 = vmatprep.subr.mxu0 %v80
  %1438 = vmatpush1.msra.mxu0 %v79
  %1439 = vmatprep.subr.mxu0 %v76
  %1440 = vmatpush1.msra.mxu0 %v75
  %1441 = vmatprep.subr.mxu0 %v72
  %1442 = vmatpush1.msra.mxu0 %v71
  %1443 = vmatprep.subr.mxu0 %v68
  %1444 = vmatpush1.msra.mxu0 %v67
  %1445 = vmatprep.subr.mxu0 %v64
  %1446 = vmatpush1.msra.mxu0 %v63
  %1447 = vmatprep.subr.mxu0 %v60
  %1448 = vmatpush1.msra.mxu0 %v59
  %1449 = vmatprep.subr.mxu0 %v56
  %1450 = vmatpush1.msra.mxu0 %v55
  %1451 = vmatprep.subr.mxu0 %v52
  %1452 = vmatpush1.msra.mxu0 %v51
  %1453 = vmatprep.subr.mxu0 %v48
  %1454 = vmatpush1.msra.mxu0 %v47
  %1455 = vmatprep.subr.mxu0 %v44
  %1456 = vmatpush1.msra.mxu0 %v43
  %1457 = vmatprep.subr.mxu0 %v40
  %1458 = vmatpush1.msra.mxu0 %v39
  %1459 = vmatprep.subr.mxu0 %v36
  %1460 = vmatpush1.msra.mxu0 %v35
  %1461 = vmatprep.subr.mxu0 %v32
  %1462 = vmatpush1.msra.mxu0 %v31
  %1463 = vmatprep.subr.mxu0 %v28
  %1464 = vmatpush1.msra.mxu0 %v27
  %1465 = vmatprep.subr.mxu0 %v24
  %1466 = vmatpush1.msra.mxu0 %v23
  %1467 = vmatprep.subr.mxu0 %v20
  %1468 = vmatpush1.msra.mxu0 %v19
  %1469 = vmatprep.subr.mxu0 0.0
  %1470 = vmatpush2.msra.mxu0 0.0
  %1471 = vmatprep.subr.mxu0 0.0
  %1472 = vmatpush2.msra.mxu0 0.0
  %1473 = vmatprep.subr.mxu0 0.0
  %1474 = vmatpush2.msra.mxu0 0.0
  %1475 = vmatprep.subr.mxu0 0.0
  %1476 = vmatpush2.msra.mxu0 0.0
  %1477 = vmatprep.subr.mxu0 0.0
  %1478 = vmatpush2.msra.mxu0 0.0
  %1479 = vmatprep.subr.mxu0 0.0
  %1480 = vmatpush2.msra.mxu0 0.0
  %1481 = vmatprep.subr.mxu0 0.0
  %1482 = vmatpush2.msra.mxu0 0.0
  %1483 = vmatprep.subr.mxu0 0.0
  %1484 = vmatpush2.msra.mxu0 0.0
  %1485 = vmatprep.subr.mxu0 0.0
  %1486 = vmatpush2.msra.mxu0 0.0
  %1487 = vmatprep.subr.mxu0 0.0
  %1488 = vmatpush2.msra.mxu0 0.0
  %1489 = vmatprep.subr.mxu0 0.0
  %1490 = vmatpush2.msra.mxu0 0.0
  %1491 = vmatprep.subr.mxu0 0.0
  %1492 = vmatpush2.msra.mxu0 0.0
  %1493 = vmatprep.subr.mxu0 0.0
  %1494 = vmatpush2.msra.mxu0 0.0
  %1495 = vmatprep.subr.mxu0 0.0
  %1496 = vmatpush2.msra.mxu0 0.0
  %1497 = vmatprep.subr.mxu0 0.0
  %1498 = vmatpush2.msra.mxu0 0.0
  %1499 = vmatprep.subr.mxu0 0.0
  %1500 = vmatpush2.msra.mxu0 0.0
  %1501 = vmatprep.mubr.f32.mxu0 0.0
  %1502 = vmatmul.mubr.f32.gmra.mxu0 %v1359
  %v1503 = vpop.f32.mrf.mxu0
  %v1504 = vadd.f32 0.0, %v1503
  %v1505 = vpop.f32.mrf.mxu0
  %v1506 = vadd.f32 0.0, %v1505
  %1507 = vdwg.mxu0
  %v1508 = vadd.f32 %v1362, %v1433
  %v1509 = vadd.f32 %v1363, %v1435
  %v1510 = vadd.f32 %v1364, %v1504
  %v1511 = vadd.f32 %v1365, %v1506
  %v1512 = vxor.u32 %v1508, 2147483648
  %v1513 = vxor.u32 %v1509, 2147483648
  %v1514 = vxor.u32 %v1510, 2147483648
  %v1515 = vmul.f32 %v1512, 1.442695
  %v1516 = vpow.pop %v1515
  %v1517 = vmul.f32 %v1513, 1.442695
  %v1518 = vpow.pop %v1517
  %v1519 = vmul.f32 %v1514, 1.442695
  %v1520 = vpow.pop %v1519
  %v1521 = vadd.f32 %v1516, 1.0
  %v1522 = vadd.f32 %v1518, 1.0
  %v1523 = vadd.f32 %v1520, 1.0
  %v1524 = vrcp.pop %v1521
  %v1525 = vmul.f32 1.0, %v1524
  %v1526 = vrcp.pop %v1522
  %v1527 = vmul.f32 1.0, %v1526
  %v1528 = vrcp.pop %v1523
  %v1529 = vmul.f32 1.0, %v1528
  %v1530 = vtanh.pop %v1511
  %v1531 = vmul.f32 %v1527, %v1360
  %v1532 = vmul.f32 %v1525, %v1530
  %v1533 = vadd.f32 %v1531, %v1532
  %v1534 = vtanh.pop %v1533
  %v1535 = vmul.f32 %v1529, %v1534
  %vm1536 = vcmp.gt.s32.totalorder %v16, 7
  %v1537 = vsel %vm1536, 1, 0
  %1538 = vset.pattern.permute.xlu0 0
  %1539 = vperm.xlu0 %1538, %v1537
  %v1540 = vpop.permute.xlu0 %1539
  %vm1541 = vcmp.eq.s32.totalorder %v1540, 1
  %v1542 = vsel %vm1541, %v1535, %v1359
  %v1543 = vsel %vm1541, %v1533, %v1360
  %1544 = vst [vmem:[%s3] sm:$0xff] %v1542
  %1545 = vst [vmem:[%s4] sm:$0xff] %v1543
  // Predicated region
  $region14: #{seq2seq_forward.8} parent=0 // pred_check
    _
  $region15: #{seq2seq_forward.8} parent=0 // pred_check_branch
    %1547 = sbr.rel (0) target = $region17
  $region16: #{seq2seq_forward.8} parent=0 // pred_region
    _
  $region17: #{seq2seq_forward.8} parent=0 // pred_fallthru
    _
  // Predicated region
  $region18: #{seq2seq_forward.8} parent=0 // pred_check
    _
  $region19: #{seq2seq_forward.8} parent=0 // pred_check_branch
    %1549 = sbr.rel (0) target = $region21
  $region20: #{seq2seq_forward.8} parent=0 // pred_region
    _
  $region21: #{seq2seq_forward.8} parent=0 // pred_fallthru
    _
  // Predicated region
  $region22: #{seq2seq_forward.8} parent=0 // pred_check
    _
  $region23: #{seq2seq_forward.8} parent=0 // pred_check_branch
    %1551 = sbr.rel (0) target = $region25
  $region24: #{seq2seq_forward.8} parent=0 // pred_region
    _
  $region25: #{seq2seq_forward.8} parent=0 // pred_fallthru
    _
  // Predicated region
  $region26: #{seq2seq_forward.8} parent=0 // pred_check
    _
  $region27: #{seq2seq_forward.8} parent=0 // pred_check_branch
    %1553 = sbr.rel (0) target = $region29
  $region28: #{seq2seq_forward.8} parent=0 // pred_region
    _
  $region29: #{seq2seq_forward.8} parent=0 // pred_fallthru
    _

// kernel: seq2seq_forward.9
$region0: #{seq2seq_forward.9}
  #allocation0 [shape = 'u32[]', space=smem, size = 0x4, offset = 0x4, fixed_abs, tag = 'smem constant byte address 0x4 - core index']
  #allocation1 [shape = 'u32[144,128]{1,0:T(1,128)}', space=vmem, size = 0x12000, scoped, tag = 'internal scratch']
  %s0 = inlined_call_operand.vmem [shape: s32[8,1], index: 0, kind: input, shape index: {}]
  %s1 = inlined_call_operand.vmem [shape: f32[8,8,512], index: 1, kind: input, shape index: {}]
  %s2 = inlined_call_operand.vmem [shape: f32[8,128], index: 2, kind: input, shape index: {}]
  %s3 = inlined_call_operand.vmem [shape: f32[8,128], index: 3, kind: input, shape index: {}]
  %s4 = inlined_call_operand.vmem [shape: f32[128,512], index: 4, kind: input, shape index: {}]
  %s5 = inlined_call_operand.vmem [shape: f32[8,8,128], index: 5, kind: output, shape index: {}]
  %s6 = sld [smem:[#allocation0]]
  $region30: #{seq2seq_forward.9} parent=0
    _
  %s8 = ssub.s32 1, %s6
  %s9 = scalar_select 0, %s8, %s6
  // Predicated region
  $region2: #{seq2seq_forward.9} parent=0 // pred_check
    _
  $region3: #{seq2seq_forward.9} parent=0 // pred_check_branch
    %11 = sbr.rel (0) target = $region5
  $region4: #{seq2seq_forward.9} parent=0 // pred_region
    _
  $region5: #{seq2seq_forward.9} parent=0 // pred_fallthru
    _
  // Predicated region
  $region6: #{seq2seq_forward.9} parent=0 // pred_check
    _
  $region7: #{seq2seq_forward.9} parent=0 // pred_check_branch
    %13 = sbr.rel (0) target = $region9
  $region8: #{seq2seq_forward.9} parent=0 // pred_region
    _
  $region9: #{seq2seq_forward.9} parent=0 // pred_fallthru
    _
  // Predicated region
  $region10: #{seq2seq_forward.9} parent=0 // pred_check
    _
  $region11: #{seq2seq_forward.9} parent=0 // pred_check_branch
    %15 = sbr.rel (0) target = $region13
  $region12: #{seq2seq_forward.9} parent=0 // pred_region
    _
  $region13: #{seq2seq_forward.9} parent=0 // pred_fallthru
    _
  // Predicated region
  $region14: #{seq2seq_forward.9} parent=0 // pred_check
    _
  $region15: #{seq2seq_forward.9} parent=0 // pred_check_branch
    %17 = sbr.rel (0) target = $region17
  $region16: #{seq2seq_forward.9} parent=0 // pred_region
    _
  $region17: #{seq2seq_forward.9} parent=0 // pred_fallthru
    _
  // Predicated region
  $region18: #{seq2seq_forward.9} parent=0 // pred_check
    _
  $region19: #{seq2seq_forward.9} parent=0 // pred_check_branch
    %19 = sbr.rel (0) target = $region21
  $region20: #{seq2seq_forward.9} parent=0 // pred_region
    _
  $region21: #{seq2seq_forward.9} parent=0 // pred_fallthru
    _
  %v20 = vld [vmem:[%s0] sm:$0xff]
  %v21 = vld [vmem:[%s4] sm:$0xff]
  %v22 = vld [vmem:[%s4 + $0x8] sm:$0xff]
  %v23 = vld [vmem:[%s4 + $0x10] sm:$0xff]
  %v24 = vld [vmem:[%s4 + $0x18] sm:$0xff]
  %v25 = vld [vmem:[%s4 + $0x20] sm:$0xff]
  %v26 = vld [vmem:[%s4 + $0x28] sm:$0xff]
  %v27 = vld [vmem:[%s4 + $0x30] sm:$0xff]
  %v28 = vld [vmem:[%s4 + $0x38] sm:$0xff]
  %v29 = vld [vmem:[%s4 + $0x40] sm:$0xff]
  %v30 = vld [vmem:[%s4 + $0x48] sm:$0xff]
  %v31 = vld [vmem:[%s4 + $0x50] sm:$0xff]
  %v32 = vld [vmem:[%s4 + $0x58] sm:$0xff]
  %v33 = vld [vmem:[%s4 + $0x60] sm:$0xff]
  %v34 = vld [vmem:[%s4 + $0x68] sm:$0xff]
  %v35 = vld [vmem:[%s4 + $0x70] sm:$0xff]
  %v36 = vld [vmem:[%s4 + $0x78] sm:$0xff]
  %v37 = vld [vmem:[%s4 + $0x80] sm:$0xff]
  %v38 = vld [vmem:[%s4 + $0x88] sm:$0xff]
  %v39 = vld [vmem:[%s4 + $0x90] sm:$0xff]
  %v40 = vld [vmem:[%s4 + $0x98] sm:$0xff]
  %v41 = vld [vmem:[%s4 + $0xa0] sm:$0xff]
  %v42 = vld [vmem:[%s4 + $0xa8] sm:$0xff]
  %v43 = vld [vmem:[%s4 + $0xb0] sm:$0xff]
  %v44 = vld [vmem:[%s4 + $0xb8] sm:$0xff]
  %v45 = vld [vmem:[%s4 + $0xc0] sm:$0xff]
  %v46 = vld [vmem:[%s4 + $0xc8] sm:$0xff]
  %v47 = vld [vmem:[%s4 + $0xd0] sm:$0xff]
  %v48 = vld [vmem:[%s4 + $0xd8] sm:$0xff]
  %v49 = vld [vmem:[%s4 + $0xe0] sm:$0xff]
  %v50 = vld [vmem:[%s4 + $0xe8] sm:$0xff]
  %v51 = vld [vmem:[%s4 + $0xf0] sm:$0xff]
  %v52 = vld [vmem:[%s4 + $0xf8] sm:$0xff]
  %v53 = vld [vmem:[%s4 + $0x100] sm:$0xff]
  %v54 = vld [vmem:[%s4 + $0x108] sm:$0xff]
  %v55 = vld [vmem:[%s4 + $0x110] sm:$0xff]
  %v56 = vld [vmem:[%s4 + $0x118] sm:$0xff]
  %v57 = vld [vmem:[%s4 + $0x120] sm:$0xff]
  %v58 = vld [vmem:[%s4 + $0x128] sm:$0xff]
  %v59 = vld [vmem:[%s4 + $0x130] sm:$0xff]
  %v60 = vld [vmem:[%s4 + $0x138] sm:$0xff]
  %v61 = vld [vmem:[%s4 + $0x140] sm:$0xff]
  %v62 = vld [vmem:[%s4 + $0x148] sm:$0xff]
  %v63 = vld [vmem:[%s4 + $0x150] sm:$0xff]
  %v64 = vld [vmem:[%s4 + $0x158] sm:$0xff]
  %v65 = vld [vmem:[%s4 + $0x160] sm:$0xff]
  %v66 = vld [vmem:[%s4 + $0x168] sm:$0xff]
  %v67 = vld [vmem:[%s4 + $0x170] sm:$0xff]
  %v68 = vld [vmem:[%s4 + $0x178] sm:$0xff]
  %v69 = vld [vmem:[%s4 + $0x180] sm:$0xff]
  %v70 = vld [vmem:[%s4 + $0x188] sm:$0xff]
  %v71 = vld [vmem:[%s4 + $0x190] sm:$0xff]
  %v72 = vld [vmem:[%s4 + $0x198] sm:$0xff]
  %v73 = vld [vmem:[%s4 + $0x1a0] sm:$0xff]
  %v74 = vld [vmem:[%s4 + $0x1a8] sm:$0xff]
  %v75 = vld [vmem:[%s4 + $0x1b0] sm:$0xff]
  %v76 = vld [vmem:[%s4 + $0x1b8] sm:$0xff]
  %v77 = vld [vmem:[%s4 + $0x1c0] sm:$0xff]
  %v78 = vld [vmem:[%s4 + $0x1c8] sm:$0xff]
  %v79 = vld [vmem:[%s4 + $0x1d0] sm:$0xff]
  %v80 = vld [vmem:[%s4 + $0x1d8] sm:$0xff]
  %v81 = vld [vmem:[%s4 + $0x1e0] sm:$0xff]
  %v82 = vld [vmem:[%s4 + $0x1e8] sm:$0xff]
  %v83 = vld [vmem:[%s4 + $0x1f0] sm:$0xff]
  %v84 = vld [vmem:[%s4 + $0x1f8] sm:$0xff]
  %v85 = vld [vmem:[%s2] sm:$0xff]
  %v86 = vld [vmem:[%s3] sm:$0xff]
  %v87 = vld [vmem:[%s1] sm:$0xff]
  %v88 = vld [vmem:[%s1 + $0x8] sm:$0xff]
  %v89 = vld [vmem:[%s1 + $0x10] sm:$0xff]
  %v90 = vld [vmem:[%s1 + $0x18] sm:$0xff]
  %91 = vmatprep.subr.mxu0 %v82
  %92 = vmatpush1.msra.mxu0 %v81
  %93 = vmatprep.subr.mxu0 %v78
  %94 = vmatpush1.msra.mxu0 %v77
  %95 = vmatprep.subr.mxu0 %v74
  %96 = vmatpush1.msra.mxu0 %v73
  %97 = vmatprep.subr.mxu0 %v70
  %98 = vmatpush1.msra.mxu0 %v69
  %99 = vmatprep.subr.mxu0 %v66
  %100 = vmatpush1.msra.mxu0 %v65
  %101 = vmatprep.subr.mxu0 %v62
  %102 = vmatpush1.msra.mxu0 %v61
  %103 = vmatprep.subr.mxu0 %v58
  %104 = vmatpush1.msra.mxu0 %v57
  %105 = vmatprep.subr.mxu0 %v54
  %106 = vmatpush1.msra.mxu0 %v53
  %107 = vmatprep.subr.mxu0 %v50
  %108 = vmatpush1.msra.mxu0 %v49
  %109 = vmatprep.subr.mxu0 %v46
  %110 = vmatpush1.msra.mxu0 %v45
  %111 = vmatprep.subr.mxu0 %v42
  %112 = vmatpush1.msra.mxu0 %v41
  %113 = vmatprep.subr.mxu0 %v38
  %114 = vmatpush1.msra.mxu0 %v37
  %115 = vmatprep.subr.mxu0 %v34
  %116 = vmatpush1.msra.mxu0 %v33
  %117 = vmatprep.subr.mxu0 %v30
  %118 = vmatpush1.msra.mxu0 %v29
  %119 = vmatprep.subr.mxu0 %v26
  %120 = vmatpush1.msra.mxu0 %v25
  %121 = vmatprep.subr.mxu0 %v22
  %122 = vmatpush1.msra.mxu0 %v21
  %123 = vmatprep.subr.mxu0 0.0
  %124 = vmatpush2.msra.mxu0 0.0
  %125 = vmatprep.subr.mxu0 0.0
  %126 = vmatpush2.msra.mxu0 0.0
  %127 = vmatprep.subr.mxu0 0.0
  %128 = vmatpush2.msra.mxu0 0.0
  %129 = vmatprep.subr.mxu0 0.0
  %130 = vmatpush2.msra.mxu0 0.0
  %131 = vmatprep.subr.mxu0 0.0
  %132 = vmatpush2.msra.mxu0 0.0
  %133 = vmatprep.subr.mxu0 0.0
  %134 = vmatpush2.msra.mxu0 0.0
  %135 = vmatprep.subr.mxu0 0.0
  %136 = vmatpush2.msra.mxu0 0.0
  %137 = vmatprep.subr.mxu0 0.0
  %138 = vmatpush2.msra.mxu0 0.0
  %139 = vmatprep.subr.mxu0 0.0
  %140 = vmatpush2.msra.mxu0 0.0
  %141 = vmatprep.subr.mxu0 0.0
  %142 = vmatpush2.msra.mxu0 0.0
  %143 = vmatprep.subr.mxu0 0.0
  %144 = vmatpush2.msra.mxu0 0.0
  %145 = vmatprep.subr.mxu0 0.0
  %146 = vmatpush2.msra.mxu0 0.0
  %147 = vmatprep.subr.mxu0 0.0
  %148 = vmatpush2.msra.mxu0 0.0
  %149 = vmatprep.subr.mxu0 0.0
  %150 = vmatpush2.msra.mxu0 0.0
  %151 = vmatprep.subr.mxu0 0.0
  %152 = vmatpush2.msra.mxu0 0.0
  %153 = vmatprep.subr.mxu0 0.0
  %154 = vmatpush2.msra.mxu0 0.0
  %155 = vmatprep.mubr.f32.mxu0 0.0
  %156 = vmatmul.mubr.f32.gmra.mxu0 %v85
  %v157 = vpop.f32.mrf.mxu0
  %v158 = vadd.f32 0.0, %v157
  %v159 = vpop.f32.mrf.mxu0
  %v160 = vadd.f32 0.0, %v159
  %161 = vdwg.mxu0
  %162 = vmatprep.subr.mxu0 %v84
  %163 = vmatpush1.msra.mxu0 %v83
  %164 = vmatprep.subr.mxu0 %v80
  %165 = vmatpush1.msra.mxu0 %v79
  %166 = vmatprep.subr.mxu0 %v76
  %167 = vmatpush1.msra.mxu0 %v75
  %168 = vmatprep.subr.mxu0 %v72
  %169 = vmatpush1.msra.mxu0 %v71
  %170 = vmatprep.subr.mxu0 %v68
  %171 = vmatpush1.msra.mxu0 %v67
  %172 = vmatprep.subr.mxu0 %v64
  %173 = vmatpush1.msra.mxu0 %v63
  %174 = vmatprep.subr.mxu0 %v60
  %175 = vmatpush1.msra.mxu0 %v59
  %176 = vmatprep.subr.mxu0 %v56
  %177 = vmatpush1.msra.mxu0 %v55
  %178 = vmatprep.subr.mxu0 %v52
  %179 = vmatpush1.msra.mxu0 %v51
  %180 = vmatprep.subr.mxu0 %v48
  %181 = vmatpush1.msra.mxu0 %v47
  %182 = vmatprep.subr.mxu0 %v44
  %183 = vmatpush1.msra.mxu0 %v43
  %184 = vmatprep.subr.mxu0 %v40
  %185 = vmatpush1.msra.mxu0 %v39
  %186 = vmatprep.subr.mxu0 %v36
  %187 = vmatpush1.msra.mxu0 %v35
  %188 = vmatprep.subr.mxu0 %v32
  %189 = vmatpush1.msra.mxu0 %v31
  %190 = vmatprep.subr.mxu0 %v28
  %191 = vmatpush1.msra.mxu0 %v27
  %192 = vmatprep.subr.mxu0 %v24
  %193 = vmatpush1.msra.mxu0 %v23
  %194 = vmatprep.subr.mxu0 0.0
  %195 = vmatpush2.msra.mxu0 0.0
  %196 = vmatprep.subr.mxu0 0.0
  %197 = vmatpush2.msra.mxu0 0.0
  %198 = vmatprep.subr.mxu0 0.0
  %199 = vmatpush2.msra.mxu0 0.0
  %200 = vmatprep.subr.mxu0 0.0
  %201 = vmatpush2.msra.mxu0 0.0
  %202 = vmatprep.subr.mxu0 0.0
  %203 = vmatpush2.msra.mxu0 0.0
  %204 = vmatprep.subr.mxu0 0.0
  %205 = vmatpush2.msra.mxu0 0.0
  %206 = vmatprep.subr.mxu0 0.0
  %207 = vmatpush2.msra.mxu0 0.0
  %208 = vmatprep.subr.mxu0 0.0
  %209 = vmatpush2.msra.mxu0 0.0
  %210 = vmatprep.subr.mxu0 0.0
  %211 = vmatpush2.msra.mxu0 0.0
  %212 = vmatprep.subr.mxu0 0.0
  %213 = vmatpush2.msra.mxu0 0.0
  %214 = vmatprep.subr.mxu0 0.0
  %215 = vmatpush2.msra.mxu0 0.0
  %216 = vmatprep.subr.mxu0 0.0
  %217 = vmatpush2.msra.mxu0 0.0
  %218 = vmatprep.subr.mxu0 0.0
  %219 = vmatpush2.msra.mxu0 0.0
  %220 = vmatprep.subr.mxu0 0.0
  %221 = vmatpush2.msra.mxu0 0.0
  %222 = vmatprep.subr.mxu0 0.0
  %223 = vmatpush2.msra.mxu0 0.0
  %224 = vmatprep.subr.mxu0 0.0
  %225 = vmatpush2.msra.mxu0 0.0
  %226 = vmatprep.mubr.f32.mxu0 0.0
  %227 = vmatmul.mubr.f32.gmra.mxu0 %v85
  %v228 = vpop.f32.mrf.mxu0
  %v229 = vadd.f32 0.0, %v228
  %v230 = vpop.f32.mrf.mxu0
  %v231 = vadd.f32 0.0, %v230
  %232 = vdwg.mxu0
  %v233 = vadd.f32 %v87, %v158
  %v234 = vadd.f32 %v88, %v160
  %v235 = vadd.f32 %v89, %v229
  %v236 = vadd.f32 %v90, %v231
  %v237 = vxor.u32 %v233, 2147483648
  %v238 = vxor.u32 %v234, 2147483648
  %v239 = vxor.u32 %v235, 2147483648
  %v240 = vmul.f32 %v237, 1.442695
  %v241 = vpow.pop %v240
  %v242 = vmul.f32 %v238, 1.442695
  %v243 = vpow.pop %v242
  %v244 = vmul.f32 %v239, 1.442695
  %v245 = vpow.pop %v244
  %v246 = vadd.f32 %v241, 1.0
  %v247 = vadd.f32 %v243, 1.0
  %v248 = vadd.f32 %v245, 1.0
  %v249 = vrcp.pop %v246
  %v250 = vmul.f32 1.0, %v249
  %v251 = vrcp.pop %v247
  %v252 = vmul.f32 1.0, %v251
  %v253 = vrcp.pop %v248
  %v254 = vmul.f32 1.0, %v253
  %v255 = vtanh.pop %v236
  %v256 = vmul.f32 %v252, %v86
  %v257 = vmul.f32 %v250, %v255
  %v258 = vadd.f32 %v256, %v257
  %v259 = vtanh.pop %v258
  %v260 = vmul.f32 %v254, %v259
  %vm261 = vcmp.gt.s32.totalorder %v20, 0
  %v262 = vsel %vm261, 1, 0
  %263 = vset.pattern.permute.xlu0 0
  %264 = vperm.xlu0 %263, %v262
  %v265 = vpop.permute.xlu0 %264
  %vm266 = vcmp.eq.s32.totalorder %v265, 1
  %v267 = vsel %vm266, %v260, 0.0
  %268 = vst [vmem:[%s5] sm:$0xff] %v267
  %v269 = vsel %vm266, %v260, %v85
  %v270 = vsel %vm266, %v258, %v86
  %s271 = scalar_lea.vmem %s1, 32
  %v272 = vld [vmem:[%s271] sm:$0xff]
  %v273 = vld [vmem:[%s271 + $0x8] sm:$0xff]
  %v274 = vld [vmem:[%s271 + $0x10] sm:$0xff]
  %v275 = vld [vmem:[%s271 + $0x18] sm:$0xff]
  %276 = vmatprep.subr.mxu0 %v82
  %277 = vmatpush1.msra.mxu0 %v81
  %278 = vmatprep.subr.mxu0 %v78
  %279 = vmatpush1.msra.mxu0 %v77
  %280 = vmatprep.subr.mxu0 %v74
  %281 = vmatpush1.msra.mxu0 %v73
  %282 = vmatprep.subr.mxu0 %v70
  %283 = vmatpush1.msra.mxu0 %v69
  %284 = vmatprep.subr.mxu0 %v66
  %285 = vmatpush1.msra.mxu0 %v65
  %286 = vmatprep.subr.mxu0 %v62
  %287 = vmatpush1.msra.mxu0 %v61
  %288 = vmatprep.subr.mxu0 %v58
  %289 = vmatpush1.msra.mxu0 %v57
  %290 = vmatprep.subr.mxu0 %v54
  %291 = vmatpush1.msra.mxu0 %v53
  %292 = vmatprep.subr.mxu0 %v50
  %293 = vmatpush1.msra.mxu0 %v49
  %294 = vmatprep.subr.mxu0 %v46
  %295 = vmatpush1.msra.mxu0 %v45
  %296 = vmatprep.subr.mxu0 %v42
  %297 = vmatpush1.msra.mxu0 %v41
  %298 = vmatprep.subr.mxu0 %v38
  %299 = vmatpush1.msra.mxu0 %v37
  %300 = vmatprep.subr.mxu0 %v34
  %301 = vmatpush1.msra.mxu0 %v33
  %302 = vmatprep.subr.mxu0 %v30
  %303 = vmatpush1.msra.mxu0 %v29
  %304 = vmatprep.subr.mxu0 %v26
  %305 = vmatpush1.msra.mxu0 %v25
  %306 = vmatprep.subr.mxu0 %v22
  %307 = vmatpush1.msra.mxu0 %v21
  %308 = vmatprep.subr.mxu0 0.0
  %309 = vmatpush2.msra.mxu0 0.0
  %310 = vmatprep.subr.mxu0 0.0
  %311 = vmatpush2.msra.mxu0 0.0
  %312 = vmatprep.subr.mxu0 0.0
  %313 = vmatpush2.msra.mxu0 0.0
  %314 = vmatprep.subr.mxu0 0.0
  %315 = vmatpush2.msra.mxu0 0.0
  %316 = vmatprep.subr.mxu0 0.0
  %317 = vmatpush2.msra.mxu0 0.0
  %318 = vmatprep.subr.mxu0 0.0
  %319 = vmatpush2.msra.mxu0 0.0
  %320 = vmatprep.subr.mxu0 0.0
  %321 = vmatpush2.msra.mxu0 0.0
  %322 = vmatprep.subr.mxu0 0.0
  %323 = vmatpush2.msra.mxu0 0.0
  %324 = vmatprep.subr.mxu0 0.0
  %325 = vmatpush2.msra.mxu0 0.0
  %326 = vmatprep.subr.mxu0 0.0
  %327 = vmatpush2.msra.mxu0 0.0
  %328 = vmatprep.subr.mxu0 0.0
  %329 = vmatpush2.msra.mxu0 0.0
  %330 = vmatprep.subr.mxu0 0.0
  %331 = vmatpush2.msra.mxu0 0.0
  %332 = vmatprep.subr.mxu0 0.0
  %333 = vmatpush2.msra.mxu0 0.0
  %334 = vmatprep.subr.mxu0 0.0
  %335 = vmatpush2.msra.mxu0 0.0
  %336 = vmatprep.subr.mxu0 0.0
  %337 = vmatpush2.msra.mxu0 0.0
  %338 = vmatprep.subr.mxu0 0.0
  %339 = vmatpush2.msra.mxu0 0.0
  %340 = vmatprep.mubr.f32.mxu0 0.0
  %341 = vmatmul.mubr.f32.gmra.mxu0 %v269
  %v342 = vpop.f32.mrf.mxu0
  %v343 = vadd.f32 0.0, %v342
  %v344 = vpop.f32.mrf.mxu0
  %v345 = vadd.f32 0.0, %v344
  %346 = vdwg.mxu0
  %347 = vmatprep.subr.mxu0 %v84
  %348 = vmatpush1.msra.mxu0 %v83
  %349 = vmatprep.subr.mxu0 %v80
  %350 = vmatpush1.msra.mxu0 %v79
  %351 = vmatprep.subr.mxu0 %v76
  %352 = vmatpush1.msra.mxu0 %v75
  %353 = vmatprep.subr.mxu0 %v72
  %354 = vmatpush1.msra.mxu0 %v71
  %355 = vmatprep.subr.mxu0 %v68
  %356 = vmatpush1.msra.mxu0 %v67
  %357 = vmatprep.subr.mxu0 %v64
  %358 = vmatpush1.msra.mxu0 %v63
  %359 = vmatprep.subr.mxu0 %v60
  %360 = vmatpush1.msra.mxu0 %v59
  %361 = vmatprep.subr.mxu0 %v56
  %362 = vmatpush1.msra.mxu0 %v55
  %363 = vmatprep.subr.mxu0 %v52
  %364 = vmatpush1.msra.mxu0 %v51
  %365 = vmatprep.subr.mxu0 %v48
  %366 = vmatpush1.msra.mxu0 %v47
  %367 = vmatprep.subr.mxu0 %v44
  %368 = vmatpush1.msra.mxu0 %v43
  %369 = vmatprep.subr.mxu0 %v40
  %370 = vmatpush1.msra.mxu0 %v39
  %371 = vmatprep.subr.mxu0 %v36
  %372 = vmatpush1.msra.mxu0 %v35
  %373 = vmatprep.subr.mxu0 %v32
  %374 = vmatpush1.msra.mxu0 %v31
  %375 = vmatprep.subr.mxu0 %v28
  %376 = vmatpush1.msra.mxu0 %v27
  %377 = vmatprep.subr.mxu0 %v24
  %378 = vmatpush1.msra.mxu0 %v23
  %379 = vmatprep.subr.mxu0 0.0
  %380 = vmatpush2.msra.mxu0 0.0
  %381 = vmatprep.subr.mxu0 0.0
  %382 = vmatpush2.msra.mxu0 0.0
  %383 = vmatprep.subr.mxu0 0.0
  %384 = vmatpush2.msra.mxu0 0.0
  %385 = vmatprep.subr.mxu0 0.0
  %386 = vmatpush2.msra.mxu0 0.0
  %387 = vmatprep.subr.mxu0 0.0
  %388 = vmatpush2.msra.mxu0 0.0
  %389 = vmatprep.subr.mxu0 0.0
  %390 = vmatpush2.msra.mxu0 0.0
  %391 = vmatprep.subr.mxu0 0.0
  %392 = vmatpush2.msra.mxu0 0.0
  %393 = vmatprep.subr.mxu0 0.0
  %394 = vmatpush2.msra.mxu0 0.0
  %395 = vmatprep.subr.mxu0 0.0
  %396 = vmatpush2.msra.mxu0 0.0
  %397 = vmatprep.subr.mxu0 0.0
  %398 = vmatpush2.msra.mxu0 0.0
  %399 = vmatprep.subr.mxu0 0.0
  %400 = vmatpush2.msra.mxu0 0.0
  %401 = vmatprep.subr.mxu0 0.0
  %402 = vmatpush2.msra.mxu0 0.0
  %403 = vmatprep.subr.mxu0 0.0
  %404 = vmatpush2.msra.mxu0 0.0
  %405 = vmatprep.subr.mxu0 0.0
  %406 = vmatpush2.msra.mxu0 0.0
  %407 = vmatprep.subr.mxu0 0.0
  %408 = vmatpush2.msra.mxu0 0.0
  %409 = vmatprep.subr.mxu0 0.0
  %410 = vmatpush2.msra.mxu0 0.0
  %411 = vmatprep.mubr.f32.mxu0 0.0
  %412 = vmatmul.mubr.f32.gmra.mxu0 %v269
  %v413 = vpop.f32.mrf.mxu0
  %v414 = vadd.f32 0.0, %v413
  %v415 = vpop.f32.mrf.mxu0
  %v416 = vadd.f32 0.0, %v415
  %417 = vdwg.mxu0
  %v418 = vadd.f32 %v272, %v343
  %v419 = vadd.f32 %v273, %v345
  %v420 = vadd.f32 %v274, %v414
  %v421 = vadd.f32 %v275, %v416
  %v422 = vxor.u32 %v418, 2147483648
  %v423 = vxor.u32 %v419, 2147483648
  %v424 = vxor.u32 %v420, 2147483648
  %v425 = vmul.f32 %v422, 1.442695
  %v426 = vpow.pop %v425
  %v427 = vmul.f32 %v423, 1.442695
  %v428 = vpow.pop %v427
  %v429 = vmul.f32 %v424, 1.442695
  %v430 = vpow.pop %v429
  %v431 = vadd.f32 %v426, 1.0
  %v432 = vadd.f32 %v428, 1.0
  %v433 = vadd.f32 %v430, 1.0
  %v434 = vrcp.pop %v431
  %v435 = vmul.f32 1.0, %v434
  %v436 = vrcp.pop %v432
  %v437 = vmul.f32 1.0, %v436
  %v438 = vrcp.pop %v433
  %v439 = vmul.f32 1.0, %v438
  %v440 = vtanh.pop %v421
  %v441 = vmul.f32 %v437, %v270
  %v442 = vmul.f32 %v435, %v440
  %v443 = vadd.f32 %v441, %v442
  %v444 = vtanh.pop %v443
  %v445 = vmul.f32 %v439, %v444
  %vm446 = vcmp.gt.s32.totalorder %v20, 1
  %v447 = vsel %vm446, 1, 0
  %448 = vset.pattern.permute.xlu0 0
  %449 = vperm.xlu0 %448, %v447
  %v450 = vpop.permute.xlu0 %449
  %vm451 = vcmp.eq.s32.totalorder %v450, 1
  %v452 = vsel %vm451, %v445, 0.0
  %s453 = scalar_lea.vmem %s5, 8
  %454 = vst [vmem:[%s453] sm:$0xff] %v452
  %v455 = vsel %vm451, %v445, %v269
  %v456 = vsel %vm451, %v443, %v270
  %s457 = scalar_lea.vmem %s1, 64
  %v458 = vld [vmem:[%s457] sm:$0xff]
  %v459 = vld [vmem:[%s457 + $0x8] sm:$0xff]
  %v460 = vld [vmem:[%s457 + $0x10] sm:$0xff]
  %v461 = vld [vmem:[%s457 + $0x18] sm:$0xff]
  %462 = vmatprep.subr.mxu0 %v82
  %463 = vmatpush1.msra.mxu0 %v81
  %464 = vmatprep.subr.mxu0 %v78
  %465 = vmatpush1.msra.mxu0 %v77
  %466 = vmatprep.subr.mxu0 %v74
  %467 = vmatpush1.msra.mxu0 %v73
  %468 = vmatprep.subr.mxu0 %v70
  %469 = vmatpush1.msra.mxu0 %v69
  %470 = vmatprep.subr.mxu0 %v66
  %471 = vmatpush1.msra.mxu0 %v65
  %472 = vmatprep.subr.mxu0 %v62
  %473 = vmatpush1.msra.mxu0 %v61
  %474 = vmatprep.subr.mxu0 %v58
  %475 = vmatpush1.msra.mxu0 %v57
  %476 = vmatprep.subr.mxu0 %v54
  %477 = vmatpush1.msra.mxu0 %v53
  %478 = vmatprep.subr.mxu0 %v50
  %479 = vmatpush1.msra.mxu0 %v49
  %480 = vmatprep.subr.mxu0 %v46
  %481 = vmatpush1.msra.mxu0 %v45
  %482 = vmatprep.subr.mxu0 %v42
  %483 = vmatpush1.msra.mxu0 %v41
  %484 = vmatprep.subr.mxu0 %v38
  %485 = vmatpush1.msra.mxu0 %v37
  %486 = vmatprep.subr.mxu0 %v34
  %487 = vmatpush1.msra.mxu0 %v33
  %488 = vmatprep.subr.mxu0 %v30
  %489 = vmatpush1.msra.mxu0 %v29
  %490 = vmatprep.subr.mxu0 %v26
  %491 = vmatpush1.msra.mxu0 %v25
  %492 = vmatprep.subr.mxu0 %v22
  %493 = vmatpush1.msra.mxu0 %v21
  %494 = vmatprep.subr.mxu0 0.0
  %495 = vmatpush2.msra.mxu0 0.0
  %496 = vmatprep.subr.mxu0 0.0
  %497 = vmatpush2.msra.mxu0 0.0
  %498 = vmatprep.subr.mxu0 0.0
  %499 = vmatpush2.msra.mxu0 0.0
  %500 = vmatprep.subr.mxu0 0.0
  %501 = vmatpush2.msra.mxu0 0.0
  %502 = vmatprep.subr.mxu0 0.0
  %503 = vmatpush2.msra.mxu0 0.0
  %504 = vmatprep.subr.mxu0 0.0
  %505 = vmatpush2.msra.mxu0 0.0
  %506 = vmatprep.subr.mxu0 0.0
  %507 = vmatpush2.msra.mxu0 0.0
  %508 = vmatprep.subr.mxu0 0.0
  %509 = vmatpush2.msra.mxu0 0.0
  %510 = vmatprep.subr.mxu0 0.0
  %511 = vmatpush2.msra.mxu0 0.0
  %512 = vmatprep.subr.mxu0 0.0
  %513 = vmatpush2.msra.mxu0 0.0
  %514 = vmatprep.subr.mxu0 0.0
  %515 = vmatpush2.msra.mxu0 0.0
  %516 = vmatprep.subr.mxu0 0.0
  %517 = vmatpush2.msra.mxu0 0.0
  %518 = vmatprep.subr.mxu0 0.0
  %519 = vmatpush2.msra.mxu0 0.0
  %520 = vmatprep.subr.mxu0 0.0
  %521 = vmatpush2.msra.mxu0 0.0
  %522 = vmatprep.subr.mxu0 0.0
  %523 = vmatpush2.msra.mxu0 0.0
  %524 = vmatprep.subr.mxu0 0.0
  %525 = vmatpush2.msra.mxu0 0.0
  %526 = vmatprep.mubr.f32.mxu0 0.0
  %527 = vmatmul.mubr.f32.gmra.mxu0 %v455
  %v528 = vpop.f32.mrf.mxu0
  %v529 = vadd.f32 0.0, %v528
  %v530 = vpop.f32.mrf.mxu0
  %v531 = vadd.f32 0.0, %v530
  %532 = vdwg.mxu0
  %533 = vmatprep.subr.mxu0 %v84
  %534 = vmatpush1.msra.mxu0 %v83
  %535 = vmatprep.subr.mxu0 %v80
  %536 = vmatpush1.msra.mxu0 %v79
  %537 = vmatprep.subr.mxu0 %v76
  %538 = vmatpush1.msra.mxu0 %v75
  %539 = vmatprep.subr.mxu0 %v72
  %540 = vmatpush1.msra.mxu0 %v71
  %541 = vmatprep.subr.mxu0 %v68
  %542 = vmatpush1.msra.mxu0 %v67
  %543 = vmatprep.subr.mxu0 %v64
  %544 = vmatpush1.msra.mxu0 %v63
  %545 = vmatprep.subr.mxu0 %v60
  %546 = vmatpush1.msra.mxu0 %v59
  %547 = vmatprep.subr.mxu0 %v56
  %548 = vmatpush1.msra.mxu0 %v55
  %549 = vmatprep.subr.mxu0 %v52
  %550 = vmatpush1.msra.mxu0 %v51
  %551 = vmatprep.subr.mxu0 %v48
  %552 = vmatpush1.msra.mxu0 %v47
  %553 = vmatprep.subr.mxu0 %v44
  %554 = vmatpush1.msra.mxu0 %v43
  %555 = vmatprep.subr.mxu0 %v40
  %556 = vmatpush1.msra.mxu0 %v39
  %557 = vmatprep.subr.mxu0 %v36
  %558 = vmatpush1.msra.mxu0 %v35
  %559 = vmatprep.subr.mxu0 %v32
  %560 = vmatpush1.msra.mxu0 %v31
  %561 = vmatprep.subr.mxu0 %v28
  %562 = vmatpush1.msra.mxu0 %v27
  %563 = vmatprep.subr.mxu0 %v24
  %564 = vmatpush1.msra.mxu0 %v23
  %565 = vmatprep.subr.mxu0 0.0
  %566 = vmatpush2.msra.mxu0 0.0
  %567 = vmatprep.subr.mxu0 0.0
  %568 = vmatpush2.msra.mxu0 0.0
  %569 = vmatprep.subr.mxu0 0.0
  %570 = vmatpush2.msra.mxu0 0.0
  %571 = vmatprep.subr.mxu0 0.0
  %572 = vmatpush2.msra.mxu0 0.0
  %573 = vmatprep.subr.mxu0 0.0
  %574 = vmatpush2.msra.mxu0 0.0
  %575 = vmatprep.subr.mxu0 0.0
  %576 = vmatpush2.msra.mxu0 0.0
  %577 = vmatprep.subr.mxu0 0.0
  %578 = vmatpush2.msra.mxu0 0.0
  %579 = vmatprep.subr.mxu0 0.0
  %580 = vmatpush2.msra.mxu0 0.0
  %581 = vmatprep.subr.mxu0 0.0
  %582 = vmatpush2.msra.mxu0 0.0
  %583 = vmatprep.subr.mxu0 0.0
  %584 = vmatpush2.msra.mxu0 0.0
  %585 = vmatprep.subr.mxu0 0.0
  %586 = vmatpush2.msra.mxu0 0.0
  %587 = vmatprep.subr.mxu0 0.0
  %588 = vmatpush2.msra.mxu0 0.0
  %589 = vmatprep.subr.mxu0 0.0
  %590 = vmatpush2.msra.mxu0 0.0
  %591 = vmatprep.subr.mxu0 0.0
  %592 = vmatpush2.msra.mxu0 0.0
  %593 = vmatprep.subr.mxu0 0.0
  %594 = vmatpush2.msra.mxu0 0.0
  %595 = vmatprep.subr.mxu0 0.0
  %596 = vmatpush2.msra.mxu0 0.0
  %597 = vmatprep.mubr.f32.mxu0 0.0
  %598 = vmatmul.mubr.f32.gmra.mxu0 %v455
  %v599 = vpop.f32.mrf.mxu0
  %v600 = vadd.f32 0.0, %v599
  %v601 = vpop.f32.mrf.mxu0
  %v602 = vadd.f32 0.0, %v601
  %603 = vdwg.mxu0
  %v604 = vadd.f32 %v458, %v529
  %v605 = vadd.f32 %v459, %v531
  %v606 = vadd.f32 %v460, %v600
  %v607 = vadd.f32 %v461, %v602
  %v608 = vxor.u32 %v604, 2147483648
  %v609 = vxor.u32 %v605, 2147483648
  %v610 = vxor.u32 %v606, 2147483648
  %v611 = vmul.f32 %v608, 1.442695
  %v612 = vpow.pop %v611
  %v613 = vmul.f32 %v609, 1.442695
  %v614 = vpow.pop %v613
  %v615 = vmul.f32 %v610, 1.442695
  %v616 = vpow.pop %v615
  %v617 = vadd.f32 %v612, 1.0
  %v618 = vadd.f32 %v614, 1.0
  %v619 = vadd.f32 %v616, 1.0
  %v620 = vrcp.pop %v617
  %v621 = vmul.f32 1.0, %v620
  %v622 = vrcp.pop %v618
  %v623 = vmul.f32 1.0, %v622
  %v624 = vrcp.pop %v619
  %v625 = vmul.f32 1.0, %v624
  %v626 = vtanh.pop %v607
  %v627 = vmul.f32 %v623, %v456
  %v628 = vmul.f32 %v621, %v626
  %v629 = vadd.f32 %v627, %v628
  %v630 = vtanh.pop %v629
  %v631 = vmul.f32 %v625, %v630
  %vm632 = vcmp.gt.s32.totalorder %v20, 2
  %v633 = vsel %vm632, 1, 0
  %634 = vset.pattern.permute.xlu0 0
  %635 = vperm.xlu0 %634, %v633
  %v636 = vpop.permute.xlu0 %635
  %vm637 = vcmp.eq.s32.totalorder %v636, 1
  %v638 = vsel %vm637, %v631, 0.0
  %s639 = scalar_lea.vmem %s5, 16
  %640 = vst [vmem:[%s639] sm:$0xff] %v638
  %v641 = vsel %vm637, %v631, %v455
  %v642 = vsel %vm637, %v629, %v456
  %s643 = scalar_lea.vmem %s1, 96
  %v644 = vld [vmem:[%s643] sm:$0xff]
  %v645 = vld [vmem:[%s643 + $0x8] sm:$0xff]
  %v646 = vld [vmem:[%s643 + $0x10] sm:$0xff]
  %v647 = vld [vmem:[%s643 + $0x18] sm:$0xff]
  %648 = vmatprep.subr.mxu0 %v82
  %649 = vmatpush1.msra.mxu0 %v81
  %650 = vmatprep.subr.mxu0 %v78
  %651 = vmatpush1.msra.mxu0 %v77
  %652 = vmatprep.subr.mxu0 %v74
  %653 = vmatpush1.msra.mxu0 %v73
  %654 = vmatprep.subr.mxu0 %v70
  %655 = vmatpush1.msra.mxu0 %v69
  %656 = vmatprep.subr.mxu0 %v66
  %657 = vmatpush1.msra.mxu0 %v65
  %658 = vmatprep.subr.mxu0 %v62
  %659 = vmatpush1.msra.mxu0 %v61
  %660 = vmatprep.subr.mxu0 %v58
  %661 = vmatpush1.msra.mxu0 %v57
  %662 = vmatprep.subr.mxu0 %v54
  %663 = vmatpush1.msra.mxu0 %v53
  %664 = vmatprep.subr.mxu0 %v50
  %665 = vmatpush1.msra.mxu0 %v49
  %666 = vmatprep.subr.mxu0 %v46
  %667 = vmatpush1.msra.mxu0 %v45
  %668 = vmatprep.subr.mxu0 %v42
  %669 = vmatpush1.msra.mxu0 %v41
  %670 = vmatprep.subr.mxu0 %v38
  %671 = vmatpush1.msra.mxu0 %v37
  %672 = vmatprep.subr.mxu0 %v34
  %673 = vmatpush1.msra.mxu0 %v33
  %674 = vmatprep.subr.mxu0 %v30
  %675 = vmatpush1.msra.mxu0 %v29
  %676 = vmatprep.subr.mxu0 %v26
  %677 = vmatpush1.msra.mxu0 %v25
  %678 = vmatprep.subr.mxu0 %v22
  %679 = vmatpush1.msra.mxu0 %v21
  %680 = vmatprep.subr.mxu0 0.0
  %681 = vmatpush2.msra.mxu0 0.0
  %682 = vmatprep.subr.mxu0 0.0
  %683 = vmatpush2.msra.mxu0 0.0
  %684 = vmatprep.subr.mxu0 0.0
  %685 = vmatpush2.msra.mxu0 0.0
  %686 = vmatprep.subr.mxu0 0.0
  %687 = vmatpush2.msra.mxu0 0.0
  %688 = vmatprep.subr.mxu0 0.0
  %689 = vmatpush2.msra.mxu0 0.0
  %690 = vmatprep.subr.mxu0 0.0
  %691 = vmatpush2.msra.mxu0 0.0
  %692 = vmatprep.subr.mxu0 0.0
  %693 = vmatpush2.msra.mxu0 0.0
  %694 = vmatprep.subr.mxu0 0.0
  %695 = vmatpush2.msra.mxu0 0.0
  %696 = vmatprep.subr.mxu0 0.0
  %697 = vmatpush2.msra.mxu0 0.0
  %698 = vmatprep.subr.mxu0 0.0
  %699 = vmatpush2.msra.mxu0 0.0
  %700 = vmatprep.subr.mxu0 0.0
  %701 = vmatpush2.msra.mxu0 0.0
  %702 = vmatprep.subr.mxu0 0.0
  %703 = vmatpush2.msra.mxu0 0.0
  %704 = vmatprep.subr.mxu0 0.0
  %705 = vmatpush2.msra.mxu0 0.0
  %706 = vmatprep.subr.mxu0 0.0
  %707 = vmatpush2.msra.mxu0 0.0
  %708 = vmatprep.subr.mxu0 0.0
  %709 = vmatpush2.msra.mxu0 0.0
  %710 = vmatprep.subr.mxu0 0.0
  %711 = vmatpush2.msra.mxu0 0.0
  %712 = vmatprep.mubr.f32.mxu0 0.0
  %713 = vmatmul.mubr.f32.gmra.mxu0 %v641
  %v714 = vpop.f32.mrf.mxu0
  %v715 = vadd.f32 0.0, %v714
  %v716 = vpop.f32.mrf.mxu0
  %v717 = vadd.f32 0.0, %v716
  %718 = vdwg.mxu0
  %719 = vmatprep.subr.mxu0 %v84
  %720 = vmatpush1.msra.mxu0 %v83
  %721 = vmatprep.subr.mxu0 %v80
  %722 = vmatpush1.msra.mxu0 %v79
  %723 = vmatprep.subr.mxu0 %v76
  %724 = vmatpush1.msra.mxu0 %v75
  %725 = vmatprep.subr.mxu0 %v72
  %726 = vmatpush1.msra.mxu0 %v71
  %727 = vmatprep.subr.mxu0 %v68
  %728 = vmatpush1.msra.mxu0 %v67
  %729 = vmatprep.subr.mxu0 %v64
  %730 = vmatpush1.msra.mxu0 %v63
  %731 = vmatprep.subr.mxu0 %v60
  %732 = vmatpush1.msra.mxu0 %v59
  %733 = vmatprep.subr.mxu0 %v56
  %734 = vmatpush1.msra.mxu0 %v55
  %735 = vmatprep.subr.mxu0 %v52
  %736 = vmatpush1.msra.mxu0 %v51
  %737 = vmatprep.subr.mxu0 %v48
  %738 = vmatpush1.msra.mxu0 %v47
  %739 = vmatprep.subr.mxu0 %v44
  %740 = vmatpush1.msra.mxu0 %v43
  %741 = vmatprep.subr.mxu0 %v40
  %742 = vmatpush1.msra.mxu0 %v39
  %743 = vmatprep.subr.mxu0 %v36
  %744 = vmatpush1.msra.mxu0 %v35
  %745 = vmatprep.subr.mxu0 %v32
  %746 = vmatpush1.msra.mxu0 %v31
  %747 = vmatprep.subr.mxu0 %v28
  %748 = vmatpush1.msra.mxu0 %v27
  %749 = vmatprep.subr.mxu0 %v24
  %750 = vmatpush1.msra.mxu0 %v23
  %751 = vmatprep.subr.mxu0 0.0
  %752 = vmatpush2.msra.mxu0 0.0
  %753 = vmatprep.subr.mxu0 0.0
  %754 = vmatpush2.msra.mxu0 0.0
  %755 = vmatprep.subr.mxu0 0.0
  %756 = vmatpush2.msra.mxu0 0.0
  %757 = vmatprep.subr.mxu0 0.0
  %758 = vmatpush2.msra.mxu0 0.0
  %759 = vmatprep.subr.mxu0 0.0
  %760 = vmatpush2.msra.mxu0 0.0
  %761 = vmatprep.subr.mxu0 0.0
  %762 = vmatpush2.msra.mxu0 0.0
  %763 = vmatprep.subr.mxu0 0.0
  %764 = vmatpush2.msra.mxu0 0.0
  %765 = vmatprep.subr.mxu0 0.0
  %766 = vmatpush2.msra.mxu0 0.0
  %767 = vmatprep.subr.mxu0 0.0
  %768 = vmatpush2.msra.mxu0 0.0
  %769 = vmatprep.subr.mxu0 0.0
  %770 = vmatpush2.msra.mxu0 0.0
  %771 = vmatprep.subr.mxu0 0.0
  %772 = vmatpush2.msra.mxu0 0.0
  %773 = vmatprep.subr.mxu0 0.0
  %774 = vmatpush2.msra.mxu0 0.0
  %775 = vmatprep.subr.mxu0 0.0
  %776 = vmatpush2.msra.mxu0 0.0
  %777 = vmatprep.subr.mxu0 0.0
  %778 = vmatpush2.msra.mxu0 0.0
  %779 = vmatprep.subr.mxu0 0.0
  %780 = vmatpush2.msra.mxu0 0.0
  %781 = vmatprep.subr.mxu0 0.0
  %782 = vmatpush2.msra.mxu0 0.0
  %783 = vmatprep.mubr.f32.mxu0 0.0
  %784 = vmatmul.mubr.f32.gmra.mxu0 %v641
  %v785 = vpop.f32.mrf.mxu0
  %v786 = vadd.f32 0.0, %v785
  %v787 = vpop.f32.mrf.mxu0
  %v788 = vadd.f32 0.0, %v787
  %789 = vdwg.mxu0
  %v790 = vadd.f32 %v644, %v715
  %v791 = vadd.f32 %v645, %v717
  %v792 = vadd.f32 %v646, %v786
  %v793 = vadd.f32 %v647, %v788
  %v794 = vxor.u32 %v790, 2147483648
  %v795 = vxor.u32 %v791, 2147483648
  %v796 = vxor.u32 %v792, 2147483648
  %v797 = vmul.f32 %v794, 1.442695
  %v798 = vpow.pop %v797
  %v799 = vmul.f32 %v795, 1.442695
  %v800 = vpow.pop %v799
  %v801 = vmul.f32 %v796, 1.442695
  %v802 = vpow.pop %v801
  %v803 = vadd.f32 %v798, 1.0
  %v804 = vadd.f32 %v800, 1.0
  %v805 = vadd.f32 %v802, 1.0
  %v806 = vrcp.pop %v803
  %v807 = vmul.f32 1.0, %v806
  %v808 = vrcp.pop %v804
  %v809 = vmul.f32 1.0, %v808
  %v810 = vrcp.pop %v805
  %v811 = vmul.f32 1.0, %v810
  %v812 = vtanh.pop %v793
  %v813 = vmul.f32 %v809, %v642
  %v814 = vmul.f32 %v807, %v812
  %v815 = vadd.f32 %v813, %v814
  %v816 = vtanh.pop %v815
  %v817 = vmul.f32 %v811, %v816
  %vm818 = vcmp.gt.s32.totalorder %v20, 3
  %v819 = vsel %vm818, 1, 0
  %820 = vset.pattern.permute.xlu0 0
  %821 = vperm.xlu0 %820, %v819
  %v822 = vpop.permute.xlu0 %821
  %vm823 = vcmp.eq.s32.totalorder %v822, 1
  %v824 = vsel %vm823, %v817, 0.0
  %s825 = scalar_lea.vmem %s5, 24
  %826 = vst [vmem:[%s825] sm:$0xff] %v824
  %v827 = vsel %vm823, %v817, %v641
  %v828 = vsel %vm823, %v815, %v642
  %s829 = scalar_lea.vmem %s1, 128
  %v830 = vld [vmem:[%s829] sm:$0xff]
  %v831 = vld [vmem:[%s829 + $0x8] sm:$0xff]
  %v832 = vld [vmem:[%s829 + $0x10] sm:$0xff]
  %v833 = vld [vmem:[%s829 + $0x18] sm:$0xff]
  %834 = vmatprep.subr.mxu0 %v82
  %835 = vmatpush1.msra.mxu0 %v81
  %836 = vmatprep.subr.mxu0 %v78
  %837 = vmatpush1.msra.mxu0 %v77
  %838 = vmatprep.subr.mxu0 %v74
  %839 = vmatpush1.msra.mxu0 %v73
  %840 = vmatprep.subr.mxu0 %v70
  %841 = vmatpush1.msra.mxu0 %v69
  %842 = vmatprep.subr.mxu0 %v66
  %843 = vmatpush1.msra.mxu0 %v65
  %844 = vmatprep.subr.mxu0 %v62
  %845 = vmatpush1.msra.mxu0 %v61
  %846 = vmatprep.subr.mxu0 %v58
  %847 = vmatpush1.msra.mxu0 %v57
  %848 = vmatprep.subr.mxu0 %v54
  %849 = vmatpush1.msra.mxu0 %v53
  %850 = vmatprep.subr.mxu0 %v50
  %851 = vmatpush1.msra.mxu0 %v49
  %852 = vmatprep.subr.mxu0 %v46
  %853 = vmatpush1.msra.mxu0 %v45
  %854 = vmatprep.subr.mxu0 %v42
  %855 = vmatpush1.msra.mxu0 %v41
  %856 = vmatprep.subr.mxu0 %v38
  %857 = vmatpush1.msra.mxu0 %v37
  %858 = vmatprep.subr.mxu0 %v34
  %859 = vmatpush1.msra.mxu0 %v33
  %860 = vmatprep.subr.mxu0 %v30
  %861 = vmatpush1.msra.mxu0 %v29
  %862 = vmatprep.subr.mxu0 %v26
  %863 = vmatpush1.msra.mxu0 %v25
  %864 = vmatprep.subr.mxu0 %v22
  %865 = vmatpush1.msra.mxu0 %v21
  %866 = vmatprep.subr.mxu0 0.0
  %867 = vmatpush2.msra.mxu0 0.0
  %868 = vmatprep.subr.mxu0 0.0
  %869 = vmatpush2.msra.mxu0 0.0
  %870 = vmatprep.subr.mxu0 0.0
  %871 = vmatpush2.msra.mxu0 0.0
  %872 = vmatprep.subr.mxu0 0.0
  %873 = vmatpush2.msra.mxu0 0.0
  %874 = vmatprep.subr.mxu0 0.0
  %875 = vmatpush2.msra.mxu0 0.0
  %876 = vmatprep.subr.mxu0 0.0
  %877 = vmatpush2.msra.mxu0 0.0
  %878 = vmatprep.subr.mxu0 0.0
  %879 = vmatpush2.msra.mxu0 0.0
  %880 = vmatprep.subr.mxu0 0.0
  %881 = vmatpush2.msra.mxu0 0.0
  %882 = vmatprep.subr.mxu0 0.0
  %883 = vmatpush2.msra.mxu0 0.0
  %884 = vmatprep.subr.mxu0 0.0
  %885 = vmatpush2.msra.mxu0 0.0
  %886 = vmatprep.subr.mxu0 0.0
  %887 = vmatpush2.msra.mxu0 0.0
  %888 = vmatprep.subr.mxu0 0.0
  %889 = vmatpush2.msra.mxu0 0.0
  %890 = vmatprep.subr.mxu0 0.0
  %891 = vmatpush2.msra.mxu0 0.0
  %892 = vmatprep.subr.mxu0 0.0
  %893 = vmatpush2.msra.mxu0 0.0
  %894 = vmatprep.subr.mxu0 0.0
  %895 = vmatpush2.msra.mxu0 0.0
  %896 = vmatprep.subr.mxu0 0.0
  %897 = vmatpush2.msra.mxu0 0.0
  %898 = vmatprep.mubr.f32.mxu0 0.0
  %899 = vmatmul.mubr.f32.gmra.mxu0 %v827
  %v900 = vpop.f32.mrf.mxu0
  %v901 = vadd.f32 0.0, %v900
  %v902 = vpop.f32.mrf.mxu0
  %v903 = vadd.f32 0.0, %v902
  %904 = vdwg.mxu0
  %905 = vmatprep.subr.mxu0 %v84
  %906 = vmatpush1.msra.mxu0 %v83
  %907 = vmatprep.subr.mxu0 %v80
  %908 = vmatpush1.msra.mxu0 %v79
  %909 = vmatprep.subr.mxu0 %v76
  %910 = vmatpush1.msra.mxu0 %v75
  %911 = vmatprep.subr.mxu0 %v72
  %912 = vmatpush1.msra.mxu0 %v71
  %913 = vmatprep.subr.mxu0 %v68
  %914 = vmatpush1.msra.mxu0 %v67
  %915 = vmatprep.subr.mxu0 %v64
  %916 = vmatpush1.msra.mxu0 %v63
  %917 = vmatprep.subr.mxu0 %v60
  %918 = vmatpush1.msra.mxu0 %v59
  %919 = vmatprep.subr.mxu0 %v56
  %920 = vmatpush1.msra.mxu0 %v55
  %921 = vmatprep.subr.mxu0 %v52
  %922 = vmatpush1.msra.mxu0 %v51
  %923 = vmatprep.subr.mxu0 %v48
  %924 = vmatpush1.msra.mxu0 %v47
  %925 = vmatprep.subr.mxu0 %v44
  %926 = vmatpush1.msra.mxu0 %v43
  %927 = vmatprep.subr.mxu0 %v40
  %928 = vmatpush1.msra.mxu0 %v39
  %929 = vmatprep.subr.mxu0 %v36
  %930 = vmatpush1.msra.mxu0 %v35
  %931 = vmatprep.subr.mxu0 %v32
  %932 = vmatpush1.msra.mxu0 %v31
  %933 = vmatprep.subr.mxu0 %v28
  %934 = vmatpush1.msra.mxu0 %v27
  %935 = vmatprep.subr.mxu0 %v24
  %936 = vmatpush1.msra.mxu0 %v23
  %937 = vmatprep.subr.mxu0 0.0
  %938 = vmatpush2.msra.mxu0 0.0
  %939 = vmatprep.subr.mxu0 0.0
  %940 = vmatpush2.msra.mxu0 0.0
  %941 = vmatprep.subr.mxu0 0.0
  %942 = vmatpush2.msra.mxu0 0.0
  %943 = vmatprep.subr.mxu0 0.0
  %944 = vmatpush2.msra.mxu0 0.0
  %945 = vmatprep.subr.mxu0 0.0
  %946 = vmatpush2.msra.mxu0 0.0
  %947 = vmatprep.subr.mxu0 0.0
  %948 = vmatpush2.msra.mxu0 0.0
  %949 = vmatprep.subr.mxu0 0.0
  %950 = vmatpush2.msra.mxu0 0.0
  %951 = vmatprep.subr.mxu0 0.0
  %952 = vmatpush2.msra.mxu0 0.0
  %953 = vmatprep.subr.mxu0 0.0
  %954 = vmatpush2.msra.mxu0 0.0
  %955 = vmatprep.subr.mxu0 0.0
  %956 = vmatpush2.msra.mxu0 0.0
  %957 = vmatprep.subr.mxu0 0.0
  %958 = vmatpush2.msra.mxu0 0.0
  %959 = vmatprep.subr.mxu0 0.0
  %960 = vmatpush2.msra.mxu0 0.0
  %961 = vmatprep.subr.mxu0 0.0
  %962 = vmatpush2.msra.mxu0 0.0
  %963 = vmatprep.subr.mxu0 0.0
  %964 = vmatpush2.msra.mxu0 0.0
  %965 = vmatprep.subr.mxu0 0.0
  %966 = vmatpush2.msra.mxu0 0.0
  %967 = vmatprep.subr.mxu0 0.0
  %968 = vmatpush2.msra.mxu0 0.0
  %969 = vmatprep.mubr.f32.mxu0 0.0
  %970 = vmatmul.mubr.f32.gmra.mxu0 %v827
  %v971 = vpop.f32.mrf.mxu0
  %v972 = vadd.f32 0.0, %v971
  %v973 = vpop.f32.mrf.mxu0
  %v974 = vadd.f32 0.0, %v973
  %975 = vdwg.mxu0
  %v976 = vadd.f32 %v830, %v901
  %v977 = vadd.f32 %v831, %v903
  %v978 = vadd.f32 %v832, %v972
  %v979 = vadd.f32 %v833, %v974
  %v980 = vxor.u32 %v976, 2147483648
  %v981 = vxor.u32 %v977, 2147483648
  %v982 = vxor.u32 %v978, 2147483648
  %v983 = vmul.f32 %v980, 1.442695
  %v984 = vpow.pop %v983
  %v985 = vmul.f32 %v981, 1.442695
  %v986 = vpow.pop %v985
  %v987 = vmul.f32 %v982, 1.442695
  %v988 = vpow.pop %v987
  %v989 = vadd.f32 %v984, 1.0
  %v990 = vadd.f32 %v986, 1.0
  %v991 = vadd.f32 %v988, 1.0
  %v992 = vrcp.pop %v989
  %v993 = vmul.f32 1.0, %v992
  %v994 = vrcp.pop %v990
  %v995 = vmul.f32 1.0, %v994
  %v996 = vrcp.pop %v991
  %v997 = vmul.f32 1.0, %v996
  %v998 = vtanh.pop %v979
  %v999 = vmul.f32 %v995, %v828
  %v1000 = vmul.f32 %v993, %v998
  %v1001 = vadd.f32 %v999, %v1000
  %v1002 = vtanh.pop %v1001
  %v1003 = vmul.f32 %v997, %v1002
  %vm1004 = vcmp.gt.s32.totalorder %v20, 4
  %v1005 = vsel %vm1004, 1, 0
  %1006 = vset.pattern.permute.xlu0 0
  %1007 = vperm.xlu0 %1006, %v1005
  %v1008 = vpop.permute.xlu0 %1007
  %vm1009 = vcmp.eq.s32.totalorder %v1008, 1
  %v1010 = vsel %vm1009, %v1003, 0.0
  %s1011 = scalar_lea.vmem %s5, 32
  %1012 = vst [vmem:[%s1011] sm:$0xff] %v1010
  %v1013 = vsel %vm1009, %v1003, %v827
  %v1014 = vsel %vm1009, %v1001, %v828
  %s1015 = scalar_lea.vmem %s1, 160
  %v1016 = vld [vmem:[%s1015] sm:$0xff]
  %v1017 = vld [vmem:[%s1015 + $0x8] sm:$0xff]
  %v1018 = vld [vmem:[%s1015 + $0x10] sm:$0xff]
  %v1019 = vld [vmem:[%s1015 + $0x18] sm:$0xff]
  %1020 = vmatprep.subr.mxu0 %v82
  %1021 = vmatpush1.msra.mxu0 %v81
  %1022 = vmatprep.subr.mxu0 %v78
  %1023 = vmatpush1.msra.mxu0 %v77
  %1024 = vmatprep.subr.mxu0 %v74
  %1025 = vmatpush1.msra.mxu0 %v73
  %1026 = vmatprep.subr.mxu0 %v70
  %1027 = vmatpush1.msra.mxu0 %v69
  %1028 = vmatprep.subr.mxu0 %v66
  %1029 = vmatpush1.msra.mxu0 %v65
  %1030 = vmatprep.subr.mxu0 %v62
  %1031 = vmatpush1.msra.mxu0 %v61
  %1032 = vmatprep.subr.mxu0 %v58
  %1033 = vmatpush1.msra.mxu0 %v57
  %1034 = vmatprep.subr.mxu0 %v54
  %1035 = vmatpush1.msra.mxu0 %v53
  %1036 = vmatprep.subr.mxu0 %v50
  %1037 = vmatpush1.msra.mxu0 %v49
  %1038 = vmatprep.subr.mxu0 %v46
  %1039 = vmatpush1.msra.mxu0 %v45
  %1040 = vmatprep.subr.mxu0 %v42
  %1041 = vmatpush1.msra.mxu0 %v41
  %1042 = vmatprep.subr.mxu0 %v38
  %1043 = vmatpush1.msra.mxu0 %v37
  %1044 = vmatprep.subr.mxu0 %v34
  %1045 = vmatpush1.msra.mxu0 %v33
  %1046 = vmatprep.subr.mxu0 %v30
  %1047 = vmatpush1.msra.mxu0 %v29
  %1048 = vmatprep.subr.mxu0 %v26
  %1049 = vmatpush1.msra.mxu0 %v25
  %1050 = vmatprep.subr.mxu0 %v22
  %1051 = vmatpush1.msra.mxu0 %v21
  %1052 = vmatprep.subr.mxu0 0.0
  %1053 = vmatpush2.msra.mxu0 0.0
  %1054 = vmatprep.subr.mxu0 0.0
  %1055 = vmatpush2.msra.mxu0 0.0
  %1056 = vmatprep.subr.mxu0 0.0
  %1057 = vmatpush2.msra.mxu0 0.0
  %1058 = vmatprep.subr.mxu0 0.0
  %1059 = vmatpush2.msra.mxu0 0.0
  %1060 = vmatprep.subr.mxu0 0.0
  %1061 = vmatpush2.msra.mxu0 0.0
  %1062 = vmatprep.subr.mxu0 0.0
  %1063 = vmatpush2.msra.mxu0 0.0
  %1064 = vmatprep.subr.mxu0 0.0
  %1065 = vmatpush2.msra.mxu0 0.0
  %1066 = vmatprep.subr.mxu0 0.0
  %1067 = vmatpush2.msra.mxu0 0.0
  %1068 = vmatprep.subr.mxu0 0.0
  %1069 = vmatpush2.msra.mxu0 0.0
  %1070 = vmatprep.subr.mxu0 0.0
  %1071 = vmatpush2.msra.mxu0 0.0
  %1072 = vmatprep.subr.mxu0 0.0
  %1073 = vmatpush2.msra.mxu0 0.0
  %1074 = vmatprep.subr.mxu0 0.0
  %1075 = vmatpush2.msra.mxu0 0.0
  %1076 = vmatprep.subr.mxu0 0.0
  %1077 = vmatpush2.msra.mxu0 0.0
  %1078 = vmatprep.subr.mxu0 0.0
  %1079 = vmatpush2.msra.mxu0 0.0
  %1080 = vmatprep.subr.mxu0 0.0
  %1081 = vmatpush2.msra.mxu0 0.0
  %1082 = vmatprep.subr.mxu0 0.0
  %1083 = vmatpush2.msra.mxu0 0.0
  %1084 = vmatprep.mubr.f32.mxu0 0.0
  %1085 = vmatmul.mubr.f32.gmra.mxu0 %v1013
  %v1086 = vpop.f32.mrf.mxu0
  %v1087 = vadd.f32 0.0, %v1086
  %v1088 = vpop.f32.mrf.mxu0
  %v1089 = vadd.f32 0.0, %v1088
  %1090 = vdwg.mxu0
  %1091 = vmatprep.subr.mxu0 %v84
  %1092 = vmatpush1.msra.mxu0 %v83
  %1093 = vmatprep.subr.mxu0 %v80
  %1094 = vmatpush1.msra.mxu0 %v79
  %1095 = vmatprep.subr.mxu0 %v76
  %1096 = vmatpush1.msra.mxu0 %v75
  %1097 = vmatprep.subr.mxu0 %v72
  %1098 = vmatpush1.msra.mxu0 %v71
  %1099 = vmatprep.subr.mxu0 %v68
  %1100 = vmatpush1.msra.mxu0 %v67
  %1101 = vmatprep.subr.mxu0 %v64
  %1102 = vmatpush1.msra.mxu0 %v63
  %1103 = vmatprep.subr.mxu0 %v60
  %1104 = vmatpush1.msra.mxu0 %v59
  %1105 = vmatprep.subr.mxu0 %v56
  %1106 = vmatpush1.msra.mxu0 %v55
  %1107 = vmatprep.subr.mxu0 %v52
  %1108 = vmatpush1.msra.mxu0 %v51
  %1109 = vmatprep.subr.mxu0 %v48
  %1110 = vmatpush1.msra.mxu0 %v47
  %1111 = vmatprep.subr.mxu0 %v44
  %1112 = vmatpush1.msra.mxu0 %v43
  %1113 = vmatprep.subr.mxu0 %v40
  %1114 = vmatpush1.msra.mxu0 %v39
  %1115 = vmatprep.subr.mxu0 %v36
  %1116 = vmatpush1.msra.mxu0 %v35
  %1117 = vmatprep.subr.mxu0 %v32
  %1118 = vmatpush1.msra.mxu0 %v31
  %1119 = vmatprep.subr.mxu0 %v28
  %1120 = vmatpush1.msra.mxu0 %v27
  %1121 = vmatprep.subr.mxu0 %v24
  %1122 = vmatpush1.msra.mxu0 %v23
  %1123 = vmatprep.subr.mxu0 0.0
  %1124 = vmatpush2.msra.mxu0 0.0
  %1125 = vmatprep.subr.mxu0 0.0
  %1126 = vmatpush2.msra.mxu0 0.0
  %1127 = vmatprep.subr.mxu0 0.0
  %1128 = vmatpush2.msra.mxu0 0.0
  %1129 = vmatprep.subr.mxu0 0.0
  %1130 = vmatpush2.msra.mxu0 0.0
  %1131 = vmatprep.subr.mxu0 0.0
  %1132 = vmatpush2.msra.mxu0 0.0
  %1133 = vmatprep.subr.mxu0 0.0
  %1134 = vmatpush2.msra.mxu0 0.0
  %1135 = vmatprep.subr.mxu0 0.0
  %1136 = vmatpush2.msra.mxu0 0.0
  %1137 = vmatprep.subr.mxu0 0.0
  %1138 = vmatpush2.msra.mxu0 0.0
  %1139 = vmatprep.subr.mxu0 0.0
  %1140 = vmatpush2.msra.mxu0 0.0
  %1141 = vmatprep.subr.mxu0 0.0
  %1142 = vmatpush2.msra.mxu0 0.0
  %1143 = vmatprep.subr.mxu0 0.0
  %1144 = vmatpush2.msra.mxu0 0.0
  %1145 = vmatprep.subr.mxu0 0.0
  %1146 = vmatpush2.msra.mxu0 0.0
  %1147 = vmatprep.subr.mxu0 0.0
  %1148 = vmatpush2.msra.mxu0 0.0
  %1149 = vmatprep.subr.mxu0 0.0
  %1150 = vmatpush2.msra.mxu0 0.0
  %1151 = vmatprep.subr.mxu0 0.0
  %1152 = vmatpush2.msra.mxu0 0.0
  %1153 = vmatprep.subr.mxu0 0.0
  %1154 = vmatpush2.msra.mxu0 0.0
  %1155 = vmatprep.mubr.f32.mxu0 0.0
  %1156 = vmatmul.mubr.f32.gmra.mxu0 %v1013
  %v1157 = vpop.f32.mrf.mxu0
  %v1158 = vadd.f32 0.0, %v1157
  %v1159 = vpop.f32.mrf.mxu0
  %v1160 = vadd.f32 0.0, %v1159
  %1161 = vdwg.mxu0
  %v1162 = vadd.f32 %v1016, %v1087
  %v1163 = vadd.f32 %v1017, %v1089
  %v1164 = vadd.f32 %v1018, %v1158
  %v1165 = vadd.f32 %v1019, %v1160
  %v1166 = vxor.u32 %v1162, 2147483648
  %v1167 = vxor.u32 %v1163, 2147483648
  %v1168 = vxor.u32 %v1164, 2147483648
  %v1169 = vmul.f32 %v1166, 1.442695
  %v1170 = vpow.pop %v1169
  %v1171 = vmul.f32 %v1167, 1.442695
  %v1172 = vpow.pop %v1171
  %v1173 = vmul.f32 %v1168, 1.442695
  %v1174 = vpow.pop %v1173
  %v1175 = vadd.f32 %v1170, 1.0
  %v1176 = vadd.f32 %v1172, 1.0
  %v1177 = vadd.f32 %v1174, 1.0
  %v1178 = vrcp.pop %v1175
  %v1179 = vmul.f32 1.0, %v1178
  %v1180 = vrcp.pop %v1176
  %v1181 = vmul.f32 1.0, %v1180
  %v1182 = vrcp.pop %v1177
  %v1183 = vmul.f32 1.0, %v1182
  %v1184 = vtanh.pop %v1165
  %v1185 = vmul.f32 %v1181, %v1014
  %v1186 = vmul.f32 %v1179, %v1184
  %v1187 = vadd.f32 %v1185, %v1186
  %v1188 = vtanh.pop %v1187
  %v1189 = vmul.f32 %v1183, %v1188
  %vm1190 = vcmp.gt.s32.totalorder %v20, 5
  %v1191 = vsel %vm1190, 1, 0
  %1192 = vset.pattern.permute.xlu0 0
  %1193 = vperm.xlu0 %1192, %v1191
  %v1194 = vpop.permute.xlu0 %1193
  %vm1195 = vcmp.eq.s32.totalorder %v1194, 1
  %v1196 = vsel %vm1195, %v1189, 0.0
  %s1197 = scalar_lea.vmem %s5, 40
  %1198 = vst [vmem:[%s1197] sm:$0xff] %v1196
  %v1199 = vsel %vm1195, %v1189, %v1013
  %v1200 = vsel %vm1195, %v1187, %v1014
  %s1201 = scalar_lea.vmem %s1, 192
  %v1202 = vld [vmem:[%s1201] sm:$0xff]
  %v1203 = vld [vmem:[%s1201 + $0x8] sm:$0xff]
  %v1204 = vld [vmem:[%s1201 + $0x10] sm:$0xff]
  %v1205 = vld [vmem:[%s1201 + $0x18] sm:$0xff]
  %1206 = vmatprep.subr.mxu0 %v82
  %1207 = vmatpush1.msra.mxu0 %v81
  %1208 = vmatprep.subr.mxu0 %v78
  %1209 = vmatpush1.msra.mxu0 %v77
  %1210 = vmatprep.subr.mxu0 %v74
  %1211 = vmatpush1.msra.mxu0 %v73
  %1212 = vmatprep.subr.mxu0 %v70
  %1213 = vmatpush1.msra.mxu0 %v69
  %1214 = vmatprep.subr.mxu0 %v66
  %1215 = vmatpush1.msra.mxu0 %v65
  %1216 = vmatprep.subr.mxu0 %v62
  %1217 = vmatpush1.msra.mxu0 %v61
  %1218 = vmatprep.subr.mxu0 %v58
  %1219 = vmatpush1.msra.mxu0 %v57
  %1220 = vmatprep.subr.mxu0 %v54
  %1221 = vmatpush1.msra.mxu0 %v53
  %1222 = vmatprep.subr.mxu0 %v50
  %1223 = vmatpush1.msra.mxu0 %v49
  %1224 = vmatprep.subr.mxu0 %v46
  %1225 = vmatpush1.msra.mxu0 %v45
  %1226 = vmatprep.subr.mxu0 %v42
  %1227 = vmatpush1.msra.mxu0 %v41
  %1228 = vmatprep.subr.mxu0 %v38
  %1229 = vmatpush1.msra.mxu0 %v37
  %1230 = vmatprep.subr.mxu0 %v34
  %1231 = vmatpush1.msra.mxu0 %v33
  %1232 = vmatprep.subr.mxu0 %v30
  %1233 = vmatpush1.msra.mxu0 %v29
  %1234 = vmatprep.subr.mxu0 %v26
  %1235 = vmatpush1.msra.mxu0 %v25
  %1236 = vmatprep.subr.mxu0 %v22
  %1237 = vmatpush1.msra.mxu0 %v21
  %1238 = vmatprep.subr.mxu0 0.0
  %1239 = vmatpush2.msra.mxu0 0.0
  %1240 = vmatprep.subr.mxu0 0.0
  %1241 = vmatpush2.msra.mxu0 0.0
  %1242 = vmatprep.subr.mxu0 0.0
  %1243 = vmatpush2.msra.mxu0 0.0
  %1244 = vmatprep.subr.mxu0 0.0
  %1245 = vmatpush2.msra.mxu0 0.0
  %1246 = vmatprep.subr.mxu0 0.0
  %1247 = vmatpush2.msra.mxu0 0.0
  %1248 = vmatprep.subr.mxu0 0.0
  %1249 = vmatpush2.msra.mxu0 0.0
  %1250 = vmatprep.subr.mxu0 0.0
  %1251 = vmatpush2.msra.mxu0 0.0
  %1252 = vmatprep.subr.mxu0 0.0
  %1253 = vmatpush2.msra.mxu0 0.0
  %1254 = vmatprep.subr.mxu0 0.0
  %1255 = vmatpush2.msra.mxu0 0.0
  %1256 = vmatprep.subr.mxu0 0.0
  %1257 = vmatpush2.msra.mxu0 0.0
  %1258 = vmatprep.subr.mxu0 0.0
  %1259 = vmatpush2.msra.mxu0 0.0
  %1260 = vmatprep.subr.mxu0 0.0
  %1261 = vmatpush2.msra.mxu0 0.0
  %1262 = vmatprep.subr.mxu0 0.0
  %1263 = vmatpush2.msra.mxu0 0.0
  %1264 = vmatprep.subr.mxu0 0.0
  %1265 = vmatpush2.msra.mxu0 0.0
  %1266 = vmatprep.subr.mxu0 0.0
  %1267 = vmatpush2.msra.mxu0 0.0
  %1268 = vmatprep.subr.mxu0 0.0
  %1269 = vmatpush2.msra.mxu0 0.0
  %1270 = vmatprep.mubr.f32.mxu0 0.0
  %1271 = vmatmul.mubr.f32.gmra.mxu0 %v1199
  %v1272 = vpop.f32.mrf.mxu0
  %v1273 = vadd.f32 0.0, %v1272
  %v1274 = vpop.f32.mrf.mxu0
  %v1275 = vadd.f32 0.0, %v1274
  %1276 = vdwg.mxu0
  %1277 = vmatprep.subr.mxu0 %v84
  %1278 = vmatpush1.msra.mxu0 %v83
  %1279 = vmatprep.subr.mxu0 %v80
  %1280 = vmatpush1.msra.mxu0 %v79
  %1281 = vmatprep.subr.mxu0 %v76
  %1282 = vmatpush1.msra.mxu0 %v75
  %1283 = vmatprep.subr.mxu0 %v72
  %1284 = vmatpush1.msra.mxu0 %v71
  %1285 = vmatprep.subr.mxu0 %v68
  %1286 = vmatpush1.msra.mxu0 %v67
  %1287 = vmatprep.subr.mxu0 %v64
  %1288 = vmatpush1.msra.mxu0 %v63
  %1289 = vmatprep.subr.mxu0 %v60
  %1290 = vmatpush1.msra.mxu0 %v59
  %1291 = vmatprep.subr.mxu0 %v56
  %1292 = vmatpush1.msra.mxu0 %v55
  %1293 = vmatprep.subr.mxu0 %v52
  %1294 = vmatpush1.msra.mxu0 %v51
  %1295 = vmatprep.subr.mxu0 %v48
  %1296 = vmatpush1.msra.mxu0 %v47
  %1297 = vmatprep.subr.mxu0 %v44
  %1298 = vmatpush1.msra.mxu0 %v43
  %1299 = vmatprep.subr.mxu0 %v40
  %1300 = vmatpush1.msra.mxu0 %v39
  %1301 = vmatprep.subr.mxu0 %v36
  %1302 = vmatpush1.msra.mxu0 %v35
  %1303 = vmatprep.subr.mxu0 %v32
  %1304 = vmatpush1.msra.mxu0 %v31
  %1305 = vmatprep.subr.mxu0 %v28
  %1306 = vmatpush1.msra.mxu0 %v27
  %1307 = vmatprep.subr.mxu0 %v24
  %1308 = vmatpush1.msra.mxu0 %v23
  %1309 = vmatprep.subr.mxu0 0.0
  %1310 = vmatpush2.msra.mxu0 0.0
  %1311 = vmatprep.subr.mxu0 0.0
  %1312 = vmatpush2.msra.mxu0 0.0
  %1313 = vmatprep.subr.mxu0 0.0
  %1314 = vmatpush2.msra.mxu0 0.0
  %1315 = vmatprep.subr.mxu0 0.0
  %1316 = vmatpush2.msra.mxu0 0.0
  %1317 = vmatprep.subr.mxu0 0.0
  %1318 = vmatpush2.msra.mxu0 0.0
  %1319 = vmatprep.subr.mxu0 0.0
  %1320 = vmatpush2.msra.mxu0 0.0
  %1321 = vmatprep.subr.mxu0 0.0
  %1322 = vmatpush2.msra.mxu0 0.0
  %1323 = vmatprep.subr.mxu0 0.0
  %1324 = vmatpush2.msra.mxu0 0.0
  %1325 = vmatprep.subr.mxu0 0.0
  %1326 = vmatpush2.msra.mxu0 0.0
  %1327 = vmatprep.subr.mxu0 0.0
  %1328 = vmatpush2.msra.mxu0 0.0
  %1329 = vmatprep.subr.mxu0 0.0
  %1330 = vmatpush2.msra.mxu0 0.0
  %1331 = vmatprep.subr.mxu0 0.0
  %1332 = vmatpush2.msra.mxu0 0.0
  %1333 = vmatprep.subr.mxu0 0.0
  %1334 = vmatpush2.msra.mxu0 0.0
  %1335 = vmatprep.subr.mxu0 0.0
  %1336 = vmatpush2.msra.mxu0 0.0
  %1337 = vmatprep.subr.mxu0 0.0
  %1338 = vmatpush2.msra.mxu0 0.0
  %1339 = vmatprep.subr.mxu0 0.0
  %1340 = vmatpush2.msra.mxu0 0.0
  %1341 = vmatprep.mubr.f32.mxu0 0.0
  %1342 = vmatmul.mubr.f32.gmra.mxu0 %v1199
  %v1343 = vpop.f32.mrf.mxu0
  %v1344 = vadd.f32 0.0, %v1343
  %v1345 = vpop.f32.mrf.mxu0
  %v1346 = vadd.f32 0.0, %v1345
  %1347 = vdwg.mxu0
  %v1348 = vadd.f32 %v1202, %v1273
  %v1349 = vadd.f32 %v1203, %v1275
  %v1350 = vadd.f32 %v1204, %v1344
  %v1351 = vadd.f32 %v1205, %v1346
  %v1352 = vxor.u32 %v1348, 2147483648
  %v1353 = vxor.u32 %v1349, 2147483648
  %v1354 = vxor.u32 %v1350, 2147483648
  %v1355 = vmul.f32 %v1352, 1.442695
  %v1356 = vpow.pop %v1355
  %v1357 = vmul.f32 %v1353, 1.442695
  %v1358 = vpow.pop %v1357
  %v1359 = vmul.f32 %v1354, 1.442695
  %v1360 = vpow.pop %v1359
  %v1361 = vadd.f32 %v1356, 1.0
  %v1362 = vadd.f32 %v1358, 1.0
  %v1363 = vadd.f32 %v1360, 1.0
  %v1364 = vrcp.pop %v1361
  %v1365 = vmul.f32 1.0, %v1364
  %v1366 = vrcp.pop %v1362
  %v1367 = vmul.f32 1.0, %v1366
  %v1368 = vrcp.pop %v1363
  %v1369 = vmul.f32 1.0, %v1368
  %v1370 = vtanh.pop %v1351
  %v1371 = vmul.f32 %v1367, %v1200
  %v1372 = vmul.f32 %v1365, %v1370
  %v1373 = vadd.f32 %v1371, %v1372
  %v1374 = vtanh.pop %v1373
  %v1375 = vmul.f32 %v1369, %v1374
  %vm1376 = vcmp.gt.s32.totalorder %v20, 6
  %v1377 = vsel %vm1376, 1, 0
  %1378 = vset.pattern.permute.xlu0 0
  %1379 = vperm.xlu0 %1378, %v1377
  %v1380 = vpop.permute.xlu0 %1379
  %vm1381 = vcmp.eq.s32.totalorder %v1380, 1
  %v1382 = vsel %vm1381, %v1375, 0.0
  %s1383 = scalar_lea.vmem %s5, 48
  %1384 = vst [vmem:[%s1383] sm:$0xff] %v1382
  %v1385 = vsel %vm1381, %v1375, %v1199
  %v1386 = vsel %vm1381, %v1373, %v1200
  %s1387 = scalar_lea.vmem %s1, 224
  %v1388 = vld [vmem:[%s1387] sm:$0xff]
  %v1389 = vld [vmem:[%s1387 + $0x8] sm:$0xff]
  %v1390 = vld [vmem:[%s1387 + $0x10] sm:$0xff]
  %v1391 = vld [vmem:[%s1387 + $0x18] sm:$0xff]
  %1392 = vmatprep.subr.mxu0 %v82
  %1393 = vmatpush1.msra.mxu0 %v81
  %1394 = vmatprep.subr.mxu0 %v78
  %1395 = vmatpush1.msra.mxu0 %v77
  %1396 = vmatprep.subr.mxu0 %v74
  %1397 = vmatpush1.msra.mxu0 %v73
  %1398 = vmatprep.subr.mxu0 %v70
  %1399 = vmatpush1.msra.mxu0 %v69
  %1400 = vmatprep.subr.mxu0 %v66
  %1401 = vmatpush1.msra.mxu0 %v65
  %1402 = vmatprep.subr.mxu0 %v62
  %1403 = vmatpush1.msra.mxu0 %v61
  %1404 = vmatprep.subr.mxu0 %v58
  %1405 = vmatpush1.msra.mxu0 %v57
  %1406 = vmatprep.subr.mxu0 %v54
  %1407 = vmatpush1.msra.mxu0 %v53
  %1408 = vmatprep.subr.mxu0 %v50
  %1409 = vmatpush1.msra.mxu0 %v49
  %1410 = vmatprep.subr.mxu0 %v46
  %1411 = vmatpush1.msra.mxu0 %v45
  %1412 = vmatprep.subr.mxu0 %v42
  %1413 = vmatpush1.msra.mxu0 %v41
  %1414 = vmatprep.subr.mxu0 %v38
  %1415 = vmatpush1.msra.mxu0 %v37
  %1416 = vmatprep.subr.mxu0 %v34
  %1417 = vmatpush1.msra.mxu0 %v33
  %1418 = vmatprep.subr.mxu0 %v30
  %1419 = vmatpush1.msra.mxu0 %v29
  %1420 = vmatprep.subr.mxu0 %v26
  %1421 = vmatpush1.msra.mxu0 %v25
  %1422 = vmatprep.subr.mxu0 %v22
  %1423 = vmatpush1.msra.mxu0 %v21
  %1424 = vmatprep.subr.mxu0 0.0
  %1425 = vmatpush2.msra.mxu0 0.0
  %1426 = vmatprep.subr.mxu0 0.0
  %1427 = vmatpush2.msra.mxu0 0.0
  %1428 = vmatprep.subr.mxu0 0.0
  %1429 = vmatpush2.msra.mxu0 0.0
  %1430 = vmatprep.subr.mxu0 0.0
  %1431 = vmatpush2.msra.mxu0 0.0
  %1432 = vmatprep.subr.mxu0 0.0
  %1433 = vmatpush2.msra.mxu0 0.0
  %1434 = vmatprep.subr.mxu0 0.0
  %1435 = vmatpush2.msra.mxu0 0.0
  %1436 = vmatprep.subr.mxu0 0.0
  %1437 = vmatpush2.msra.mxu0 0.0
  %1438 = vmatprep.subr.mxu0 0.0
  %1439 = vmatpush2.msra.mxu0 0.0
  %1440 = vmatprep.subr.mxu0 0.0
  %1441 = vmatpush2.msra.mxu0 0.0
  %1442 = vmatprep.subr.mxu0 0.0
  %1443 = vmatpush2.msra.mxu0 0.0
  %1444 = vmatprep.subr.mxu0 0.0
  %1445 = vmatpush2.msra.mxu0 0.0
  %1446 = vmatprep.subr.mxu0 0.0
  %1447 = vmatpush2.msra.mxu0 0.0
  %1448 = vmatprep.subr.mxu0 0.0
  %1449 = vmatpush2.msra.mxu0 0.0
  %1450 = vmatprep.subr.mxu0 0.0
  %1451 = vmatpush2.msra.mxu0 0.0
  %1452 = vmatprep.subr.mxu0 0.0
  %1453 = vmatpush2.msra.mxu0 0.0
  %1454 = vmatprep.subr.mxu0 0.0
  %1455 = vmatpush2.msra.mxu0 0.0
  %1456 = vmatprep.mubr.f32.mxu0 0.0
  %1457 = vmatmul.mubr.f32.gmra.mxu0 %v1385
  %v1458 = vpop.f32.mrf.mxu0
  %v1459 = vadd.f32 0.0, %v1458
  %v1460 = vpop.f32.mrf.mxu0
  %v1461 = vadd.f32 0.0, %v1460
  %1462 = vdwg.mxu0
  %1463 = vmatprep.subr.mxu0 %v84
  %1464 = vmatpush1.msra.mxu0 %v83
  %1465 = vmatprep.subr.mxu0 %v80
  %1466 = vmatpush1.msra.mxu0 %v79
  %1467 = vmatprep.subr.mxu0 %v76
  %1468 = vmatpush1.msra.mxu0 %v75
  %1469 = vmatprep.subr.mxu0 %v72
  %1470 = vmatpush1.msra.mxu0 %v71
  %1471 = vmatprep.subr.mxu0 %v68
  %1472 = vmatpush1.msra.mxu0 %v67
  %1473 = vmatprep.subr.mxu0 %v64
  %1474 = vmatpush1.msra.mxu0 %v63
  %1475 = vmatprep.subr.mxu0 %v60
  %1476 = vmatpush1.msra.mxu0 %v59
  %1477 = vmatprep.subr.mxu0 %v56
  %1478 = vmatpush1.msra.mxu0 %v55
  %1479 = vmatprep.subr.mxu0 %v52
  %1480 = vmatpush1.msra.mxu0 %v51
  %1481 = vmatprep.subr.mxu0 %v48
  %1482 = vmatpush1.msra.mxu0 %v47
  %1483 = vmatprep.subr.mxu0 %v44
  %1484 = vmatpush1.msra.mxu0 %v43
  %1485 = vmatprep.subr.mxu0 %v40
  %1486 = vmatpush1.msra.mxu0 %v39
  %1487 = vmatprep.subr.mxu0 %v36
  %1488 = vmatpush1.msra.mxu0 %v35
  %1489 = vmatprep.subr.mxu0 %v32
  %1490 = vmatpush1.msra.mxu0 %v31
  %1491 = vmatprep.subr.mxu0 %v28
  %1492 = vmatpush1.msra.mxu0 %v27
  %1493 = vmatprep.subr.mxu0 %v24
  %1494 = vmatpush1.msra.mxu0 %v23
  %1495 = vmatprep.subr.mxu0 0.0
  %1496 = vmatpush2.msra.mxu0 0.0
  %1497 = vmatprep.subr.mxu0 0.0
  %1498 = vmatpush2.msra.mxu0 0.0
  %1499 = vmatprep.subr.mxu0 0.0
  %1500 = vmatpush2.msra.mxu0 0.0
  %1501 = vmatprep.subr.mxu0 0.0
  %1502 = vmatpush2.msra.mxu0 0.0
  %1503 = vmatprep.subr.mxu0 0.0
  %1504 = vmatpush2.msra.mxu0 0.0
  %1505 = vmatprep.subr.mxu0 0.0
  %1506 = vmatpush2.msra.mxu0 0.0
  %1507 = vmatprep.subr.mxu0 0.0
  %1508 = vmatpush2.msra.mxu0 0.0
  %1509 = vmatprep.subr.mxu0 0.0
  %1510 = vmatpush2.msra.mxu0 0.0
  %1511 = vmatprep.subr.mxu0 0.0
  %1512 = vmatpush2.msra.mxu0 0.0
  %1513 = vmatprep.subr.mxu0 0.0
  %1514 = vmatpush2.msra.mxu0 0.0
  %1515 = vmatprep.subr.mxu0 0.0
  %1516 = vmatpush2.msra.mxu0 0.0
  %1517 = vmatprep.subr.mxu0 0.0
  %1518 = vmatpush2.msra.mxu0 0.0
  %1519 = vmatprep.subr.mxu0 0.0
  %1520 = vmatpush2.msra.mxu0 0.0
  %1521 = vmatprep.subr.mxu0 0.0
  %1522 = vmatpush2.msra.mxu0 0.0
  %1523 = vmatprep.subr.mxu0 0.0
  %1524 = vmatpush2.msra.mxu0 0.0
  %1525 = vmatprep.subr.mxu0 0.0
  %1526 = vmatpush2.msra.mxu0 0.0
  %1527 = vmatprep.mubr.f32.mxu0 0.0
  %1528 = vmatmul.mubr.f32.gmra.mxu0 %v1385
  %v1529 = vpop.f32.mrf.mxu0
  %v1530 = vadd.f32 0.0, %v1529
  %v1531 = vpop.f32.mrf.mxu0
  %v1532 = vadd.f32 0.0, %v1531
  %1533 = vdwg.mxu0
  %v1534 = vadd.f32 %v1388, %v1459
  %v1535 = vadd.f32 %v1389, %v1461
  %v1536 = vadd.f32 %v1390, %v1530
  %v1537 = vadd.f32 %v1391, %v1532
  %v1538 = vxor.u32 %v1534, 2147483648
  %v1539 = vxor.u32 %v1535, 2147483648
  %v1540 = vxor.u32 %v1536, 2147483648
  %v1541 = vmul.f32 %v1538, 1.442695
  %v1542 = vpow.pop %v1541
  %v1543 = vmul.f32 %v1539, 1.442695
  %v1544 = vpow.pop %v1543
  %v1545 = vmul.f32 %v1540, 1.442695
  %v1546 = vpow.pop %v1545
  %v1547 = vadd.f32 %v1542, 1.0
  %v1548 = vadd.f32 %v1544, 1.0
  %v1549 = vadd.f32 %v1546, 1.0
  %v1550 = vrcp.pop %v1547
  %v1551 = vmul.f32 1.0, %v1550
  %v1552 = vrcp.pop %v1548
  %v1553 = vmul.f32 1.0, %v1552
  %v1554 = vrcp.pop %v1549
  %v1555 = vmul.f32 1.0, %v1554
  %v1556 = vtanh.pop %v1537
  %v1557 = vmul.f32 %v1553, %v1386
  %v1558 = vmul.f32 %v1551, %v1556
  %v1559 = vadd.f32 %v1557, %v1558
  %v1560 = vtanh.pop %v1559
  %v1561 = vmul.f32 %v1555, %v1560
  %vm1562 = vcmp.gt.s32.totalorder %v20, 7
  %v1563 = vsel %vm1562, 1, 0
  %1564 = vset.pattern.permute.xlu0 0
  %1565 = vperm.xlu0 %1564, %v1563
  %v1566 = vpop.permute.xlu0 %1565
  %vm1567 = vcmp.eq.s32.totalorder %v1566, 1
  %v1568 = vsel %vm1567, %v1561, 0.0
  %s1569 = scalar_lea.vmem %s5, 56
  %1570 = vst [vmem:[%s1569] sm:$0xff] %v1568
  // Predicated region
  $region22: #{seq2seq_forward.9} parent=0 // pred_check
    _
  $region23: #{seq2seq_forward.9} parent=0 // pred_check_branch
    %1572 = sbr.rel (0) target = $region25
  $region24: #{seq2seq_forward.9} parent=0 // pred_region
    _
  $region25: #{seq2seq_forward.9} parent=0 // pred_fallthru
    _
  // Predicated region
  $region26: #{seq2seq_forward.9} parent=0 // pred_check
    _
  $region27: #{seq2seq_forward.9} parent=0 // pred_check_branch
    %1574 = sbr.rel (0) target = $region29
  $region28: #{seq2seq_forward.9} parent=0 // pred_region
    _
  $region29: #{seq2seq_forward.9} parent=0 // pred_fallthru
    _

// kernel: seq2seq_forward.11
$region0: #{seq2seq_forward.11}
  #allocation0 [shape = 'u32[]', space=smem, size = 0x4, offset = 0x4, fixed_abs, tag = 'smem constant byte address 0x4 - core index']
  #allocation1 [shape = 'u32[144,128]{1,0:T(1,128)}', space=vmem, size = 0x12000, scoped, tag = 'internal scratch']
  %s0 = inlined_call_operand.vmem [shape: f32[64,512], index: 0, kind: input, shape index: {}]
  %s1 = inlined_call_operand.vmem [shape: f32[512,128], index: 1, kind: input, shape index: {}]
  %s2 = inlined_call_operand.vmem [shape: f32[1,128], index: 2, kind: input, shape index: {}]
  %s3 = inlined_call_operand.vmem [shape: f32[64,128], index: 3, kind: output, shape index: {}]
  %s4 = sld [smem:[#allocation0]]
  $region22: #{seq2seq_forward.11} parent=0
    _
  %s6 = ssub.s32 1, %s4
  %s7 = scalar_select 0, %s6, %s4
  // Predicated region
  $region2: #{seq2seq_forward.11} parent=0 // pred_check
    _
  $region3: #{seq2seq_forward.11} parent=0 // pred_check_branch
    %9 = sbr.rel (0) target = $region5
  $region4: #{seq2seq_forward.11} parent=0 // pred_region
    _
  $region5: #{seq2seq_forward.11} parent=0 // pred_fallthru
    _
  // Predicated region
  $region6: #{seq2seq_forward.11} parent=0 // pred_check
    _
  $region7: #{seq2seq_forward.11} parent=0 // pred_check_branch
    %11 = sbr.rel (0) target = $region9
  $region8: #{seq2seq_forward.11} parent=0 // pred_region
    _
  $region9: #{seq2seq_forward.11} parent=0 // pred_fallthru
    _
  // Predicated region
  $region10: #{seq2seq_forward.11} parent=0 // pred_check
    _
  $region11: #{seq2seq_forward.11} parent=0 // pred_check_branch
    %13 = sbr.rel (0) target = $region13
  $region12: #{seq2seq_forward.11} parent=0 // pred_region
    _
  $region13: #{seq2seq_forward.11} parent=0 // pred_fallthru
    _
  %v14 = vld [vmem:[%s0] sm:$0xff]
  %v15 = vld [vmem:[%s0 + $0x8] sm:$0xff]
  %v16 = vld [vmem:[%s0 + $0x10] sm:$0xff]
  %v17 = vld [vmem:[%s0 + $0x18] sm:$0xff]
  %v18 = vld [vmem:[%s0 + $0x20] sm:$0xff]
  %v19 = vld [vmem:[%s0 + $0x28] sm:$0xff]
  %v20 = vld [vmem:[%s0 + $0x30] sm:$0xff]
  %v21 = vld [vmem:[%s0 + $0x38] sm:$0xff]
  %v22 = vld [vmem:[%s0 + $0x40] sm:$0xff]
  %v23 = vld [vmem:[%s0 + $0x48] sm:$0xff]
  %v24 = vld [vmem:[%s0 + $0x50] sm:$0xff]
  %v25 = vld [vmem:[%s0 + $0x58] sm:$0xff]
  %v26 = vld [vmem:[%s0 + $0x60] sm:$0xff]
  %v27 = vld [vmem:[%s0 + $0x68] sm:$0xff]
  %v28 = vld [vmem:[%s0 + $0x70] sm:$0xff]
  %v29 = vld [vmem:[%s0 + $0x78] sm:$0xff]
  %v30 = vld [vmem:[%s0 + $0x80] sm:$0xff]
  %v31 = vld [vmem:[%s0 + $0x88] sm:$0xff]
  %v32 = vld [vmem:[%s0 + $0x90] sm:$0xff]
  %v33 = vld [vmem:[%s0 + $0x98] sm:$0xff]
  %v34 = vld [vmem:[%s0 + $0xa0] sm:$0xff]
  %v35 = vld [vmem:[%s0 + $0xa8] sm:$0xff]
  %v36 = vld [vmem:[%s0 + $0xb0] sm:$0xff]
  %v37 = vld [vmem:[%s0 + $0xb8] sm:$0xff]
  %v38 = vld [vmem:[%s0 + $0xc0] sm:$0xff]
  %v39 = vld [vmem:[%s0 + $0xc8] sm:$0xff]
  %v40 = vld [vmem:[%s0 + $0xd0] sm:$0xff]
  %v41 = vld [vmem:[%s0 + $0xd8] sm:$0xff]
  %v42 = vld [vmem:[%s0 + $0xe0] sm:$0xff]
  %v43 = vld [vmem:[%s0 + $0xe8] sm:$0xff]
  %v44 = vld [vmem:[%s0 + $0xf0] sm:$0xff]
  %v45 = vld [vmem:[%s0 + $0xf8] sm:$0xff]
  %v46 = vld [vmem:[%s1] sm:$0xff]
  %v47 = vld [vmem:[%s1 + $0x8] sm:$0xff]
  %v48 = vld [vmem:[%s1 + $0x10] sm:$0xff]
  %v49 = vld [vmem:[%s1 + $0x18] sm:$0xff]
  %v50 = vld [vmem:[%s1 + $0x20] sm:$0xff]
  %v51 = vld [vmem:[%s1 + $0x28] sm:$0xff]
  %v52 = vld [vmem:[%s1 + $0x30] sm:$0xff]
  %v53 = vld [vmem:[%s1 + $0x38] sm:$0xff]
  %v54 = vld [vmem:[%s1 + $0x40] sm:$0xff]
  %v55 = vld [vmem:[%s1 + $0x48] sm:$0xff]
  %v56 = vld [vmem:[%s1 + $0x50] sm:$0xff]
  %v57 = vld [vmem:[%s1 + $0x58] sm:$0xff]
  %v58 = vld [vmem:[%s1 + $0x60] sm:$0xff]
  %v59 = vld [vmem:[%s1 + $0x68] sm:$0xff]
  %v60 = vld [vmem:[%s1 + $0x70] sm:$0xff]
  %v61 = vld [vmem:[%s1 + $0x78] sm:$0xff]
  %v62 = vld [vmem:[%s1 + $0x80] sm:$0xff]
  %v63 = vld [vmem:[%s1 + $0x88] sm:$0xff]
  %v64 = vld [vmem:[%s1 + $0x90] sm:$0xff]
  %v65 = vld [vmem:[%s1 + $0x98] sm:$0xff]
  %v66 = vld [vmem:[%s1 + $0xa0] sm:$0xff]
  %v67 = vld [vmem:[%s1 + $0xa8] sm:$0xff]
  %v68 = vld [vmem:[%s1 + $0xb0] sm:$0xff]
  %v69 = vld [vmem:[%s1 + $0xb8] sm:$0xff]
  %v70 = vld [vmem:[%s1 + $0xc0] sm:$0xff]
  %v71 = vld [vmem:[%s1 + $0xc8] sm:$0xff]
  %v72 = vld [vmem:[%s1 + $0xd0] sm:$0xff]
  %v73 = vld [vmem:[%s1 + $0xd8] sm:$0xff]
  %v74 = vld [vmem:[%s1 + $0xe0] sm:$0xff]
  %v75 = vld [vmem:[%s1 + $0xe8] sm:$0xff]
  %v76 = vld [vmem:[%s1 + $0xf0] sm:$0xff]
  %v77 = vld [vmem:[%s1 + $0xf8] sm:$0xff]
  %v78 = vld [vmem:[%s1 + $0x100] sm:$0xff]
  %v79 = vld [vmem:[%s1 + $0x108] sm:$0xff]
  %v80 = vld [vmem:[%s1 + $0x110] sm:$0xff]
  %v81 = vld [vmem:[%s1 + $0x118] sm:$0xff]
  %v82 = vld [vmem:[%s1 + $0x120] sm:$0xff]
  %v83 = vld [vmem:[%s1 + $0x128] sm:$0xff]
  %v84 = vld [vmem:[%s1 + $0x130] sm:$0xff]
  %v85 = vld [vmem:[%s1 + $0x138] sm:$0xff]
  %v86 = vld [vmem:[%s1 + $0x140] sm:$0xff]
  %v87 = vld [vmem:[%s1 + $0x148] sm:$0xff]
  %v88 = vld [vmem:[%s1 + $0x150] sm:$0xff]
  %v89 = vld [vmem:[%s1 + $0x158] sm:$0xff]
  %v90 = vld [vmem:[%s1 + $0x160] sm:$0xff]
  %v91 = vld [vmem:[%s1 + $0x168] sm:$0xff]
  %v92 = vld [vmem:[%s1 + $0x170] sm:$0xff]
  %v93 = vld [vmem:[%s1 + $0x178] sm:$0xff]
  %v94 = vld [vmem:[%s1 + $0x180] sm:$0xff]
  %v95 = vld [vmem:[%s1 + $0x188] sm:$0xff]
  %v96 = vld [vmem:[%s1 + $0x190] sm:$0xff]
  %v97 = vld [vmem:[%s1 + $0x198] sm:$0xff]
  %v98 = vld [vmem:[%s1 + $0x1a0] sm:$0xff]
  %v99 = vld [vmem:[%s1 + $0x1a8] sm:$0xff]
  %v100 = vld [vmem:[%s1 + $0x1b0] sm:$0xff]
  %v101 = vld [vmem:[%s1 + $0x1b8] sm:$0xff]
  %v102 = vld [vmem:[%s1 + $0x1c0] sm:$0xff]
  %v103 = vld [vmem:[%s1 + $0x1c8] sm:$0xff]
  %v104 = vld [vmem:[%s1 + $0x1d0] sm:$0xff]
  %v105 = vld [vmem:[%s1 + $0x1d8] sm:$0xff]
  %v106 = vld [vmem:[%s1 + $0x1e0] sm:$0xff]
  %v107 = vld [vmem:[%s1 + $0x1e8] sm:$0xff]
  %v108 = vld [vmem:[%s1 + $0x1f0] sm:$0xff]
  %v109 = vld [vmem:[%s1 + $0x1f8] sm:$0xff]
  %v110 = vld [vmem:[%s2] sm:$0x1]
  %v112 = vlaneseq
  %v113 = vshrl.u32 %v112, 7
  %v114 = vsub.s32 0, %v113
  %v115 = vrot.slane %v110, %v114
  %117 = vmatprep.subr.mxu0 0.0
  %118 = vmatpush1.msra.mxu0 %v61
  %119 = vmatprep.subr.mxu0 0.0
  %120 = vmatpush1.msra.mxu0 %v60
  %121 = vmatprep.subr.mxu0 0.0
  %122 = vmatpush1.msra.mxu0 %v59
  %123 = vmatprep.subr.mxu0 0.0
  %124 = vmatpush1.msra.mxu0 %v58
  %125 = vmatprep.subr.mxu0 0.0
  %126 = vmatpush1.msra.mxu0 %v57
  %127 = vmatprep.subr.mxu0 0.0
  %128 = vmatpush1.msra.mxu0 %v56
  %129 = vmatprep.subr.mxu0 0.0
  %130 = vmatpush1.msra.mxu0 %v55
  %131 = vmatprep.subr.mxu0 0.0
  %132 = vmatpush1.msra.mxu0 %v54
  %133 = vmatprep.subr.mxu0 0.0
  %134 = vmatpush1.msra.mxu0 %v53
  %135 = vmatprep.subr.mxu0 0.0
  %136 = vmatpush1.msra.mxu0 %v52
  %137 = vmatprep.subr.mxu0 0.0
  %138 = vmatpush1.msra.mxu0 %v51
  %139 = vmatprep.subr.mxu0 0.0
  %140 = vmatpush1.msra.mxu0 %v50
  %141 = vmatprep.subr.mxu0 0.0
  %142 = vmatpush1.msra.mxu0 %v49
  %143 = vmatprep.subr.mxu0 0.0
  %144 = vmatpush1.msra.mxu0 %v48
  %145 = vmatprep.subr.mxu0 0.0
  %146 = vmatpush1.msra.mxu0 %v47
  %147 = vmatprep.subr.mxu0 0.0
  %148 = vmatpush1.msra.mxu0 %v46
  %149 = vmatprep.subr.mxu0 0.0
  %150 = vmatpush2.msra.mxu0 %v77
  %151 = vmatprep.subr.mxu0 0.0
  %152 = vmatpush2.msra.mxu0 %v76
  %153 = vmatprep.subr.mxu0 0.0
  %154 = vmatpush2.msra.mxu0 %v75
  %155 = vmatprep.subr.mxu0 0.0
  %156 = vmatpush2.msra.mxu0 %v74
  %157 = vmatprep.subr.mxu0 0.0
  %158 = vmatpush2.msra.mxu0 %v73
  %159 = vmatprep.subr.mxu0 0.0
  %160 = vmatpush2.msra.mxu0 %v72
  %161 = vmatprep.subr.mxu0 0.0
  %162 = vmatpush2.msra.mxu0 %v71
  %163 = vmatprep.subr.mxu0 0.0
  %164 = vmatpush2.msra.mxu0 %v70
  %165 = vmatprep.subr.mxu0 0.0
  %166 = vmatpush2.msra.mxu0 %v69
  %167 = vmatprep.subr.mxu0 0.0
  %168 = vmatpush2.msra.mxu0 %v68
  %169 = vmatprep.subr.mxu0 0.0
  %170 = vmatpush2.msra.mxu0 %v67
  %171 = vmatprep.subr.mxu0 0.0
  %172 = vmatpush2.msra.mxu0 %v66
  %173 = vmatprep.subr.mxu0 0.0
  %174 = vmatpush2.msra.mxu0 %v65
  %175 = vmatprep.subr.mxu0 0.0
  %176 = vmatpush2.msra.mxu0 %v64
  %177 = vmatprep.subr.mxu0 0.0
  %178 = vmatpush2.msra.mxu0 %v63
  %179 = vmatprep.subr.mxu0 0.0
  %180 = vmatpush2.msra.mxu0 %v62
  %181 = vmatprep.mubr.f32.mxu0 %v15
  %182 = vmatmul.mubr.f32.gmra.mxu0 %v14
  %v183 = vpop.f32.mrf.mxu0
  %v184 = vadd.f32 %v115, %v183
  %v185 = vpop.f32.mrf.mxu0
  %186 = vmatprep.mubr.f32.mxu0 %v19
  %187 = vmatmul.mubr.f32.gmra.mxu0 %v18
  %v188 = vpop.f32.mrf.mxu0
  %v189 = vadd.f32 %v115, %v188
  %v190 = vpop.f32.mrf.mxu0
  %191 = vmatprep.mubr.f32.mxu0 %v23
  %192 = vmatmul.mubr.f32.gmra.mxu0 %v22
  %v193 = vpop.f32.mrf.mxu0
  %v194 = vadd.f32 %v115, %v193
  %v195 = vpop.f32.mrf.mxu0
  %196 = vmatprep.mubr.f32.mxu0 %v27
  %197 = vmatmul.mubr.f32.gmra.mxu0 %v26
  %v198 = vpop.f32.mrf.mxu0
  %v199 = vadd.f32 %v115, %v198
  %v200 = vpop.f32.mrf.mxu0
  %201 = vmatprep.mubr.f32.mxu0 %v31
  %202 = vmatmul.mubr.f32.gmra.mxu0 %v30
  %v203 = vpop.f32.mrf.mxu0
  %v204 = vadd.f32 %v115, %v203
  %v205 = vpop.f32.mrf.mxu0
  %206 = vmatprep.mubr.f32.mxu0 %v35
  %207 = vmatmul.mubr.f32.gmra.mxu0 %v34
  %v208 = vpop.f32.mrf.mxu0
  %v209 = vadd.f32 %v115, %v208
  %v210 = vpop.f32.mrf.mxu0
  %211 = vmatprep.mubr.f32.mxu0 %v39
  %212 = vmatmul.mubr.f32.gmra.mxu0 %v38
  %v213 = vpop.f32.mrf.mxu0
  %v214 = vadd.f32 %v115, %v213
  %v215 = vpop.f32.mrf.mxu0
  %216 = vmatprep.mubr.f32.mxu0 %v43
  %217 = vmatmul.mubr.f32.gmra.mxu0 %v42
  %v218 = vpop.f32.mrf.mxu0
  %v219 = vadd.f32 %v115, %v218
  %v220 = vpop.f32.mrf.mxu0
  %221 = vdwg.mxu0
  %222 = vmatprep.subr.mxu0 0.0
  %223 = vmatpush1.msra.mxu0 %v93
  %224 = vmatprep.subr.mxu0 0.0
  %225 = vmatpush1.msra.mxu0 %v92
  %226 = vmatprep.subr.mxu0 0.0
  %227 = vmatpush1.msra.mxu0 %v91
  %228 = vmatprep.subr.mxu0 0.0
  %229 = vmatpush1.msra.mxu0 %v90
  %230 = vmatprep.subr.mxu0 0.0
  %231 = vmatpush1.msra.mxu0 %v89
  %232 = vmatprep.subr.mxu0 0.0
  %233 = vmatpush1.msra.mxu0 %v88
  %234 = vmatprep.subr.mxu0 0.0
  %235 = vmatpush1.msra.mxu0 %v87
  %236 = vmatprep.subr.mxu0 0.0
  %237 = vmatpush1.msra.mxu0 %v86
  %238 = vmatprep.subr.mxu0 0.0
  %239 = vmatpush1.msra.mxu0 %v85
  %240 = vmatprep.subr.mxu0 0.0
  %241 = vmatpush1.msra.mxu0 %v84
  %242 = vmatprep.subr.mxu0 0.0
  %243 = vmatpush1.msra.mxu0 %v83
  %244 = vmatprep.subr.mxu0 0.0
  %245 = vmatpush1.msra.mxu0 %v82
  %246 = vmatprep.subr.mxu0 0.0
  %247 = vmatpush1.msra.mxu0 %v81
  %248 = vmatprep.subr.mxu0 0.0
  %249 = vmatpush1.msra.mxu0 %v80
  %250 = vmatprep.subr.mxu0 0.0
  %251 = vmatpush1.msra.mxu0 %v79
  %252 = vmatprep.subr.mxu0 0.0
  %253 = vmatpush1.msra.mxu0 %v78
  %254 = vmatprep.subr.mxu0 0.0
  %255 = vmatpush2.msra.mxu0 %v109
  %256 = vmatprep.subr.mxu0 0.0
  %257 = vmatpush2.msra.mxu0 %v108
  %258 = vmatprep.subr.mxu0 0.0
  %259 = vmatpush2.msra.mxu0 %v107
  %260 = vmatprep.subr.mxu0 0.0
  %261 = vmatpush2.msra.mxu0 %v106
  %262 = vmatprep.subr.mxu0 0.0
  %263 = vmatpush2.msra.mxu0 %v105
  %264 = vmatprep.subr.mxu0 0.0
  %265 = vmatpush2.msra.mxu0 %v104
  %266 = vmatprep.subr.mxu0 0.0
  %267 = vmatpush2.msra.mxu0 %v103
  %268 = vmatprep.subr.mxu0 0.0
  %269 = vmatpush2.msra.mxu0 %v102
  %270 = vmatprep.subr.mxu0 0.0
  %271 = vmatpush2.msra.mxu0 %v101
  %272 = vmatprep.subr.mxu0 0.0
  %273 = vmatpush2.msra.mxu0 %v100
  %274 = vmatprep.subr.mxu0 0.0
  %275 = vmatpush2.msra.mxu0 %v99
  %276 = vmatprep.subr.mxu0 0.0
  %277 = vmatpush2.msra.mxu0 %v98
  %278 = vmatprep.subr.mxu0 0.0
  %279 = vmatpush2.msra.mxu0 %v97
  %280 = vmatprep.subr.mxu0 0.0
  %281 = vmatpush2.msra.mxu0 %v96
  %282 = vmatprep.subr.mxu0 0.0
  %283 = vmatpush2.msra.mxu0 %v95
  %284 = vmatprep.subr.mxu0 0.0
  %285 = vmatpush2.msra.mxu0 %v94
  %286 = vmatprep.mubr.f32.mxu0 %v17
  %287 = vmatmul.mubr.f32.gmra.mxu0 %v16
  %v288 = vpop.f32.mrf.mxu0
  %v289 = vadd.f32 %v184, %v288
  %v290 = vpop.f32.mrf.mxu0
  %291 = vmatprep.mubr.f32.mxu0 %v21
  %292 = vmatmul.mubr.f32.gmra.mxu0 %v20
  %v293 = vpop.f32.mrf.mxu0
  %v294 = vadd.f32 %v189, %v293
  %v295 = vpop.f32.mrf.mxu0
  %296 = vmatprep.mubr.f32.mxu0 %v25
  %297 = vmatmul.mubr.f32.gmra.mxu0 %v24
  %v298 = vpop.f32.mrf.mxu0
  %v299 = vadd.f32 %v194, %v298
  %v300 = vpop.f32.mrf.mxu0
  %301 = vmatprep.mubr.f32.mxu0 %v29
  %302 = vmatmul.mubr.f32.gmra.mxu0 %v28
  %v303 = vpop.f32.mrf.mxu0
  %v304 = vadd.f32 %v199, %v303
  %v305 = vpop.f32.mrf.mxu0
  %306 = vmatprep.mubr.f32.mxu0 %v33
  %307 = vmatmul.mubr.f32.gmra.mxu0 %v32
  %v308 = vpop.f32.mrf.mxu0
  %v309 = vadd.f32 %v204, %v308
  %v310 = vpop.f32.mrf.mxu0
  %311 = vmatprep.mubr.f32.mxu0 %v37
  %312 = vmatmul.mubr.f32.gmra.mxu0 %v36
  %v313 = vpop.f32.mrf.mxu0
  %v314 = vadd.f32 %v209, %v313
  %v315 = vpop.f32.mrf.mxu0
  %316 = vmatprep.mubr.f32.mxu0 %v41
  %317 = vmatmul.mubr.f32.gmra.mxu0 %v40
  %v318 = vpop.f32.mrf.mxu0
  %v319 = vadd.f32 %v214, %v318
  %v320 = vpop.f32.mrf.mxu0
  %321 = vmatprep.mubr.f32.mxu0 %v45
  %322 = vmatmul.mubr.f32.gmra.mxu0 %v44
  %v323 = vpop.f32.mrf.mxu0
  %v324 = vadd.f32 %v219, %v323
  %v325 = vpop.f32.mrf.mxu0
  %326 = vdwg.mxu0
  %327 = vst [vmem:[%s3] sm:$0xff] %v289
  %328 = vst [vmem:[%s3 + $0x8] sm:$0xff] %v294
  %329 = vst [vmem:[%s3 + $0x10] sm:$0xff] %v299
  %330 = vst [vmem:[%s3 + $0x18] sm:$0xff] %v304
  %331 = vst [vmem:[%s3 + $0x20] sm:$0xff] %v309
  %332 = vst [vmem:[%s3 + $0x28] sm:$0xff] %v314
  %333 = vst [vmem:[%s3 + $0x30] sm:$0xff] %v319
  %334 = vst [vmem:[%s3 + $0x38] sm:$0xff] %v324
  // Predicated region
  $region14: #{seq2seq_forward.11} parent=0 // pred_check
    _
  $region15: #{seq2seq_forward.11} parent=0 // pred_check_branch
    %336 = sbr.rel (0) target = $region17
  $region16: #{seq2seq_forward.11} parent=0 // pred_region
    _
  $region17: #{seq2seq_forward.11} parent=0 // pred_fallthru
    _
  // Predicated region
  $region18: #{seq2seq_forward.11} parent=0 // pred_check
    _
  $region19: #{seq2seq_forward.11} parent=0 // pred_check_branch
    %338 = sbr.rel (0) target = $region21
  $region20: #{seq2seq_forward.11} parent=0 // pred_region
    _
  $region21: #{seq2seq_forward.11} parent=0 // pred_fallthru
    _

</llo_original>
